<compile_context>
chip_gen: v5e
topology: v5e:2x2
jax: 0.10.0
libtpu: 0.0.40
codegen_flags: <defaults>
</compile_context>

<pallas_src>
import functools

import numpy as np

import jax
import jax.numpy as jnp
from jax.experimental import pallas as pl
from jax.experimental.pallas import tpu as pltpu

LEAKY_SLOPE = 0.2
BN_EPS = 1e-5


@functools.lru_cache(maxsize=None)
def _vmem_limit_bytes():
    # Generation-aware scoped-VMEM limit (v7x only has 64 MiB per TensorCore).
    try:
        info = pltpu.get_tpu_info()
        cap = getattr(info, "vmem_capacity_bytes", None)
        if cap:
            return int(min(96 * 1024 * 1024, (int(cap) * 3) // 4))
    except Exception:
        pass
    return 32 * 1024 * 1024


# ---------------------------------------------------------------------------
# In-kernel BatchNorm scale/shift from whole-batch per-(w,g)-column statistics.
# ---------------------------------------------------------------------------
def _bn_scale_shift(s_all, ssc_all, gamma_t, beta_t, tmat, *, inv_h, inv_count):
    # s_all   : (N, 1, WG)  per-sample column sums of the raw conv output (f32)
    # ssc_all : (N, 1, WG)  per-sample column-centered sum of squares (f32)
    # gamma_t / beta_t : (1, WG)  per-channel affine, tiled over W
    # tmat    : (WG, WG)  f32 0/1 matrix; row @ tmat = per-channel sum over W,
    #                     already tiled back over W (reduce + broadcast in one dot).
    s_n = jnp.sum(s_all[:, 0, :], axis=0, keepdims=True)                     # (1, WG)
    q_n = jnp.sum(s_all[:, 0, :] * s_all[:, 0, :], axis=0, keepdims=True)    # (1, WG)
    c_n = jnp.sum(ssc_all[:, 0, :], axis=0, keepdims=True)                   # (1, WG)

    s1 = jnp.dot(s_n, tmat, preferred_element_type=jnp.float32)    # sum x
    q = jnp.dot(q_n, tmat, preferred_element_type=jnp.float32)     # sum colsum^2
    s2c = jnp.dot(c_n, tmat, preferred_element_type=jnp.float32)   # within-col SS

    mean = s1 * inv_count
    # Two-level variance: within-column SS + between-column SS (numerically
    # better conditioned than E[x^2] - E[x]^2).
    ss_tot = s2c + q * inv_h - s1 * mean
    var = jnp.maximum(ss_tot * inv_count, 0.0)
    scale = gamma_t * jax.lax.rsqrt(var + BN_EPS)
    shift = beta_t - mean * scale
    return scale, shift


# ---------------------------------------------------------------------------
# Kernel: fused [finish previous layer's BN+LeakyReLU] + 3x3 conv (+bias)
#         + per-sample BN statistics for THIS layer's conv output.
# ---------------------------------------------------------------------------
def dense_layer_kernel(*refs, num_slots, fused, h, inv_h, inv_count):
    # Input refs (in order):
    #   num_slots x slot refs            (1, H+2, WG) bf16   finalized features
    #   if fused:
    #     prev_conv                      (1, H,   WG) f32    previous raw conv
    #     s_all, ssc_all                 (N, 1,   WG) f32    previous BN stats
    #     gamma_t, beta_t                (1, WG)      f32
    #     tmat                           (WG, WG)     f32
    #   w_ref                            (S, 3, WG, WG) bf16 clamp-banded weights
    #   b_ref                            (1, WG)      f32    bias (tiled over W)
    # Output refs:
    #   conv_ref (1, H, WG) f32 ; s_ref, ssc_ref (1, 1, WG) f32
    #   if fused: new_slot_ref (1, H+2, WG) bf16  (previous layer's activation)
    idx = 0
    slot_refs = refs[idx:idx + num_slots]
    idx += num_slots
    if fused:
        (prev_conv_ref, s_all_ref, ssc_all_ref,
         gamma_ref, beta_ref, t_ref) = refs[idx:idx + 6]
        idx += 6
    w_ref, b_ref = refs[idx], refs[idx + 1]
    idx += 2
    conv_ref, s_ref, ssc_ref = refs[idx:idx + 3]
    idx += 3
    new_slot_ref = refs[idx] if fused else None

    wg = conv_ref.shape[-1]

    # 3x3 conv over already-finalized bf16 feature slabs.  Register accumulator;
    # the kh shift is taken on the f32 matmul result so all loads stay aligned.
    acc = jnp.zeros((h, wg), jnp.float32)
    for l in range(num_slots):
        slab = slot_refs[l][0]                                  # (H+2, WG) bf16
        for kh in range(3):
            p = jnp.dot(slab, w_ref[l, kh],
                        preferred_element_type=jnp.float32)     # (H+2, WG) f32
            acc = acc + p[kh:kh + h, :]

    if fused:
        # Finish the PREVIOUS layer: BN affine from whole-batch stats + LeakyReLU.
        scale, shift = _bn_scale_shift(
            s_all_ref[...], ssc_all_ref[...], gamma_ref[...], beta_ref[...],
            t_ref[...], inv_h=inv_h, inv_count=inv_count)
        y = prev_conv_ref[0] * scale + shift                    # (H, WG) f32
        y = jnp.where(y > 0.0, y, LEAKY_SLOPE * y)
        zrow = jnp.zeros((1, wg), jnp.float32)
        y_pad = jnp.concatenate([zrow, y, zrow], axis=0).astype(jnp.bfloat16)
        new_slot_ref[0] = y_pad                                 # persist feature
        for kh in range(3):
            p = jnp.dot(y_pad, w_ref[num_slots, kh],
                        preferred_element_type=jnp.float32)
            acc = acc + p[kh:kh + h, :]

    conv = acc + b_ref[...]
    conv_ref[0] = conv
    # Per-sample, per-(w,g)-column sums and centered sum of squares for BN.
    colsum = jnp.sum(conv, axis=0, keepdims=True)               # (1, WG)
    centered = conv - colsum * inv_h
    s_ref[0] = colsum
    ssc_ref[0] = jnp.sum(centered * centered, axis=0, keepdims=True)


def dense_layer(slots, wb, b_t, *, prev, tmat, width):
    N, Hp2, WG = slots[0].shape
    H = Hp2 - 2
    num_slots = len(slots)
    fused = prev is not None
    inv_count = 1.0 / float(N * H * width)

    inputs = list(slots)
    in_specs = [pl.BlockSpec((1, Hp2, WG), lambda n: (n, 0, 0)) for _ in slots]
    if fused:
        prev_conv, prev_s, prev_ssc, gamma_t, beta_t = prev
        inputs += [prev_conv, prev_s, prev_ssc, gamma_t, beta_t, tmat]
        in_specs += [
            pl.BlockSpec((1, H, WG), lambda n: (n, 0, 0)),
            pl.BlockSpec((N, 1, WG), lambda n: (0, 0, 0)),
            pl.BlockSpec((N, 1, WG), lambda n: (0, 0, 0)),
            pl.BlockSpec((1, WG), lambda n: (0, 0)),
            pl.BlockSpec((1, WG), lambda n: (0, 0)),
            pl.BlockSpec((WG, WG), lambda n: (0, 0)),
        ]
    inputs += [wb, b_t]
    in_specs += [
        pl.BlockSpec(wb.shape, lambda n: (0, 0, 0, 0)),
        pl.BlockSpec((1, WG), lambda n: (0, 0)),
    ]

    out_shape = [
        jax.ShapeDtypeStruct((N, H, WG), jnp.float32),   # raw conv output
        jax.ShapeDtypeStruct((N, 1, WG), jnp.float32),   # column sums
        jax.ShapeDtypeStruct((N, 1, WG), jnp.float32),   # centered column sum-sq
    ]
    out_specs = [
        pl.BlockSpec((1, H, WG), lambda n: (n, 0, 0)),
        pl.BlockSpec((1, 1, WG), lambda n: (n, 0, 0)),
        pl.BlockSpec((1, 1, WG), lambda n: (n, 0, 0)),
    ]
    if fused:
        out_shape.append(jax.ShapeDtypeStruct((N, Hp2, WG), jnp.bfloat16))
        out_specs.append(pl.BlockSpec((1, Hp2, WG), lambda n: (n, 0, 0)))

    n_feats = num_slots + (1 if fused else 0)
    flops = 2 * N * n_feats * 3 * Hp2 * WG * WG
    bytes_accessed = (N * num_slots * Hp2 * WG * 2 + wb.size * 2
                      + N * H * WG * 4 * (2 if fused else 1)
                      + (N * Hp2 * WG * 2 if fused else 0)
                      + 4 * N * WG * 4)

    kernel = functools.partial(
        dense_layer_kernel, num_slots=num_slots, fused=fused,
        h=H, inv_h=1.0 / H, inv_count=inv_count)

    return pl.pallas_call(
        kernel,
        out_shape=tuple(out_shape),
        grid=(N,),
        in_specs=in_specs,
        out_specs=tuple(out_specs),
        compiler_params=pltpu.CompilerParams(
            dimension_semantics=("parallel",),
            vmem_limit_bytes=_vmem_limit_bytes()),
        cost_estimate=pl.CostEstimate(
            flops=int(flops), transcendentals=int(WG),
            bytes_accessed=int(bytes_accessed)),
    )(*inputs)


# ---------------------------------------------------------------------------
# Finalize kernel: BN + LeakyReLU of the LAST layer (no consumer conv exists).
# ---------------------------------------------------------------------------
def bn_finalize_kernel(conv_ref, s_all_ref, ssc_all_ref, gamma_ref, beta_ref,
                       t_ref, y_ref, *, inv_h, inv_count):
    scale, shift = _bn_scale_shift(
        s_all_ref[...], ssc_all_ref[...], gamma_ref[...], beta_ref[...],
        t_ref[...], inv_h=inv_h, inv_count=inv_count)
    y = conv_ref[0] * scale + shift
    y_ref[0] = jnp.where(y > 0.0, y, LEAKY_SLOPE * y)


def bn_finalize(conv, s, ssc, gamma_t, beta_t, tmat, *, width):
    N, H, WG = conv.shape
    inv_count = 1.0 / float(N * H * width)
    kernel = functools.partial(bn_finalize_kernel,
                               inv_h=1.0 / H, inv_count=inv_count)
    return pl.pallas_call(
        kernel,
        out_shape=jax.ShapeDtypeStruct((N, H, WG), jnp.float32),
        grid=(N,),
        in_specs=[
            pl.BlockSpec((1, H, WG), lambda n: (n, 0, 0)),
            pl.BlockSpec((N, 1, WG), lambda n: (0, 0, 0)),
            pl.BlockSpec((N, 1, WG), lambda n: (0, 0, 0)),
            pl.BlockSpec((1, WG), lambda n: (0, 0)),
            pl.BlockSpec((1, WG), lambda n: (0, 0)),
            pl.BlockSpec((WG, WG), lambda n: (0, 0)),
        ],
        out_specs=pl.BlockSpec((1, H, WG), lambda n: (n, 0, 0)),
        compiler_params=pltpu.CompilerParams(
            dimension_semantics=("parallel",),
            vmem_limit_bytes=_vmem_limit_bytes()),
    )(conv, s, ssc, gamma_t, beta_t, tmat)


# ---------------------------------------------------------------------------
# Host-side parameter construction / weight banding.
# ---------------------------------------------------------------------------
def init_dense_block_params(key, num_layers, growth):
    """Synthetic init, conv weights in HWIO (3, 3, Cin, Cout)."""
    params = []
    for i in range(num_layers):
        cin = growth * (i + 1)
        key, k_w, k_b = jax.random.split(key, 3)
        bound = 1.0 / float(np.sqrt(cin * 9))
        w = jax.random.uniform(k_w, (3, 3, cin, growth), jnp.float32, -bound, bound)
        b = jax.random.uniform(k_b, (growth,), jnp.float32, -bound, bound)
        gamma = jnp.ones((growth,), jnp.float32)   # BatchNorm2d default init
        beta = jnp.zeros((growth,), jnp.float32)
        params.append((w, b, gamma, beta))
    return params


def make_banded_weights(w_hwio, width, growth):
    """Clamp-band the 3x3 HWIO weights to (W*G, W*G) per (slot, kh); the W
    boundary (zero padding) is handled by simply dropping out-of-range taps,
    so the feature slabs need no W halo."""
    w = np.asarray(w_hwio, dtype=np.float32)          # (3, 3, Cin, G)
    _, _, cin, g = w.shape
    assert g == growth and cin % growth == 0
    n_slots = cin // growth
    wg = width * growth
    wb = np.zeros((n_slots, 3, wg, wg), np.float32)
    for l in range(n_slots):
        for kh in range(3):
            for kw in range(3):
                blk = w[kh, kw, l * growth:(l + 1) * growth, :]   # (G, G)
                for wo in range(width):
                    wi = wo + kw - 1
                    if 0 <= wi < width:
                        wb[l, kh,
                           wi * growth:(wi + 1) * growth,
                           wo * growth:(wo + 1) * growth] = blk
    return jnp.asarray(wb, dtype=jnp.bfloat16)


def make_channel_sum_matrix(width, growth):
    """0/1 matrix so that row @ tmat = per-channel sum over W, tiled back over W."""
    wg = width * growth
    idx = np.arange(wg)
    t = (idx[:, None] % growth == idx[None, :] % growth).astype(np.float32)
    return jnp.asarray(t)


def prepare_dense_block_params(params, width, growth):
    prepared = []
    for (w, b, gamma, beta) in params:
        wb = make_banded_weights(w, width, growth)
        b_t = jnp.tile(b, width).reshape(1, width * growth).astype(jnp.float32)
        gamma_t = jnp.tile(gamma, width).reshape(1, width * growth).astype(jnp.float32)
        beta_t = jnp.tile(beta, width).reshape(1, width * growth).astype(jnp.float32)
        prepared.append((wb, b_t, gamma_t, beta_t))
    return prepared


# ---------------------------------------------------------------------------
# DenseBlock forward (NCHW in / NCHW out, like PyTorch).
# ---------------------------------------------------------------------------
@jax.jit
def dense_block_forward(x_nchw, prepared, tmat):
    N, G, H, W = x_nchw.shape
    L = len(prepared)
    Hp2, WG = H + 2, W * G

    # Feature slab 0 = input, H-halo padded, lane layout (w, g), bf16 storage.
    x_nhwg = jnp.transpose(x_nchw, (0, 2, 3, 1))            # (N, H, W, G)
    slot0 = jnp.pad(x_nhwg, ((0, 0), (1, 1), (0, 0), (0, 0)))
    slot0 = slot0.reshape(N, Hp2, WG).astype(jnp.bfloat16)

    slots = [slot0]
    prev = None
    for (wb, b_t, gamma_t, beta_t) in prepared:
        outs = dense_layer(slots, wb, b_t, prev=prev, tmat=tmat, width=W)
        if prev is None:
            conv, s, ssc = outs
        else:
            conv, s, ssc, new_slot = outs
            slots.append(new_slot)      # previous layer's activation, finalized
        prev = (conv, s, ssc, gamma_t, beta_t)

    conv, s, ssc, gamma_t, beta_t = prev
    y_last = bn_finalize(conv, s, ssc, gamma_t, beta_t, tmat, width=W)   # (N, H, WG)

    # Final torch.cat: crop the H halo, restore NCHW channel order (layout only).
    feat_slabs = [slots[k][:, 1:H + 1, :].astype(jnp.float32) for k in range(1, L)]
    feat_slabs.append(y_last)
    feats = jnp.stack(feat_slabs, axis=1).reshape(N, L, H, W, G)
    feats = jnp.transpose(feats, (0, 1, 4, 2, 3)).reshape(N, L * G, H, W)
    return jnp.concatenate([x_nchw, feats], axis=1)


# ---------------------------------------------------------------------------
# Pure-JAX f32 reference (mirrors the PyTorch module) for verification.
# ---------------------------------------------------------------------------
def reference_forward(x_nchw, params):
    feats = [x_nchw]
    for (w, b, gamma, beta) in params:
        inp = jnp.concatenate(feats, axis=1)
        conv = jax.lax.conv_general_dilated(
            inp, w, window_strides=(1, 1), padding=((1, 1), (1, 1)),
            dimension_numbers=("NCHW", "HWIO", "NCHW"))
        conv = conv + b.reshape(1, -1, 1, 1)
        mean = jnp.mean(conv, axis=(0, 2, 3), keepdims=True)
        var = jnp.mean(jnp.square(conv - mean), axis=(0, 2, 3), keepdims=True)
        y = (conv - mean) * jax.lax.rsqrt(var + BN_EPS)
        y = y * gamma.reshape(1, -1, 1, 1) + beta.reshape(1, -1, 1, 1)
        y = jnp.where(y > 0, y, LEAKY_SLOPE * y)
        feats.append(y)
    return jnp.concatenate(feats, axis=1)


if __name__ == "__main__":
    num_layers = 3
    growth = 4
    N, H, W = 2, 16, 16

    key = jax.random.PRNGKey(0)
    key, kx = jax.random.split(key)
    x = jax.random.normal(kx, (N, growth, H, W), jnp.float32)   # NCHW

    params = init_dense_block_params(key, num_layers, growth)
    prepared = prepare_dense_block_params(params, W, growth)
    tmat = make_channel_sum_matrix(W, growth)

    y = dense_block_forward(x, prepared, tmat)
    y = jax.block_until_ready(y)

    expected_channels = growth * (num_layers + 1)
    assert y.shape == (N, expected_channels, H, W), y.shape
    assert bool(jnp.isfinite(y).all())

    # Numerical check against the f32 reference (bf16 matmul/features -> small dev).
    y_ref = reference_forward(x, params)
    max_err = float(jnp.max(jnp.abs(y - y_ref)))
    assert max_err < 1e-1, f"max abs err {max_err}"

    print("KERNEL_OK")
</pallas_src>

<mosaic_0001>
module attributes {stable_mosaic.version = 11 : i64} {
  func.func @dense_layer_kernel(%arg0: i32, %arg1: memref<1x18x64xbf16, #tpu.memory_space<vmem>>, %arg2: memref<1x16x64xf32, #tpu.memory_space<vmem>>, %arg3: memref<2x1x64xf32, #tpu.memory_space<vmem>>, %arg4: memref<2x1x64xf32, #tpu.memory_space<vmem>>, %arg5: memref<1x64xf32, #tpu.memory_space<vmem>>, %arg6: memref<1x64xf32, #tpu.memory_space<vmem>>, %arg7: memref<64x64xf32, #tpu.memory_space<vmem>>, %arg8: memref<2x3x64x64xbf16, #tpu.memory_space<vmem>>, %arg9: memref<1x64xf32, #tpu.memory_space<vmem>>, %arg10: memref<1x16x64xf32, #tpu.memory_space<vmem>>, %arg11: memref<1x1x64xf32, #tpu.memory_space<vmem>>, %arg12: memref<1x1x64xf32, #tpu.memory_space<vmem>>, %arg13: memref<1x18x64xbf16, #tpu.memory_space<vmem>>) attributes {dimension_semantics = [#tpu.dimension_semantics<parallel>], iteration_bounds = array<i64: 2>, scalar_prefetch = 0 : i64, scratch_operands = 0 : i64, tpu.core_type = #tpu.core_type<tc>, window_params = [{transform_indices = @transform_0, window_bounds = array<i64: 1, 18, 64>}, {transform_indices = @transform_1, window_bounds = array<i64: 1, 16, 64>}, {pipeline_mode = #tpu.pipeline_mode<synchronous>, transform_indices = @transform_2, window_bounds = array<i64: 2, 1, 64>}, {pipeline_mode = #tpu.pipeline_mode<synchronous>, transform_indices = @transform_3, window_bounds = array<i64: 2, 1, 64>}, {pipeline_mode = #tpu.pipeline_mode<synchronous>, transform_indices = @transform_4, window_bounds = array<i64: 1, 64>}, {pipeline_mode = #tpu.pipeline_mode<synchronous>, transform_indices = @transform_5, window_bounds = array<i64: 1, 64>}, {pipeline_mode = #tpu.pipeline_mode<synchronous>, transform_indices = @transform_6, window_bounds = array<i64: 64, 64>}, {pipeline_mode = #tpu.pipeline_mode<synchronous>, transform_indices = @transform_7, window_bounds = array<i64: 2, 3, 64, 64>}, {pipeline_mode = #tpu.pipeline_mode<synchronous>, transform_indices = @transform_8, window_bounds = array<i64: 1, 64>}, {transform_indices = @transform_9, window_bounds = array<i64: 1, 16, 64>}, {transform_indices = @transform_10, window_bounds = array<i64: 1, 1, 64>}, {transform_indices = @transform_11, window_bounds = array<i64: 1, 1, 64>}, {transform_indices = @transform_12, window_bounds = array<i64: 1, 18, 64>}]} {
    %cst = arith.constant 0.000000e+00 : f32
    %0 = vector.broadcast %cst : f32 to vector<16x64xf32>
    %c0 = arith.constant 0 : index
    %c0_0 = arith.constant 0 : index
    %c0_1 = arith.constant 0 : index
    %1 = vector.load %arg1[%c0, %c0_0, %c0_1] : memref<1x18x64xbf16, #tpu.memory_space<vmem>>, vector<1x18x64xbf16>
    %2 = vector.shape_cast %1 : vector<1x18x64xbf16> to vector<18x64xbf16>
    %c0_2 = arith.constant 0 : index
    %c0_3 = arith.constant 0 : index
    %c0_4 = arith.constant 0 : index
    %c0_5 = arith.constant 0 : index
    %3 = vector.load %arg8[%c0_2, %c0_3, %c0_4, %c0_5] : memref<2x3x64x64xbf16, #tpu.memory_space<vmem>>, vector<1x1x64x64xbf16>
    %4 = vector.shape_cast %3 : vector<1x1x64x64xbf16> to vector<64x64xbf16>
    %cst_6 = arith.constant dense<0.000000e+00> : vector<18x64xf32>
    %5 = tpu.matmul %2, %4, %cst_6 {dimension_numbers = #tpu.dot_dimension_numbers<[1], [0], [0], [1], [0, 0, 1, 1], [], []>} : vector<18x64xbf16>, vector<64x64xbf16>, vector<18x64xf32> -> vector<18x64xf32>
    %6 = vector.extract_strided_slice %5 {offsets = [0, 0], sizes = [16, 64], strides = [1, 1]} : vector<18x64xf32> to vector<16x64xf32>
    %7 = arith.addf %0, %6 : vector<16x64xf32>
    %c0_7 = arith.constant 0 : index
    %c1 = arith.constant 1 : index
    %c0_8 = arith.constant 0 : index
    %c0_9 = arith.constant 0 : index
    %8 = vector.load %arg8[%c0_7, %c1, %c0_8, %c0_9] : memref<2x3x64x64xbf16, #tpu.memory_space<vmem>>, vector<1x1x64x64xbf16>
    %9 = vector.shape_cast %8 : vector<1x1x64x64xbf16> to vector<64x64xbf16>
    %cst_10 = arith.constant dense<0.000000e+00> : vector<18x64xf32>
    %10 = tpu.matmul %2, %9, %cst_10 {dimension_numbers = #tpu.dot_dimension_numbers<[1], [0], [0], [1], [0, 0, 1, 1], [], []>} : vector<18x64xbf16>, vector<64x64xbf16>, vector<18x64xf32> -> vector<18x64xf32>
    %11 = vector.extract_strided_slice %10 {offsets = [1, 0], sizes = [16, 64], strides = [1, 1]} : vector<18x64xf32> to vector<16x64xf32>
    %12 = arith.addf %7, %11 : vector<16x64xf32>
    %c0_11 = arith.constant 0 : index
    %c2 = arith.constant 2 : index
    %c0_12 = arith.constant 0 : index
    %c0_13 = arith.constant 0 : index
    %13 = vector.load %arg8[%c0_11, %c2, %c0_12, %c0_13] : memref<2x3x64x64xbf16, #tpu.memory_space<vmem>>, vector<1x1x64x64xbf16>
    %14 = vector.shape_cast %13 : vector<1x1x64x64xbf16> to vector<64x64xbf16>
    %cst_14 = arith.constant dense<0.000000e+00> : vector<18x64xf32>
    %15 = tpu.matmul %2, %14, %cst_14 {dimension_numbers = #tpu.dot_dimension_numbers<[1], [0], [0], [1], [0, 0, 1, 1], [], []>} : vector<18x64xbf16>, vector<64x64xbf16>, vector<18x64xf32> -> vector<18x64xf32>
    %16 = vector.extract_strided_slice %15 {offsets = [2, 0], sizes = [16, 64], strides = [1, 1]} : vector<18x64xf32> to vector<16x64xf32>
    %17 = arith.addf %12, %16 : vector<16x64xf32>
    %c0_15 = arith.constant 0 : index
    %c0_16 = arith.constant 0 : index
    %c0_17 = arith.constant 0 : index
    %18 = vector.load %arg3[%c0_15, %c0_16, %c0_17] : memref<2x1x64xf32, #tpu.memory_space<vmem>>, vector<2x1x64xf32>
    %c0_18 = arith.constant 0 : index
    %c0_19 = arith.constant 0 : index
    %c0_20 = arith.constant 0 : index
    %19 = vector.load %arg4[%c0_18, %c0_19, %c0_20] : memref<2x1x64xf32, #tpu.memory_space<vmem>>, vector<2x1x64xf32>
    %c0_21 = arith.constant 0 : index
    %c0_22 = arith.constant 0 : index
    %20 = vector.load %arg5[%c0_21, %c0_22] : memref<1x64xf32, #tpu.memory_space<vmem>>, vector<1x64xf32>
    %c0_23 = arith.constant 0 : index
    %c0_24 = arith.constant 0 : index
    %21 = vector.load %arg6[%c0_23, %c0_24] : memref<1x64xf32, #tpu.memory_space<vmem>>, vector<1x64xf32>
    %c0_25 = arith.constant 0 : index
    %c0_26 = arith.constant 0 : index
    %22 = vector.load %arg7[%c0_25, %c0_26] : memref<64x64xf32, #tpu.memory_space<vmem>>, vector<64x64xf32>
    %23 = vector.shape_cast %18 : vector<2x1x64xf32> to vector<2x64xf32>
    %cst_27 = arith.constant dense<0.000000e+00> : vector<64xf32>
    %24 = vector.multi_reduction <add>, %23, %cst_27 [0] : vector<2x64xf32> to vector<64xf32>
    %25 = vector.shape_cast %24 : vector<64xf32> to vector<1x64xf32>
    %26 = vector.shape_cast %18 : vector<2x1x64xf32> to vector<2x64xf32>
    %27 = vector.shape_cast %18 : vector<2x1x64xf32> to vector<2x64xf32>
    %28 = arith.mulf %26, %27 : vector<2x64xf32>
    %cst_28 = arith.constant dense<0.000000e+00> : vector<64xf32>
    %29 = vector.multi_reduction <add>, %28, %cst_28 [0] : vector<2x64xf32> to vector<64xf32>
    %30 = vector.shape_cast %29 : vector<64xf32> to vector<1x64xf32>
    %31 = vector.shape_cast %19 : vector<2x1x64xf32> to vector<2x64xf32>
    %cst_29 = arith.constant dense<0.000000e+00> : vector<64xf32>
    %32 = vector.multi_reduction <add>, %31, %cst_29 [0] : vector<2x64xf32> to vector<64xf32>
    %33 = vector.shape_cast %32 : vector<64xf32> to vector<1x64xf32>
    %cst_30 = arith.constant dense<0.000000e+00> : vector<1x64xf32>
    %34 = tpu.matmul %25, %22, %cst_30 {dimension_numbers = #tpu.dot_dimension_numbers<[1], [0], [0], [1], [0, 0, 1, 1], [], []>} : vector<1x64xf32>, vector<64x64xf32>, vector<1x64xf32> -> vector<1x64xf32>
    %cst_31 = arith.constant dense<0.000000e+00> : vector<1x64xf32>
    %35 = tpu.matmul %30, %22, %cst_31 {dimension_numbers = #tpu.dot_dimension_numbers<[1], [0], [0], [1], [0, 0, 1, 1], [], []>} : vector<1x64xf32>, vector<64x64xf32>, vector<1x64xf32> -> vector<1x64xf32>
    %cst_32 = arith.constant dense<0.000000e+00> : vector<1x64xf32>
    %36 = tpu.matmul %33, %22, %cst_32 {dimension_numbers = #tpu.dot_dimension_numbers<[1], [0], [0], [1], [0, 0, 1, 1], [], []>} : vector<1x64xf32>, vector<64x64xf32>, vector<1x64xf32> -> vector<1x64xf32>
    %cst_33 = arith.constant 0.001953125 : f32
    %37 = vector.broadcast %cst_33 : f32 to vector<1x64xf32>
    %38 = arith.mulf %34, %37 : vector<1x64xf32>
    %cst_34 = arith.constant 6.250000e-02 : f32
    %39 = vector.broadcast %cst_34 : f32 to vector<1x64xf32>
    %40 = arith.mulf %35, %39 : vector<1x64xf32>
    %41 = arith.addf %36, %40 : vector<1x64xf32>
    %42 = arith.mulf %34, %38 : vector<1x64xf32>
    %43 = arith.subf %41, %42 : vector<1x64xf32>
    %cst_35 = arith.constant 0.001953125 : f32
    %44 = vector.broadcast %cst_35 : f32 to vector<1x64xf32>
    %45 = arith.mulf %43, %44 : vector<1x64xf32>
    %cst_36 = arith.constant 0.000000e+00 : f32
    %46 = vector.broadcast %cst_36 : f32 to vector<1x64xf32>
    %47 = arith.maximumf %45, %46 : vector<1x64xf32>
    %cst_37 = arith.constant 9.99999974E-6 : f32
    %48 = vector.broadcast %cst_37 : f32 to vector<1x64xf32>
    %49 = arith.addf %47, %48 : vector<1x64xf32>
    %50 = math.rsqrt %49 : vector<1x64xf32>
    %51 = arith.mulf %20, %50 : vector<1x64xf32>
    %52 = arith.mulf %38, %51 : vector<1x64xf32>
    %53 = arith.subf %21, %52 : vector<1x64xf32>
    %c0_38 = arith.constant 0 : index
    %c0_39 = arith.constant 0 : index
    %c0_40 = arith.constant 0 : index
    %54 = vector.load %arg2[%c0_38, %c0_39, %c0_40] : memref<1x16x64xf32, #tpu.memory_space<vmem>>, vector<1x16x64xf32>
    %55 = vector.shape_cast %54 : vector<1x16x64xf32> to vector<16x64xf32>
    %56 = vector.broadcast %51 : vector<1x64xf32> to vector<16x64xf32>
    %57 = arith.mulf %55, %56 : vector<16x64xf32>
    %58 = vector.broadcast %53 : vector<1x64xf32> to vector<16x64xf32>
    %59 = arith.addf %57, %58 : vector<16x64xf32>
    %cst_41 = arith.constant 0.000000e+00 : f32
    %60 = vector.broadcast %cst_41 : f32 to vector<16x64xf32>
    %61 = arith.cmpf ogt, %59, %60 : vector<16x64xf32>
    %cst_42 = arith.constant 2.000000e-01 : f32
    %62 = vector.broadcast %cst_42 : f32 to vector<16x64xf32>
    %63 = arith.mulf %62, %59 : vector<16x64xf32>
    %64 = arith.select %61, %59, %63 : vector<16x64xi1>, vector<16x64xf32>
    %cst_43 = arith.constant 0.000000e+00 : f32
    %65 = vector.broadcast %cst_43 : f32 to vector<1x64xf32>
    %66 = tpu.concatenate %65, %64, %65 in 0 : vector<1x64xf32>, vector<16x64xf32>, vector<1x64xf32> -> vector<18x64xf32>
    %67 = arith.truncf %66 : vector<18x64xf32> to vector<18x64xbf16>
    %c0_44 = arith.constant 0 : index
    %c0_45 = arith.constant 0 : index
    %c0_46 = arith.constant 0 : index
    %68 = vector.load %arg13[%c0_44, %c0_45, %c0_46] : memref<1x18x64xbf16, #tpu.memory_space<vmem>>, vector<1x18x64xbf16>
    %69 = vector.shape_cast %68 : vector<1x18x64xbf16> to vector<18x64xbf16>
    %70 = vector.shape_cast %67 : vector<18x64xbf16> to vector<1x18x64xbf16>
    tpu.vector_store %arg13[%c0_44, %c0_45, %c0_46], %70 {strides = array<i32>} : memref<1x18x64xbf16, #tpu.memory_space<vmem>>, vector<1x18x64xbf16>,
    %c1_47 = arith.constant 1 : index
    %c0_48 = arith.constant 0 : index
    %c0_49 = arith.constant 0 : index
    %c0_50 = arith.constant 0 : index
    %71 = vector.load %arg8[%c1_47, %c0_48, %c0_49, %c0_50] : memref<2x3x64x64xbf16, #tpu.memory_space<vmem>>, vector<1x1x64x64xbf16>
    %72 = vector.shape_cast %71 : vector<1x1x64x64xbf16> to vector<64x64xbf16>
    %cst_51 = arith.constant dense<0.000000e+00> : vector<18x64xf32>
    %73 = tpu.matmul %67, %72, %cst_51 {dimension_numbers = #tpu.dot_dimension_numbers<[1], [0], [0], [1], [0, 0, 1, 1], [], []>} : vector<18x64xbf16>, vector<64x64xbf16>, vector<18x64xf32> -> vector<18x64xf32>
    %74 = vector.extract_strided_slice %73 {offsets = [0, 0], sizes = [16, 64], strides = [1, 1]} : vector<18x64xf32> to vector<16x64xf32>
    %75 = arith.addf %17, %74 : vector<16x64xf32>
    %c1_52 = arith.constant 1 : index
    %c1_53 = arith.constant 1 : index
    %c0_54 = arith.constant 0 : index
    %c0_55 = arith.constant 0 : index
    %76 = vector.load %arg8[%c1_52, %c1_53, %c0_54, %c0_55] : memref<2x3x64x64xbf16, #tpu.memory_space<vmem>>, vector<1x1x64x64xbf16>
    %77 = vector.shape_cast %76 : vector<1x1x64x64xbf16> to vector<64x64xbf16>
    %cst_56 = arith.constant dense<0.000000e+00> : vector<18x64xf32>
    %78 = tpu.matmul %67, %77, %cst_56 {dimension_numbers = #tpu.dot_dimension_numbers<[1], [0], [0], [1], [0, 0, 1, 1], [], []>} : vector<18x64xbf16>, vector<64x64xbf16>, vector<18x64xf32> -> vector<18x64xf32>
    %79 = vector.extract_strided_slice %78 {offsets = [1, 0], sizes = [16, 64], strides = [1, 1]} : vector<18x64xf32> to vector<16x64xf32>
    %80 = arith.addf %75, %79 : vector<16x64xf32>
    %c1_57 = arith.constant 1 : index
    %c2_58 = arith.constant 2 : index
    %c0_59 = arith.constant 0 : index
    %c0_60 = arith.constant 0 : index
    %81 = vector.load %arg8[%c1_57, %c2_58, %c0_59, %c0_60] : memref<2x3x64x64xbf16, #tpu.memory_space<vmem>>, vector<1x1x64x64xbf16>
    %82 = vector.shape_cast %81 : vector<1x1x64x64xbf16> to vector<64x64xbf16>
    %cst_61 = arith.constant dense<0.000000e+00> : vector<18x64xf32>
    %83 = tpu.matmul %67, %82, %cst_61 {dimension_numbers = #tpu.dot_dimension_numbers<[1], [0], [0], [1], [0, 0, 1, 1], [], []>} : vector<18x64xbf16>, vector<64x64xbf16>, vector<18x64xf32> -> vector<18x64xf32>
    %84 = vector.extract_strided_slice %83 {offsets = [2, 0], sizes = [16, 64], strides = [1, 1]} : vector<18x64xf32> to vector<16x64xf32>
    %85 = arith.addf %80, %84 : vector<16x64xf32>
    %c0_62 = arith.constant 0 : index
    %c0_63 = arith.constant 0 : index
    %86 = vector.load %arg9[%c0_62, %c0_63] : memref<1x64xf32, #tpu.memory_space<vmem>>, vector<1x64xf32>
    %87 = vector.broadcast %86 : vector<1x64xf32> to vector<16x64xf32>
    %88 = arith.addf %85, %87 : vector<16x64xf32>
    %c0_64 = arith.constant 0 : index
    %c0_65 = arith.constant 0 : index
    %c0_66 = arith.constant 0 : index
    %89 = vector.load %arg10[%c0_64, %c0_65, %c0_66] : memref<1x16x64xf32, #tpu.memory_space<vmem>>, vector<1x16x64xf32>
    %90 = vector.shape_cast %89 : vector<1x16x64xf32> to vector<16x64xf32>
    %91 = vector.shape_cast %88 : vector<16x64xf32> to vector<1x16x64xf32>
    tpu.vector_store %arg10[%c0_64, %c0_65, %c0_66], %91 {strides = array<i32>} : memref<1x16x64xf32, #tpu.memory_space<vmem>>, vector<1x16x64xf32>,
    %cst_67 = arith.constant dense<0.000000e+00> : vector<64xf32>
    %92 = vector.multi_reduction <add>, %88, %cst_67 [0] : vector<16x64xf32> to vector<64xf32>
    %93 = vector.shape_cast %92 : vector<64xf32> to vector<1x64xf32>
    %cst_68 = arith.constant 6.250000e-02 : f32
    %94 = vector.broadcast %cst_68 : f32 to vector<1x64xf32>
    %95 = arith.mulf %93, %94 : vector<1x64xf32>
    %96 = vector.broadcast %95 : vector<1x64xf32> to vector<16x64xf32>
    %97 = arith.subf %88, %96 : vector<16x64xf32>
    %c0_69 = arith.constant 0 : index
    %c0_70 = arith.constant 0 : index
    %c0_71 = arith.constant 0 : index
    %98 = vector.load %arg11[%c0_69, %c0_70, %c0_71] : memref<1x1x64xf32, #tpu.memory_space<vmem>>, vector<1x1x64xf32>
    %99 = vector.shape_cast %98 : vector<1x1x64xf32> to vector<1x64xf32>
    %100 = vector.shape_cast %93 : vector<1x64xf32> to vector<1x1x64xf32>
    tpu.vector_store %arg11[%c0_69, %c0_70, %c0_71], %100 {strides = array<i32>} : memref<1x1x64xf32, #tpu.memory_space<vmem>>, vector<1x1x64xf32>,
    %101 = arith.mulf %97, %97 : vector<16x64xf32>
    %cst_72 = arith.constant dense<0.000000e+00> : vector<64xf32>
    %102 = vector.multi_reduction <add>, %101, %cst_72 [0] : vector<16x64xf32> to vector<64xf32>
    %103 = vector.shape_cast %102 : vector<64xf32> to vector<1x64xf32>
    %c0_73 = arith.constant 0 : index
    %c0_74 = arith.constant 0 : index
    %c0_75 = arith.constant 0 : index
    %104 = vector.load %arg12[%c0_73, %c0_74, %c0_75] : memref<1x1x64xf32, #tpu.memory_space<vmem>>, vector<1x1x64xf32>
    %105 = vector.shape_cast %104 : vector<1x1x64xf32> to vector<1x64xf32>
    %106 = vector.shape_cast %103 : vector<1x64xf32> to vector<1x1x64xf32>
    tpu.vector_store %arg12[%c0_73, %c0_74, %c0_75], %106 {strides = array<i32>} : memref<1x1x64xf32, #tpu.memory_space<vmem>>, vector<1x1x64xf32>,
    return
  }
  func.func @transform_0(%arg0: i32) -> (i32, i32, i32) {
    %c0_i32 = arith.constant 0 : i32
    %c0_i32_0 = arith.constant 0 : i32
    %c0_i32_1 = arith.constant 0 : i32
    return %arg0, %c0_i32, %c0_i32_0 : i32, i32, i32
  }
  func.func @transform_1(%arg0: i32) -> (i32, i32, i32) {
    %c0_i32 = arith.constant 0 : i32
    %c0_i32_0 = arith.constant 0 : i32
    %c0_i32_1 = arith.constant 0 : i32
    return %arg0, %c0_i32, %c0_i32_0 : i32, i32, i32
  }
  func.func @transform_2(%arg0: i32) -> (i32, i32, i32) {
    %c0_i32 = arith.constant 0 : i32
    %c0_i32_0 = arith.constant 0 : i32
    %c0_i32_1 = arith.constant 0 : i32
    %c0_i32_2 = arith.constant 0 : i32
    return %c0_i32, %c0_i32_0, %c0_i32_1 : i32, i32, i32
  }
  func.func @transform_3(%arg0: i32) -> (i32, i32, i32) {
    %c0_i32 = arith.constant 0 : i32
    %c0_i32_0 = arith.constant 0 : i32
    %c0_i32_1 = arith.constant 0 : i32
    %c0_i32_2 = arith.constant 0 : i32
    return %c0_i32, %c0_i32_0, %c0_i32_1 : i32, i32, i32
  }
  func.func @transform_4(%arg0: i32) -> (i32, i32) {
    %c0_i32 = arith.constant 0 : i32
    %c0_i32_0 = arith.constant 0 : i32
    %c0_i32_1 = arith.constant 0 : i32
    return %c0_i32, %c0_i32_0 : i32, i32
  }
  func.func @transform_5(%arg0: i32) -> (i32, i32) {
    %c0_i32 = arith.constant 0 : i32
    %c0_i32_0 = arith.constant 0 : i32
    %c0_i32_1 = arith.constant 0 : i32
    return %c0_i32, %c0_i32_0 : i32, i32
  }
  func.func @transform_6(%arg0: i32) -> (i32, i32) {
    %c0_i32 = arith.constant 0 : i32
    %c0_i32_0 = arith.constant 0 : i32
    %c0_i32_1 = arith.constant 0 : i32
    return %c0_i32, %c0_i32_0 : i32, i32
  }
  func.func @transform_7(%arg0: i32) -> (i32, i32, i32, i32) {
    %c0_i32 = arith.constant 0 : i32
    %c0_i32_0 = arith.constant 0 : i32
    %c0_i32_1 = arith.constant 0 : i32
    %c0_i32_2 = arith.constant 0 : i32
    %c0_i32_3 = arith.constant 0 : i32
    return %c0_i32, %c0_i32_0, %c0_i32_1, %c0_i32_2 : i32, i32, i32, i32
  }
  func.func @transform_8(%arg0: i32) -> (i32, i32) {
    %c0_i32 = arith.constant 0 : i32
    %c0_i32_0 = arith.constant 0 : i32
    %c0_i32_1 = arith.constant 0 : i32
    return %c0_i32, %c0_i32_0 : i32, i32
  }
  func.func @transform_9(%arg0: i32) -> (i32, i32, i32) {
    %c0_i32 = arith.constant 0 : i32
    %c0_i32_0 = arith.constant 0 : i32
    %c0_i32_1 = arith.constant 0 : i32
    return %arg0, %c0_i32, %c0_i32_0 : i32, i32, i32
  }
  func.func @transform_10(%arg0: i32) -> (i32, i32, i32) {
    %c0_i32 = arith.constant 0 : i32
    %c0_i32_0 = arith.constant 0 : i32
    %c0_i32_1 = arith.constant 0 : i32
    return %arg0, %c0_i32, %c0_i32_0 : i32, i32, i32
  }
  func.func @transform_11(%arg0: i32) -> (i32, i32, i32) {
    %c0_i32 = arith.constant 0 : i32
    %c0_i32_0 = arith.constant 0 : i32
    %c0_i32_1 = arith.constant 0 : i32
    return %arg0, %c0_i32, %c0_i32_0 : i32, i32, i32
  }
  func.func @transform_12(%arg0: i32) -> (i32, i32, i32) {
    %c0_i32 = arith.constant 0 : i32
    %c0_i32_0 = arith.constant 0 : i32
    %c0_i32_1 = arith.constant 0 : i32
    return %arg0, %c0_i32, %c0_i32_0 : i32, i32, i32
  }
}

module attributes {stable_mosaic.version = 11 : i64} {
  func.func @dense_layer_kernel(%arg0: i32, %arg1: memref<1x18x64xbf16, #tpu.memory_space<vmem>>, %arg2: memref<1x3x64x64xbf16, #tpu.memory_space<vmem>>, %arg3: memref<1x64xf32, #tpu.memory_space<vmem>>, %arg4: memref<1x16x64xf32, #tpu.memory_space<vmem>>, %arg5: memref<1x1x64xf32, #tpu.memory_space<vmem>>, %arg6: memref<1x1x64xf32, #tpu.memory_space<vmem>>) attributes {dimension_semantics = [#tpu.dimension_semantics<parallel>], iteration_bounds = array<i64: 2>, scalar_prefetch = 0 : i64, scratch_operands = 0 : i64, tpu.core_type = #tpu.core_type<tc>, window_params = [{transform_indices = @transform_0, window_bounds = array<i64: 1, 18, 64>}, {pipeline_mode = #tpu.pipeline_mode<synchronous>, transform_indices = @transform_1, window_bounds = array<i64: 1, 3, 64, 64>}, {pipeline_mode = #tpu.pipeline_mode<synchronous>, transform_indices = @transform_2, window_bounds = array<i64: 1, 64>}, {transform_indices = @transform_3, window_bounds = array<i64: 1, 16, 64>}, {transform_indices = @transform_4, window_bounds = array<i64: 1, 1, 64>}, {transform_indices = @transform_5, window_bounds = array<i64: 1, 1, 64>}]} {
    %cst = arith.constant 0.000000e+00 : f32
    %0 = vector.broadcast %cst : f32 to vector<16x64xf32>
    %c0 = arith.constant 0 : index
    %c0_0 = arith.constant 0 : index
    %c0_1 = arith.constant 0 : index
    %1 = vector.load %arg1[%c0, %c0_0, %c0_1] : memref<1x18x64xbf16, #tpu.memory_space<vmem>>, vector<1x18x64xbf16>
    %2 = vector.shape_cast %1 : vector<1x18x64xbf16> to vector<18x64xbf16>
    %c0_2 = arith.constant 0 : index
    %c0_3 = arith.constant 0 : index
    %c0_4 = arith.constant 0 : index
    %c0_5 = arith.constant 0 : index
    %3 = vector.load %arg2[%c0_2, %c0_3, %c0_4, %c0_5] : memref<1x3x64x64xbf16, #tpu.memory_space<vmem>>, vector<1x1x64x64xbf16>
    %4 = vector.shape_cast %3 : vector<1x1x64x64xbf16> to vector<64x64xbf16>
    %cst_6 = arith.constant dense<0.000000e+00> : vector<18x64xf32>
    %5 = tpu.matmul %2, %4, %cst_6 {dimension_numbers = #tpu.dot_dimension_numbers<[1], [0], [0], [1], [0, 0, 1, 1], [], []>} : vector<18x64xbf16>, vector<64x64xbf16>, vector<18x64xf32> -> vector<18x64xf32>
    %6 = vector.extract_strided_slice %5 {offsets = [0, 0], sizes = [16, 64], strides = [1, 1]} : vector<18x64xf32> to vector<16x64xf32>
    %7 = arith.addf %0, %6 : vector<16x64xf32>
    %c0_7 = arith.constant 0 : index
    %c1 = arith.constant 1 : index
    %c0_8 = arith.constant 0 : index
    %c0_9 = arith.constant 0 : index
    %8 = vector.load %arg2[%c0_7, %c1, %c0_8, %c0_9] : memref<1x3x64x64xbf16, #tpu.memory_space<vmem>>, vector<1x1x64x64xbf16>
    %9 = vector.shape_cast %8 : vector<1x1x64x64xbf16> to vector<64x64xbf16>
    %cst_10 = arith.constant dense<0.000000e+00> : vector<18x64xf32>
    %10 = tpu.matmul %2, %9, %cst_10 {dimension_numbers = #tpu.dot_dimension_numbers<[1], [0], [0], [1], [0, 0, 1, 1], [], []>} : vector<18x64xbf16>, vector<64x64xbf16>, vector<18x64xf32> -> vector<18x64xf32>
    %11 = vector.extract_strided_slice %10 {offsets = [1, 0], sizes = [16, 64], strides = [1, 1]} : vector<18x64xf32> to vector<16x64xf32>
    %12 = arith.addf %7, %11 : vector<16x64xf32>
    %c0_11 = arith.constant 0 : index
    %c2 = arith.constant 2 : index
    %c0_12 = arith.constant 0 : index
    %c0_13 = arith.constant 0 : index
    %13 = vector.load %arg2[%c0_11, %c2, %c0_12, %c0_13] : memref<1x3x64x64xbf16, #tpu.memory_space<vmem>>, vector<1x1x64x64xbf16>
    %14 = vector.shape_cast %13 : vector<1x1x64x64xbf16> to vector<64x64xbf16>
    %cst_14 = arith.constant dense<0.000000e+00> : vector<18x64xf32>
    %15 = tpu.matmul %2, %14, %cst_14 {dimension_numbers = #tpu.dot_dimension_numbers<[1], [0], [0], [1], [0, 0, 1, 1], [], []>} : vector<18x64xbf16>, vector<64x64xbf16>, vector<18x64xf32> -> vector<18x64xf32>
    %16 = vector.extract_strided_slice %15 {offsets = [2, 0], sizes = [16, 64], strides = [1, 1]} : vector<18x64xf32> to vector<16x64xf32>
    %17 = arith.addf %12, %16 : vector<16x64xf32>
    %c0_15 = arith.constant 0 : index
    %c0_16 = arith.constant 0 : index
    %18 = vector.load %arg3[%c0_15, %c0_16] : memref<1x64xf32, #tpu.memory_space<vmem>>, vector<1x64xf32>
    %19 = vector.broadcast %18 : vector<1x64xf32> to vector<16x64xf32>
    %20 = arith.addf %17, %19 : vector<16x64xf32>
    %c0_17 = arith.constant 0 : index
    %c0_18 = arith.constant 0 : index
    %c0_19 = arith.constant 0 : index
    %21 = vector.load %arg4[%c0_17, %c0_18, %c0_19] : memref<1x16x64xf32, #tpu.memory_space<vmem>>, vector<1x16x64xf32>
    %22 = vector.shape_cast %21 : vector<1x16x64xf32> to vector<16x64xf32>
    %23 = vector.shape_cast %20 : vector<16x64xf32> to vector<1x16x64xf32>
    tpu.vector_store %arg4[%c0_17, %c0_18, %c0_19], %23 {strides = array<i32>} : memref<1x16x64xf32, #tpu.memory_space<vmem>>, vector<1x16x64xf32>,
    %cst_20 = arith.constant dense<0.000000e+00> : vector<64xf32>
    %24 = vector.multi_reduction <add>, %20, %cst_20 [0] : vector<16x64xf32> to vector<64xf32>
    %25 = vector.shape_cast %24 : vector<64xf32> to vector<1x64xf32>
    %cst_21 = arith.constant 6.250000e-02 : f32
    %26 = vector.broadcast %cst_21 : f32 to vector<1x64xf32>
    %27 = arith.mulf %25, %26 : vector<1x64xf32>
    %28 = vector.broadcast %27 : vector<1x64xf32> to vector<16x64xf32>
    %29 = arith.subf %20, %28 : vector<16x64xf32>
    %c0_22 = arith.constant 0 : index
    %c0_23 = arith.constant 0 : index
    %c0_24 = arith.constant 0 : index
    %30 = vector.load %arg5[%c0_22, %c0_23, %c0_24] : memref<1x1x64xf32, #tpu.memory_space<vmem>>, vector<1x1x64xf32>
    %31 = vector.shape_cast %30 : vector<1x1x64xf32> to vector<1x64xf32>
    %32 = vector.shape_cast %25 : vector<1x64xf32> to vector<1x1x64xf32>
    tpu.vector_store %arg5[%c0_22, %c0_23, %c0_24], %32 {strides = array<i32>} : memref<1x1x64xf32, #tpu.memory_space<vmem>>, vector<1x1x64xf32>,
    %33 = arith.mulf %29, %29 : vector<16x64xf32>
    %cst_25 = arith.constant dense<0.000000e+00> : vector<64xf32>
    %34 = vector.multi_reduction <add>, %33, %cst_25 [0] : vector<16x64xf32> to vector<64xf32>
    %35 = vector.shape_cast %34 : vector<64xf32> to vector<1x64xf32>
    %c0_26 = arith.constant 0 : index
    %c0_27 = arith.constant 0 : index
    %c0_28 = arith.constant 0 : index
    %36 = vector.load %arg6[%c0_26, %c0_27, %c0_28] : memref<1x1x64xf32, #tpu.memory_space<vmem>>, vector<1x1x64xf32>
    %37 = vector.shape_cast %36 : vector<1x1x64xf32> to vector<1x64xf32>
    %38 = vector.shape_cast %35 : vector<1x64xf32> to vector<1x1x64xf32>
    tpu.vector_store %arg6[%c0_26, %c0_27, %c0_28], %38 {strides = array<i32>} : memref<1x1x64xf32, #tpu.memory_space<vmem>>, vector<1x1x64xf32>,
    return
  }
  func.func @transform_0(%arg0: i32) -> (i32, i32, i32) {
    %c0_i32 = arith.constant 0 : i32
    %c0_i32_0 = arith.constant 0 : i32
    %c0_i32_1 = arith.constant 0 : i32
    return %arg0, %c0_i32, %c0_i32_0 : i32, i32, i32
  }
  func.func @transform_1(%arg0: i32) -> (i32, i32, i32, i32) {
    %c0_i32 = arith.constant 0 : i32
    %c0_i32_0 = arith.constant 0 : i32
    %c0_i32_1 = arith.constant 0 : i32
    %c0_i32_2 = arith.constant 0 : i32
    %c0_i32_3 = arith.constant 0 : i32
    return %c0_i32, %c0_i32_0, %c0_i32_1, %c0_i32_2 : i32, i32, i32, i32
  }
  func.func @transform_2(%arg0: i32) -> (i32, i32) {
    %c0_i32 = arith.constant 0 : i32
    %c0_i32_0 = arith.constant 0 : i32
    %c0_i32_1 = arith.constant 0 : i32
    return %c0_i32, %c0_i32_0 : i32, i32
  }
  func.func @transform_3(%arg0: i32) -> (i32, i32, i32) {
    %c0_i32 = arith.constant 0 : i32
    %c0_i32_0 = arith.constant 0 : i32
    %c0_i32_1 = arith.constant 0 : i32
    return %arg0, %c0_i32, %c0_i32_0 : i32, i32, i32
  }
  func.func @transform_4(%arg0: i32) -> (i32, i32, i32) {
    %c0_i32 = arith.constant 0 : i32
    %c0_i32_0 = arith.constant 0 : i32
    %c0_i32_1 = arith.constant 0 : i32
    return %arg0, %c0_i32, %c0_i32_0 : i32, i32, i32
  }
  func.func @transform_5(%arg0: i32) -> (i32, i32, i32) {
    %c0_i32 = arith.constant 0 : i32
    %c0_i32_0 = arith.constant 0 : i32
    %c0_i32_1 = arith.constant 0 : i32
    return %arg0, %c0_i32, %c0_i32_0 : i32, i32, i32
  }
}

module attributes {stable_mosaic.version = 11 : i64} {
  func.func @dense_layer_kernel(%arg0: i32, %arg1: memref<1x18x64xbf16, #tpu.memory_space<vmem>>, %arg2: memref<1x18x64xbf16, #tpu.memory_space<vmem>>, %arg3: memref<1x16x64xf32, #tpu.memory_space<vmem>>, %arg4: memref<2x1x64xf32, #tpu.memory_space<vmem>>, %arg5: memref<2x1x64xf32, #tpu.memory_space<vmem>>, %arg6: memref<1x64xf32, #tpu.memory_space<vmem>>, %arg7: memref<1x64xf32, #tpu.memory_space<vmem>>, %arg8: memref<64x64xf32, #tpu.memory_space<vmem>>, %arg9: memref<3x3x64x64xbf16, #tpu.memory_space<vmem>>, %arg10: memref<1x64xf32, #tpu.memory_space<vmem>>, %arg11: memref<1x16x64xf32, #tpu.memory_space<vmem>>, %arg12: memref<1x1x64xf32, #tpu.memory_space<vmem>>, %arg13: memref<1x1x64xf32, #tpu.memory_space<vmem>>, %arg14: memref<1x18x64xbf16, #tpu.memory_space<vmem>>) attributes {dimension_semantics = [#tpu.dimension_semantics<parallel>], iteration_bounds = array<i64: 2>, scalar_prefetch = 0 : i64, scratch_operands = 0 : i64, tpu.core_type = #tpu.core_type<tc>, window_params = [{transform_indices = @transform_0, window_bounds = array<i64: 1, 18, 64>}, {transform_indices = @transform_1, window_bounds = array<i64: 1, 18, 64>}, {transform_indices = @transform_2, window_bounds = array<i64: 1, 16, 64>}, {pipeline_mode = #tpu.pipeline_mode<synchronous>, transform_indices = @transform_3, window_bounds = array<i64: 2, 1, 64>}, {pipeline_mode = #tpu.pipeline_mode<synchronous>, transform_indices = @transform_4, window_bounds = array<i64: 2, 1, 64>}, {pipeline_mode = #tpu.pipeline_mode<synchronous>, transform_indices = @transform_5, window_bounds = array<i64: 1, 64>}, {pipeline_mode = #tpu.pipeline_mode<synchronous>, transform_indices = @transform_6, window_bounds = array<i64: 1, 64>}, {pipeline_mode = #tpu.pipeline_mode<synchronous>, transform_indices = @transform_7, window_bounds = array<i64: 64, 64>}, {pipeline_mode = #tpu.pipeline_mode<synchronous>, transform_indices = @transform_8, window_bounds = array<i64: 3, 3, 64, 64>}, {pipeline_mode = #tpu.pipeline_mode<synchronous>, transform_indices = @transform_9, window_bounds = array<i64: 1, 64>}, {transform_indices = @transform_10, window_bounds = array<i64: 1, 16, 64>}, {transform_indices = @transform_11, window_bounds = array<i64: 1, 1, 64>}, {transform_indices = @transform_12, window_bounds = array<i64: 1, 1, 64>}, {transform_indices = @transform_13, window_bounds = array<i64: 1, 18, 64>}]} {
    %cst = arith.constant 0.000000e+00 : f32
    %0 = vector.broadcast %cst : f32 to vector<16x64xf32>
    %c0 = arith.constant 0 : index
    %c0_0 = arith.constant 0 : index
    %c0_1 = arith.constant 0 : index
    %1 = vector.load %arg1[%c0, %c0_0, %c0_1] : memref<1x18x64xbf16, #tpu.memory_space<vmem>>, vector<1x18x64xbf16>
    %2 = vector.shape_cast %1 : vector<1x18x64xbf16> to vector<18x64xbf16>
    %c0_2 = arith.constant 0 : index
    %c0_3 = arith.constant 0 : index
    %c0_4 = arith.constant 0 : index
    %c0_5 = arith.constant 0 : index
    %3 = vector.load %arg9[%c0_2, %c0_3, %c0_4, %c0_5] : memref<3x3x64x64xbf16, #tpu.memory_space<vmem>>, vector<1x1x64x64xbf16>
    %4 = vector.shape_cast %3 : vector<1x1x64x64xbf16> to vector<64x64xbf16>
    %cst_6 = arith.constant dense<0.000000e+00> : vector<18x64xf32>
    %5 = tpu.matmul %2, %4, %cst_6 {dimension_numbers = #tpu.dot_dimension_numbers<[1], [0], [0], [1], [0, 0, 1, 1], [], []>} : vector<18x64xbf16>, vector<64x64xbf16>, vector<18x64xf32> -> vector<18x64xf32>
    %6 = vector.extract_strided_slice %5 {offsets = [0, 0], sizes = [16, 64], strides = [1, 1]} : vector<18x64xf32> to vector<16x64xf32>
    %7 = arith.addf %0, %6 : vector<16x64xf32>
    %c0_7 = arith.constant 0 : index
    %c1 = arith.constant 1 : index
    %c0_8 = arith.constant 0 : index
    %c0_9 = arith.constant 0 : index
    %8 = vector.load %arg9[%c0_7, %c1, %c0_8, %c0_9] : memref<3x3x64x64xbf16, #tpu.memory_space<vmem>>, vector<1x1x64x64xbf16>
    %9 = vector.shape_cast %8 : vector<1x1x64x64xbf16> to vector<64x64xbf16>
    %cst_10 = arith.constant dense<0.000000e+00> : vector<18x64xf32>
    %10 = tpu.matmul %2, %9, %cst_10 {dimension_numbers = #tpu.dot_dimension_numbers<[1], [0], [0], [1], [0, 0, 1, 1], [], []>} : vector<18x64xbf16>, vector<64x64xbf16>, vector<18x64xf32> -> vector<18x64xf32>
    %11 = vector.extract_strided_slice %10 {offsets = [1, 0], sizes = [16, 64], strides = [1, 1]} : vector<18x64xf32> to vector<16x64xf32>
    %12 = arith.addf %7, %11 : vector<16x64xf32>
    %c0_11 = arith.constant 0 : index
    %c2 = arith.constant 2 : index
    %c0_12 = arith.constant 0 : index
    %c0_13 = arith.constant 0 : index
    %13 = vector.load %arg9[%c0_11, %c2, %c0_12, %c0_13] : memref<3x3x64x64xbf16, #tpu.memory_space<vmem>>, vector<1x1x64x64xbf16>
    %14 = vector.shape_cast %13 : vector<1x1x64x64xbf16> to vector<64x64xbf16>
    %cst_14 = arith.constant dense<0.000000e+00> : vector<18x64xf32>
    %15 = tpu.matmul %2, %14, %cst_14 {dimension_numbers = #tpu.dot_dimension_numbers<[1], [0], [0], [1], [0, 0, 1, 1], [], []>} : vector<18x64xbf16>, vector<64x64xbf16>, vector<18x64xf32> -> vector<18x64xf32>
    %16 = vector.extract_strided_slice %15 {offsets = [2, 0], sizes = [16, 64], strides = [1, 1]} : vector<18x64xf32> to vector<16x64xf32>
    %17 = arith.addf %12, %16 : vector<16x64xf32>
    %c0_15 = arith.constant 0 : index
    %c0_16 = arith.constant 0 : index
    %c0_17 = arith.constant 0 : index
    %18 = vector.load %arg2[%c0_15, %c0_16, %c0_17] : memref<1x18x64xbf16, #tpu.memory_space<vmem>>, vector<1x18x64xbf16>
    %19 = vector.shape_cast %18 : vector<1x18x64xbf16> to vector<18x64xbf16>
    %c1_18 = arith.constant 1 : index
    %c0_19 = arith.constant 0 : index
    %c0_20 = arith.constant 0 : index
    %c0_21 = arith.constant 0 : index
    %20 = vector.load %arg9[%c1_18, %c0_19, %c0_20, %c0_21] : memref<3x3x64x64xbf16, #tpu.memory_space<vmem>>, vector<1x1x64x64xbf16>
    %21 = vector.shape_cast %20 : vector<1x1x64x64xbf16> to vector<64x64xbf16>
    %cst_22 = arith.constant dense<0.000000e+00> : vector<18x64xf32>
    %22 = tpu.matmul %19, %21, %cst_22 {dimension_numbers = #tpu.dot_dimension_numbers<[1], [0], [0], [1], [0, 0, 1, 1], [], []>} : vector<18x64xbf16>, vector<64x64xbf16>, vector<18x64xf32> -> vector<18x64xf32>
    %23 = vector.extract_strided_slice %22 {offsets = [0, 0], sizes = [16, 64], strides = [1, 1]} : vector<18x64xf32> to vector<16x64xf32>
    %24 = arith.addf %17, %23 : vector<16x64xf32>
    %c1_23 = arith.constant 1 : index
    %c1_24 = arith.constant 1 : index
    %c0_25 = arith.constant 0 : index
    %c0_26 = arith.constant 0 : index
    %25 = vector.load %arg9[%c1_23, %c1_24, %c0_25, %c0_26] : memref<3x3x64x64xbf16, #tpu.memory_space<vmem>>, vector<1x1x64x64xbf16>
    %26 = vector.shape_cast %25 : vector<1x1x64x64xbf16> to vector<64x64xbf16>
    %cst_27 = arith.constant dense<0.000000e+00> : vector<18x64xf32>
    %27 = tpu.matmul %19, %26, %cst_27 {dimension_numbers = #tpu.dot_dimension_numbers<[1], [0], [0], [1], [0, 0, 1, 1], [], []>} : vector<18x64xbf16>, vector<64x64xbf16>, vector<18x64xf32> -> vector<18x64xf32>
    %28 = vector.extract_strided_slice %27 {offsets = [1, 0], sizes = [16, 64], strides = [1, 1]} : vector<18x64xf32> to vector<16x64xf32>
    %29 = arith.addf %24, %28 : vector<16x64xf32>
    %c1_28 = arith.constant 1 : index
    %c2_29 = arith.constant 2 : index
    %c0_30 = arith.constant 0 : index
    %c0_31 = arith.constant 0 : index
    %30 = vector.load %arg9[%c1_28, %c2_29, %c0_30, %c0_31] : memref<3x3x64x64xbf16, #tpu.memory_space<vmem>>, vector<1x1x64x64xbf16>
    %31 = vector.shape_cast %30 : vector<1x1x64x64xbf16> to vector<64x64xbf16>
    %cst_32 = arith.constant dense<0.000000e+00> : vector<18x64xf32>
    %32 = tpu.matmul %19, %31, %cst_32 {dimension_numbers = #tpu.dot_dimension_numbers<[1], [0], [0], [1], [0, 0, 1, 1], [], []>} : vector<18x64xbf16>, vector<64x64xbf16>, vector<18x64xf32> -> vector<18x64xf32>
    %33 = vector.extract_strided_slice %32 {offsets = [2, 0], sizes = [16, 64], strides = [1, 1]} : vector<18x64xf32> to vector<16x64xf32>
    %34 = arith.addf %29, %33 : vector<16x64xf32>
    %c0_33 = arith.constant 0 : index
    %c0_34 = arith.constant 0 : index
    %c0_35 = arith.constant 0 : index
    %35 = vector.load %arg4[%c0_33, %c0_34, %c0_35] : memref<2x1x64xf32, #tpu.memory_space<vmem>>, vector<2x1x64xf32>
    %c0_36 = arith.constant 0 : index
    %c0_37 = arith.constant 0 : index
    %c0_38 = arith.constant 0 : index
    %36 = vector.load %arg5[%c0_36, %c0_37, %c0_38] : memref<2x1x64xf32, #tpu.memory_space<vmem>>, vector<2x1x64xf32>
    %c0_39 = arith.constant 0 : index
    %c0_40 = arith.constant 0 : index
    %37 = vector.load %arg6[%c0_39, %c0_40] : memref<1x64xf32, #tpu.memory_space<vmem>>, vector<1x64xf32>
    %c0_41 = arith.constant 0 : index
    %c0_42 = arith.constant 0 : index
    %38 = vector.load %arg7[%c0_41, %c0_42] : memref<1x64xf32, #tpu.memory_space<vmem>>, vector<1x64xf32>
    %c0_43 = arith.constant 0 : index
    %c0_44 = arith.constant 0 : index
    %39 = vector.load %arg8[%c0_43, %c0_44] : memref<64x64xf32, #tpu.memory_space<vmem>>, vector<64x64xf32>
    %40 = vector.shape_cast %35 : vector<2x1x64xf32> to vector<2x64xf32>
    %cst_45 = arith.constant dense<0.000000e+00> : vector<64xf32>
    %41 = vector.multi_reduction <add>, %40, %cst_45 [0] : vector<2x64xf32> to vector<64xf32>
    %42 = vector.shape_cast %41 : vector<64xf32> to vector<1x64xf32>
    %43 = vector.shape_cast %35 : vector<2x1x64xf32> to vector<2x64xf32>
    %44 = vector.shape_cast %35 : vector<2x1x64xf32> to vector<2x64xf32>
    %45 = arith.mulf %43, %44 : vector<2x64xf32>
    %cst_46 = arith.constant dense<0.000000e+00> : vector<64xf32>
    %46 = vector.multi_reduction <add>, %45, %cst_46 [0] : vector<2x64xf32> to vector<64xf32>
    %47 = vector.shape_cast %46 : vector<64xf32> to vector<1x64xf32>
    %48 = vector.shape_cast %36 : vector<2x1x64xf32> to vector<2x64xf32>
    %cst_47 = arith.constant dense<0.000000e+00> : vector<64xf32>
    %49 = vector.multi_reduction <add>, %48, %cst_47 [0] : vector<2x64xf32> to vector<64xf32>
    %50 = vector.shape_cast %49 : vector<64xf32> to vector<1x64xf32>
    %cst_48 = arith.constant dense<0.000000e+00> : vector<1x64xf32>
    %51 = tpu.matmul %42, %39, %cst_48 {dimension_numbers = #tpu.dot_dimension_numbers<[1], [0], [0], [1], [0, 0, 1, 1], [], []>} : vector<1x64xf32>, vector<64x64xf32>, vector<1x64xf32> -> vector<1x64xf32>
    %cst_49 = arith.constant dense<0.000000e+00> : vector<1x64xf32>
    %52 = tpu.matmul %47, %39, %cst_49 {dimension_numbers = #tpu.dot_dimension_numbers<[1], [0], [0], [1], [0, 0, 1, 1], [], []>} : vector<1x64xf32>, vector<64x64xf32>, vector<1x64xf32> -> vector<1x64xf32>
    %cst_50 = arith.constant dense<0.000000e+00> : vector<1x64xf32>
    %53 = tpu.matmul %50, %39, %cst_50 {dimension_numbers = #tpu.dot_dimension_numbers<[1], [0], [0], [1], [0, 0, 1, 1], [], []>} : vector<1x64xf32>, vector<64x64xf32>, vector<1x64xf32> -> vector<1x64xf32>
    %cst_51 = arith.constant 0.001953125 : f32
    %54 = vector.broadcast %cst_51 : f32 to vector<1x64xf32>
    %55 = arith.mulf %51, %54 : vector<1x64xf32>
    %cst_52 = arith.constant 6.250000e-02 : f32
    %56 = vector.broadcast %cst_52 : f32 to vector<1x64xf32>
    %57 = arith.mulf %52, %56 : vector<1x64xf32>
    %58 = arith.addf %53, %57 : vector<1x64xf32>
    %59 = arith.mulf %51, %55 : vector<1x64xf32>
    %60 = arith.subf %58, %59 : vector<1x64xf32>
    %cst_53 = arith.constant 0.001953125 : f32
    %61 = vector.broadcast %cst_53 : f32 to vector<1x64xf32>
    %62 = arith.mulf %60, %61 : vector<1x64xf32>
    %cst_54 = arith.constant 0.000000e+00 : f32
    %63 = vector.broadcast %cst_54 : f32 to vector<1x64xf32>
    %64 = arith.maximumf %62, %63 : vector<1x64xf32>
    %cst_55 = arith.constant 9.99999974E-6 : f32
    %65 = vector.broadcast %cst_55 : f32 to vector<1x64xf32>
    %66 = arith.addf %64, %65 : vector<1x64xf32>
    %67 = math.rsqrt %66 : vector<1x64xf32>
    %68 = arith.mulf %37, %67 : vector<1x64xf32>
    %69 = arith.mulf %55, %68 : vector<1x64xf32>
    %70 = arith.subf %38, %69 : vector<1x64xf32>
    %c0_56 = arith.constant 0 : index
    %c0_57 = arith.constant 0 : index
    %c0_58 = arith.constant 0 : index
    %71 = vector.load %arg3[%c0_56, %c0_57, %c0_58] : memref<1x16x64xf32, #tpu.memory_space<vmem>>, vector<1x16x64xf32>
    %72 = vector.shape_cast %71 : vector<1x16x64xf32> to vector<16x64xf32>
    %73 = vector.broadcast %68 : vector<1x64xf32> to vector<16x64xf32>
    %74 = arith.mulf %72, %73 : vector<16x64xf32>
    %75 = vector.broadcast %70 : vector<1x64xf32> to vector<16x64xf32>
    %76 = arith.addf %74, %75 : vector<16x64xf32>
    %cst_59 = arith.constant 0.000000e+00 : f32
    %77 = vector.broadcast %cst_59 : f32 to vector<16x64xf32>
    %78 = arith.cmpf ogt, %76, %77 : vector<16x64xf32>
    %cst_60 = arith.constant 2.000000e-01 : f32
    %79 = vector.broadcast %cst_60 : f32 to vector<16x64xf32>
    %80 = arith.mulf %79, %76 : vector<16x64xf32>
    %81 = arith.select %78, %76, %80 : vector<16x64xi1>, vector<16x64xf32>
    %cst_61 = arith.constant 0.000000e+00 : f32
    %82 = vector.broadcast %cst_61 : f32 to vector<1x64xf32>
    %83 = tpu.concatenate %82, %81, %82 in 0 : vector<1x64xf32>, vector<16x64xf32>, vector<1x64xf32> -> vector<18x64xf32>
    %84 = arith.truncf %83 : vector<18x64xf32> to vector<18x64xbf16>
    %c0_62 = arith.constant 0 : index
    %c0_63 = arith.constant 0 : index
    %c0_64 = arith.constant 0 : index
    %85 = vector.load %arg14[%c0_62, %c0_63, %c0_64] : memref<1x18x64xbf16, #tpu.memory_space<vmem>>, vector<1x18x64xbf16>
    %86 = vector.shape_cast %85 : vector<1x18x64xbf16> to vector<18x64xbf16>
    %87 = vector.shape_cast %84 : vector<18x64xbf16> to vector<1x18x64xbf16>
    tpu.vector_store %arg14[%c0_62, %c0_63, %c0_64], %87 {strides = array<i32>} : memref<1x18x64xbf16, #tpu.memory_space<vmem>>, vector<1x18x64xbf16>,
    %c2_65 = arith.constant 2 : index
    %c0_66 = arith.constant 0 : index
    %c0_67 = arith.constant 0 : index
    %c0_68 = arith.constant 0 : index
    %88 = vector.load %arg9[%c2_65, %c0_66, %c0_67, %c0_68] : memref<3x3x64x64xbf16, #tpu.memory_space<vmem>>, vector<1x1x64x64xbf16>
    %89 = vector.shape_cast %88 : vector<1x1x64x64xbf16> to vector<64x64xbf16>
    %cst_69 = arith.constant dense<0.000000e+00> : vector<18x64xf32>
    %90 = tpu.matmul %84, %89, %cst_69 {dimension_numbers = #tpu.dot_dimension_numbers<[1], [0], [0], [1], [0, 0, 1, 1], [], []>} : vector<18x64xbf16>, vector<64x64xbf16>, vector<18x64xf32> -> vector<18x64xf32>
    %91 = vector.extract_strided_slice %90 {offsets = [0, 0], sizes = [16, 64], strides = [1, 1]} : vector<18x64xf32> to vector<16x64xf32>
    %92 = arith.addf %34, %91 : vector<16x64xf32>
    %c2_70 = arith.constant 2 : index
    %c1_71 = arith.constant 1 : index
    %c0_72 = arith.constant 0 : index
    %c0_73 = arith.constant 0 : index
    %93 = vector.load %arg9[%c2_70, %c1_71, %c0_72, %c0_73] : memref<3x3x64x64xbf16, #tpu.memory_space<vmem>>, vector<1x1x64x64xbf16>
    %94 = vector.shape_cast %93 : vector<1x1x64x64xbf16> to vector<64x64xbf16>
    %cst_74 = arith.constant dense<0.000000e+00> : vector<18x64xf32>
    %95 = tpu.matmul %84, %94, %cst_74 {dimension_numbers = #tpu.dot_dimension_numbers<[1], [0], [0], [1], [0, 0, 1, 1], [], []>} : vector<18x64xbf16>, vector<64x64xbf16>, vector<18x64xf32> -> vector<18x64xf32>
    %96 = vector.extract_strided_slice %95 {offsets = [1, 0], sizes = [16, 64], strides = [1, 1]} : vector<18x64xf32> to vector<16x64xf32>
    %97 = arith.addf %92, %96 : vector<16x64xf32>
    %c2_75 = arith.constant 2 : index
    %c2_76 = arith.constant 2 : index
    %c0_77 = arith.constant 0 : index
    %c0_78 = arith.constant 0 : index
    %98 = vector.load %arg9[%c2_75, %c2_76, %c0_77, %c0_78] : memref<3x3x64x64xbf16, #tpu.memory_space<vmem>>, vector<1x1x64x64xbf16>
    %99 = vector.shape_cast %98 : vector<1x1x64x64xbf16> to vector<64x64xbf16>
    %cst_79 = arith.constant dense<0.000000e+00> : vector<18x64xf32>
    %100 = tpu.matmul %84, %99, %cst_79 {dimension_numbers = #tpu.dot_dimension_numbers<[1], [0], [0], [1], [0, 0, 1, 1], [], []>} : vector<18x64xbf16>, vector<64x64xbf16>, vector<18x64xf32> -> vector<18x64xf32>
    %101 = vector.extract_strided_slice %100 {offsets = [2, 0], sizes = [16, 64], strides = [1, 1]} : vector<18x64xf32> to vector<16x64xf32>
    %102 = arith.addf %97, %101 : vector<16x64xf32>
    %c0_80 = arith.constant 0 : index
    %c0_81 = arith.constant 0 : index
    %103 = vector.load %arg10[%c0_80, %c0_81] : memref<1x64xf32, #tpu.memory_space<vmem>>, vector<1x64xf32>
    %104 = vector.broadcast %103 : vector<1x64xf32> to vector<16x64xf32>
    %105 = arith.addf %102, %104 : vector<16x64xf32>
    %c0_82 = arith.constant 0 : index
    %c0_83 = arith.constant 0 : index
    %c0_84 = arith.constant 0 : index
    %106 = vector.load %arg11[%c0_82, %c0_83, %c0_84] : memref<1x16x64xf32, #tpu.memory_space<vmem>>, vector<1x16x64xf32>
    %107 = vector.shape_cast %106 : vector<1x16x64xf32> to vector<16x64xf32>
    %108 = vector.shape_cast %105 : vector<16x64xf32> to vector<1x16x64xf32>
    tpu.vector_store %arg11[%c0_82, %c0_83, %c0_84], %108 {strides = array<i32>} : memref<1x16x64xf32, #tpu.memory_space<vmem>>, vector<1x16x64xf32>,
    %cst_85 = arith.constant dense<0.000000e+00> : vector<64xf32>
    %109 = vector.multi_reduction <add>, %105, %cst_85 [0] : vector<16x64xf32> to vector<64xf32>
    %110 = vector.shape_cast %109 : vector<64xf32> to vector<1x64xf32>
    %cst_86 = arith.constant 6.250000e-02 : f32
    %111 = vector.broadcast %cst_86 : f32 to vector<1x64xf32>
    %112 = arith.mulf %110, %111 : vector<1x64xf32>
    %113 = vector.broadcast %112 : vector<1x64xf32> to vector<16x64xf32>
    %114 = arith.subf %105, %113 : vector<16x64xf32>
    %c0_87 = arith.constant 0 : index
    %c0_88 = arith.constant 0 : index
    %c0_89 = arith.constant 0 : index
    %115 = vector.load %arg12[%c0_87, %c0_88, %c0_89] : memref<1x1x64xf32, #tpu.memory_space<vmem>>, vector<1x1x64xf32>
    %116 = vector.shape_cast %115 : vector<1x1x64xf32> to vector<1x64xf32>
    %117 = vector.shape_cast %110 : vector<1x64xf32> to vector<1x1x64xf32>
    tpu.vector_store %arg12[%c0_87, %c0_88, %c0_89], %117 {strides = array<i32>} : memref<1x1x64xf32, #tpu.memory_space<vmem>>, vector<1x1x64xf32>,
    %118 = arith.mulf %114, %114 : vector<16x64xf32>
    %cst_90 = arith.constant dense<0.000000e+00> : vector<64xf32>
    %119 = vector.multi_reduction <add>, %118, %cst_90 [0] : vector<16x64xf32> to vector<64xf32>
    %120 = vector.shape_cast %119 : vector<64xf32> to vector<1x64xf32>
    %c0_91 = arith.constant 0 : index
    %c0_92 = arith.constant 0 : index
    %c0_93 = arith.constant 0 : index
    %121 = vector.load %arg13[%c0_91, %c0_92, %c0_93] : memref<1x1x64xf32, #tpu.memory_space<vmem>>, vector<1x1x64xf32>
    %122 = vector.shape_cast %121 : vector<1x1x64xf32> to vector<1x64xf32>
    %123 = vector.shape_cast %120 : vector<1x64xf32> to vector<1x1x64xf32>
    tpu.vector_store %arg13[%c0_91, %c0_92, %c0_93], %123 {strides = array<i32>} : memref<1x1x64xf32, #tpu.memory_space<vmem>>, vector<1x1x64xf32>,
    return
  }
  func.func @transform_0(%arg0: i32) -> (i32, i32, i32) {
    %c0_i32 = arith.constant 0 : i32
    %c0_i32_0 = arith.constant 0 : i32
    %c0_i32_1 = arith.constant 0 : i32
    return %arg0, %c0_i32, %c0_i32_0 : i32, i32, i32
  }
  func.func @transform_1(%arg0: i32) -> (i32, i32, i32) {
    %c0_i32 = arith.constant 0 : i32
    %c0_i32_0 = arith.constant 0 : i32
    %c0_i32_1 = arith.constant 0 : i32
    return %arg0, %c0_i32, %c0_i32_0 : i32, i32, i32
  }
  func.func @transform_2(%arg0: i32) -> (i32, i32, i32) {
    %c0_i32 = arith.constant 0 : i32
    %c0_i32_0 = arith.constant 0 : i32
    %c0_i32_1 = arith.constant 0 : i32
    return %arg0, %c0_i32, %c0_i32_0 : i32, i32, i32
  }
  func.func @transform_3(%arg0: i32) -> (i32, i32, i32) {
    %c0_i32 = arith.constant 0 : i32
    %c0_i32_0 = arith.constant 0 : i32
    %c0_i32_1 = arith.constant 0 : i32
    %c0_i32_2 = arith.constant 0 : i32
    return %c0_i32, %c0_i32_0, %c0_i32_1 : i32, i32, i32
  }
  func.func @transform_4(%arg0: i32) -> (i32, i32, i32) {
    %c0_i32 = arith.constant 0 : i32
    %c0_i32_0 = arith.constant 0 : i32
    %c0_i32_1 = arith.constant 0 : i32
    %c0_i32_2 = arith.constant 0 : i32
    return %c0_i32, %c0_i32_0, %c0_i32_1 : i32, i32, i32
  }
  func.func @transform_5(%arg0: i32) -> (i32, i32) {
    %c0_i32 = arith.constant 0 : i32
    %c0_i32_0 = arith.constant 0 : i32
    %c0_i32_1 = arith.constant 0 : i32
    return %c0_i32, %c0_i32_0 : i32, i32
  }
  func.func @transform_6(%arg0: i32) -> (i32, i32) {
    %c0_i32 = arith.constant 0 : i32
    %c0_i32_0 = arith.constant 0 : i32
    %c0_i32_1 = arith.constant 0 : i32
    return %c0_i32, %c0_i32_0 : i32, i32
  }
  func.func @transform_7(%arg0: i32) -> (i32, i32) {
    %c0_i32 = arith.constant 0 : i32
    %c0_i32_0 = arith.constant 0 : i32
    %c0_i32_1 = arith.constant 0 : i32
    return %c0_i32, %c0_i32_0 : i32, i32
  }
  func.func @transform_8(%arg0: i32) -> (i32, i32, i32, i32) {
    %c0_i32 = arith.constant 0 : i32
    %c0_i32_0 = arith.constant 0 : i32
    %c0_i32_1 = arith.constant 0 : i32
    %c0_i32_2 = arith.constant 0 : i32
    %c0_i32_3 = arith.constant 0 : i32
    return %c0_i32, %c0_i32_0, %c0_i32_1, %c0_i32_2 : i32, i32, i32, i32
  }
  func.func @transform_9(%arg0: i32) -> (i32, i32) {
    %c0_i32 = arith.constant 0 : i32
    %c0_i32_0 = arith.constant 0 : i32
    %c0_i32_1 = arith.constant 0 : i32
    return %c0_i32, %c0_i32_0 : i32, i32
  }
  func.func @transform_10(%arg0: i32) -> (i32, i32, i32) {
    %c0_i32 = arith.constant 0 : i32
    %c0_i32_0 = arith.constant 0 : i32
    %c0_i32_1 = arith.constant 0 : i32
    return %arg0, %c0_i32, %c0_i32_0 : i32, i32, i32
  }
  func.func @transform_11(%arg0: i32) -> (i32, i32, i32) {
    %c0_i32 = arith.constant 0 : i32
    %c0_i32_0 = arith.constant 0 : i32
    %c0_i32_1 = arith.constant 0 : i32
    return %arg0, %c0_i32, %c0_i32_0 : i32, i32, i32
  }
  func.func @transform_12(%arg0: i32) -> (i32, i32, i32) {
    %c0_i32 = arith.constant 0 : i32
    %c0_i32_0 = arith.constant 0 : i32
    %c0_i32_1 = arith.constant 0 : i32
    return %arg0, %c0_i32, %c0_i32_0 : i32, i32, i32
  }
  func.func @transform_13(%arg0: i32) -> (i32, i32, i32) {
    %c0_i32 = arith.constant 0 : i32
    %c0_i32_0 = arith.constant 0 : i32
    %c0_i32_1 = arith.constant 0 : i32
    return %arg0, %c0_i32, %c0_i32_0 : i32, i32, i32
  }
}

module attributes {stable_mosaic.version = 11 : i64} {
  func.func @bn_finalize_kernel(%arg0: i32, %arg1: memref<1x16x64xf32, #tpu.memory_space<vmem>>, %arg2: memref<2x1x64xf32, #tpu.memory_space<vmem>>, %arg3: memref<2x1x64xf32, #tpu.memory_space<vmem>>, %arg4: memref<1x64xf32, #tpu.memory_space<vmem>>, %arg5: memref<1x64xf32, #tpu.memory_space<vmem>>, %arg6: memref<64x64xf32, #tpu.memory_space<vmem>>, %arg7: memref<1x16x64xf32, #tpu.memory_space<vmem>>) attributes {dimension_semantics = [#tpu.dimension_semantics<parallel>], iteration_bounds = array<i64: 2>, scalar_prefetch = 0 : i64, scratch_operands = 0 : i64, tpu.core_type = #tpu.core_type<tc>, window_params = [{transform_indices = @transform_0, window_bounds = array<i64: 1, 16, 64>}, {pipeline_mode = #tpu.pipeline_mode<synchronous>, transform_indices = @transform_1, window_bounds = array<i64: 2, 1, 64>}, {pipeline_mode = #tpu.pipeline_mode<synchronous>, transform_indices = @transform_2, window_bounds = array<i64: 2, 1, 64>}, {pipeline_mode = #tpu.pipeline_mode<synchronous>, transform_indices = @transform_3, window_bounds = array<i64: 1, 64>}, {pipeline_mode = #tpu.pipeline_mode<synchronous>, transform_indices = @transform_4, window_bounds = array<i64: 1, 64>}, {pipeline_mode = #tpu.pipeline_mode<synchronous>, transform_indices = @transform_5, window_bounds = array<i64: 64, 64>}, {transform_indices = @transform_6, window_bounds = array<i64: 1, 16, 64>}]} {
    %c0 = arith.constant 0 : index
    %c0_0 = arith.constant 0 : index
    %c0_1 = arith.constant 0 : index
    %0 = vector.load %arg2[%c0, %c0_0, %c0_1] : memref<2x1x64xf32, #tpu.memory_space<vmem>>, vector<2x1x64xf32>
    %c0_2 = arith.constant 0 : index
    %c0_3 = arith.constant 0 : index
    %c0_4 = arith.constant 0 : index
    %1 = vector.load %arg3[%c0_2, %c0_3, %c0_4] : memref<2x1x64xf32, #tpu.memory_space<vmem>>, vector<2x1x64xf32>
    %c0_5 = arith.constant 0 : index
    %c0_6 = arith.constant 0 : index
    %2 = vector.load %arg4[%c0_5, %c0_6] : memref<1x64xf32, #tpu.memory_space<vmem>>, vector<1x64xf32>
    %c0_7 = arith.constant 0 : index
    %c0_8 = arith.constant 0 : index
    %3 = vector.load %arg5[%c0_7, %c0_8] : memref<1x64xf32, #tpu.memory_space<vmem>>, vector<1x64xf32>
    %c0_9 = arith.constant 0 : index
    %c0_10 = arith.constant 0 : index
    %4 = vector.load %arg6[%c0_9, %c0_10] : memref<64x64xf32, #tpu.memory_space<vmem>>, vector<64x64xf32>
    %5 = vector.shape_cast %0 : vector<2x1x64xf32> to vector<2x64xf32>
    %cst = arith.constant dense<0.000000e+00> : vector<64xf32>
    %6 = vector.multi_reduction <add>, %5, %cst [0] : vector<2x64xf32> to vector<64xf32>
    %7 = vector.shape_cast %6 : vector<64xf32> to vector<1x64xf32>
    %8 = vector.shape_cast %0 : vector<2x1x64xf32> to vector<2x64xf32>
    %9 = vector.shape_cast %0 : vector<2x1x64xf32> to vector<2x64xf32>
    %10 = arith.mulf %8, %9 : vector<2x64xf32>
    %cst_11 = arith.constant dense<0.000000e+00> : vector<64xf32>
    %11 = vector.multi_reduction <add>, %10, %cst_11 [0] : vector<2x64xf32> to vector<64xf32>
    %12 = vector.shape_cast %11 : vector<64xf32> to vector<1x64xf32>
    %13 = vector.shape_cast %1 : vector<2x1x64xf32> to vector<2x64xf32>
    %cst_12 = arith.constant dense<0.000000e+00> : vector<64xf32>
    %14 = vector.multi_reduction <add>, %13, %cst_12 [0] : vector<2x64xf32> to vector<64xf32>
    %15 = vector.shape_cast %14 : vector<64xf32> to vector<1x64xf32>
    %cst_13 = arith.constant dense<0.000000e+00> : vector<1x64xf32>
    %16 = tpu.matmul %7, %4, %cst_13 {dimension_numbers = #tpu.dot_dimension_numbers<[1], [0], [0], [1], [0, 0, 1, 1], [], []>} : vector<1x64xf32>, vector<64x64xf32>, vector<1x64xf32> -> vector<1x64xf32>
    %cst_14 = arith.constant dense<0.000000e+00> : vector<1x64xf32>
    %17 = tpu.matmul %12, %4, %cst_14 {dimension_numbers = #tpu.dot_dimension_numbers<[1], [0], [0], [1], [0, 0, 1, 1], [], []>} : vector<1x64xf32>, vector<64x64xf32>, vector<1x64xf32> -> vector<1x64xf32>
    %cst_15 = arith.constant dense<0.000000e+00> : vector<1x64xf32>
    %18 = tpu.matmul %15, %4, %cst_15 {dimension_numbers = #tpu.dot_dimension_numbers<[1], [0], [0], [1], [0, 0, 1, 1], [], []>} : vector<1x64xf32>, vector<64x64xf32>, vector<1x64xf32> -> vector<1x64xf32>
    %cst_16 = arith.constant 0.001953125 : f32
    %19 = vector.broadcast %cst_16 : f32 to vector<1x64xf32>
    %20 = arith.mulf %16, %19 : vector<1x64xf32>
    %cst_17 = arith.constant 6.250000e-02 : f32
    %21 = vector.broadcast %cst_17 : f32 to vector<1x64xf32>
    %22 = arith.mulf %17, %21 : vector<1x64xf32>
    %23 = arith.addf %18, %22 : vector<1x64xf32>
    %24 = arith.mulf %16, %20 : vector<1x64xf32>
    %25 = arith.subf %23, %24 : vector<1x64xf32>
    %cst_18 = arith.constant 0.001953125 : f32
    %26 = vector.broadcast %cst_18 : f32 to vector<1x64xf32>
    %27 = arith.mulf %25, %26 : vector<1x64xf32>
    %cst_19 = arith.constant 0.000000e+00 : f32
    %28 = vector.broadcast %cst_19 : f32 to vector<1x64xf32>
    %29 = arith.maximumf %27, %28 : vector<1x64xf32>
    %cst_20 = arith.constant 9.99999974E-6 : f32
    %30 = vector.broadcast %cst_20 : f32 to vector<1x64xf32>
    %31 = arith.addf %29, %30 : vector<1x64xf32>
    %32 = math.rsqrt %31 : vector<1x64xf32>
    %33 = arith.mulf %2, %32 : vector<1x64xf32>
    %34 = arith.mulf %20, %33 : vector<1x64xf32>
    %35 = arith.subf %3, %34 : vector<1x64xf32>
    %c0_21 = arith.constant 0 : index
    %c0_22 = arith.constant 0 : index
    %c0_23 = arith.constant 0 : index
    %36 = vector.load %arg1[%c0_21, %c0_22, %c0_23] : memref<1x16x64xf32, #tpu.memory_space<vmem>>, vector<1x16x64xf32>
    %37 = vector.shape_cast %36 : vector<1x16x64xf32> to vector<16x64xf32>
    %38 = vector.broadcast %33 : vector<1x64xf32> to vector<16x64xf32>
    %39 = arith.mulf %37, %38 : vector<16x64xf32>
    %40 = vector.broadcast %35 : vector<1x64xf32> to vector<16x64xf32>
    %41 = arith.addf %39, %40 : vector<16x64xf32>
    %cst_24 = arith.constant 0.000000e+00 : f32
    %42 = vector.broadcast %cst_24 : f32 to vector<16x64xf32>
    %43 = arith.cmpf ogt, %41, %42 : vector<16x64xf32>
    %cst_25 = arith.constant 2.000000e-01 : f32
    %44 = vector.broadcast %cst_25 : f32 to vector<16x64xf32>
    %45 = arith.mulf %44, %41 : vector<16x64xf32>
    %46 = arith.select %43, %41, %45 : vector<16x64xi1>, vector<16x64xf32>
    %c0_26 = arith.constant 0 : index
    %c0_27 = arith.constant 0 : index
    %c0_28 = arith.constant 0 : index
    %47 = vector.load %arg7[%c0_26, %c0_27, %c0_28] : memref<1x16x64xf32, #tpu.memory_space<vmem>>, vector<1x16x64xf32>
    %48 = vector.shape_cast %47 : vector<1x16x64xf32> to vector<16x64xf32>
    %49 = vector.shape_cast %46 : vector<16x64xf32> to vector<1x16x64xf32>
    tpu.vector_store %arg7[%c0_26, %c0_27, %c0_28], %49 {strides = array<i32>} : memref<1x16x64xf32, #tpu.memory_space<vmem>>, vector<1x16x64xf32>,
    return
  }
  func.func @transform_0(%arg0: i32) -> (i32, i32, i32) {
    %c0_i32 = arith.constant 0 : i32
    %c0_i32_0 = arith.constant 0 : i32
    %c0_i32_1 = arith.constant 0 : i32
    return %arg0, %c0_i32, %c0_i32_0 : i32, i32, i32
  }
  func.func @transform_1(%arg0: i32) -> (i32, i32, i32) {
    %c0_i32 = arith.constant 0 : i32
    %c0_i32_0 = arith.constant 0 : i32
    %c0_i32_1 = arith.constant 0 : i32
    %c0_i32_2 = arith.constant 0 : i32
    return %c0_i32, %c0_i32_0, %c0_i32_1 : i32, i32, i32
  }
  func.func @transform_2(%arg0: i32) -> (i32, i32, i32) {
    %c0_i32 = arith.constant 0 : i32
    %c0_i32_0 = arith.constant 0 : i32
    %c0_i32_1 = arith.constant 0 : i32
    %c0_i32_2 = arith.constant 0 : i32
    return %c0_i32, %c0_i32_0, %c0_i32_1 : i32, i32, i32
  }
  func.func @transform_3(%arg0: i32) -> (i32, i32) {
    %c0_i32 = arith.constant 0 : i32
    %c0_i32_0 = arith.constant 0 : i32
    %c0_i32_1 = arith.constant 0 : i32
    return %c0_i32, %c0_i32_0 : i32, i32
  }
  func.func @transform_4(%arg0: i32) -> (i32, i32) {
    %c0_i32 = arith.constant 0 : i32
    %c0_i32_0 = arith.constant 0 : i32
    %c0_i32_1 = arith.constant 0 : i32
    return %c0_i32, %c0_i32_0 : i32, i32
  }
  func.func @transform_5(%arg0: i32) -> (i32, i32) {
    %c0_i32 = arith.constant 0 : i32
    %c0_i32_0 = arith.constant 0 : i32
    %c0_i32_1 = arith.constant 0 : i32
    return %c0_i32, %c0_i32_0 : i32, i32
  }
  func.func @transform_6(%arg0: i32) -> (i32, i32, i32) {
    %c0_i32 = arith.constant 0 : i32
    %c0_i32_0 = arith.constant 0 : i32
    %c0_i32_1 = arith.constant 0 : i32
    return %arg0, %c0_i32, %c0_i32_0 : i32, i32, i32
  }
}

</mosaic_0001>

<llo_original>
// kernel: dense_block_forward.4
$region0: #{dense_block_forward.4}
  #allocation0 [shape = 'u32[]', space=smem, size = 0x4, offset = 0x4, fixed_abs, tag = 'smem constant byte address 0x4 - core index']
  #allocation1 [shape = 'u32[72,128]{1,0:T(1,128)}', space=vmem, size = 0x9000, scoped, tag = 'internal scratch']
  %s0 = inlined_call_operand.vmem [shape: bf16[2,18,64], index: 0, kind: input, shape index: {}]
  %s1 = inlined_call_operand.hbm [shape: bf16[1,3,64,64], index: 1, kind: input, shape index: {}]
  %s2 = inlined_call_operand.vmem [shape: f32[1,64], index: 2, kind: input, shape index: {}]
  %s3 = inlined_call_operand.vmem [shape: f32[2,16,64], index: 3, kind: output, shape index: {0}]
  %s4 = inlined_call_operand.vmem [shape: f32[2,1,64], index: 4, kind: output, shape index: {1}]
  %s5 = inlined_call_operand.vmem [shape: f32[2,1,64], index: 5, kind: output, shape index: {2}]
  %6 = xla_tuple %s3, %s4, %s5
  %s7 = sld [smem:[#allocation0]]
  $region65: #{dense_block_forward.4} parent=0
    _
  %s9 = ssub.s32 1, %s7
  %s10 = scalar_select 0, %s9, %s7
  $region1: #{dense_block_forward.4} parent=0
    #allocation2 [shape = 'u8[49152]{0}', space=vmem, size = 0xc000, scoped, tag = 'input window, operand 1, single buffered']
    #allocation3 [shape = 's32[2]{0}', space=sflag, size = 0x8, scoped, tag = 'scoped memory for dense_block_forward.4']
    %11 = vsyncpa [#allocation3], 0
    loop: start=0, step=1, limit=4
    $region2: #{dense_block_forward.4} parent=1 // loop_pre_header
      _
    $region3: #{dense_block_forward.4} parent=1 // loop_header
      %s13 = sphi 0, %s17
      %p14 = scmp.ge.s32.totalorder %s13, 4
      %s23 = sphi 0, %s25
      %s26 = sphi 0, %s23
      %s27 = sphi 0, %s26
      %s43 = sphi 0, %s27
      %s47 = sphi 0, %s47
      %s49 = sphi 0, %s47
      %s50 = sphi 0, %s49
      %s64 = sphi 0, %s50
      %s68 = sphi 0, %s68
      %s70 = sphi 0, %s68
      %s71 = sphi 0, %s70
      %s85 = sphi 0, %s71
      %s91 = sphi 0, %s93
      %s94 = sphi 0, %s91
      %s95 = sphi 0, %s94
      %s111 = sphi 0, %s95
      %s117 = sphi 0, %s119
      %s120 = sphi 0, %s117
      %s121 = sphi 0, %s120
      %s137 = sphi 0, %s121
      %s143 = sphi 0, %s145
      %s146 = sphi 0, %s143
      %s147 = sphi 0, %s146
      %s163 = sphi 0, %s147
    $region4: #{dense_block_forward.4} parent=1 // loop_header_branch
      %16 = sbr.rel (%p14) target = $region8
    $region5: #{dense_block_forward.4} parent=1 // loop_body
      %s18 = ssub.s32 %s13, 1
      %s19 = ssub.s32 %s13, 2
      %s20 = sadd.s32 %s13, 1
      %s21 = ssub.s32 %s13, %s20
      %p22 = scmp.eq.s32.totalorder %s21, 0
      %s24 = sadd.s32 %s23, 1
      %s25 = scalar_select %p22, %s23, %s24
      %p28 = pneg %p22
      %p29 = scmp.eq.s32.totalorder %s13, 1
      %p30 = por %p28, %p29
      %p31 = scmp.ne.s32.totalorder %s23, %s26
      %p32 = scmp.eq.s32.totalorder %s13, 0
      %p33 = por %p31, %p32
      %p34 = scmp.ne.s32.totalorder %s23, %s26
      %p35 = scmp.eq.s32.totalorder %s18, 1
      %p36 = por %p34, %p35
      %p37 = scmp.ne.s32.totalorder %s26, %s27
      %p38 = scmp.eq.s32.totalorder %s18, 0
      %p39 = por %p37, %p38
      %p40 = scmp.ne.s32.totalorder %s26, %s27
      %p41 = scmp.eq.s32.totalorder %s19, 1
      %p42 = por %p40, %p41
      %p44 = scmp.ne.s32.totalorder %s27, %s43
      %p45 = scmp.eq.s32.totalorder %s19, 0
      %p46 = por %p44, %p45
      %s48 = sadd.s32 %s47, 1
      %p51 = scmp.eq.s32.totalorder %s13, 1
      %p52 = scmp.ne.s32.totalorder %s47, %s49
      %p53 = scmp.eq.s32.totalorder %s13, 0
      %p54 = por %p52, %p53
      %p55 = scmp.ne.s32.totalorder %s47, %s49
      %p56 = scmp.eq.s32.totalorder %s18, 1
      %p57 = por %p55, %p56
      %p58 = scmp.ne.s32.totalorder %s49, %s50
      %p59 = scmp.eq.s32.totalorder %s18, 0
      %p60 = por %p58, %p59
      %p61 = scmp.ne.s32.totalorder %s49, %s50
      %p62 = scmp.eq.s32.totalorder %s19, 1
      %p63 = por %p61, %p62
      %p65 = scmp.ne.s32.totalorder %s50, %s64
      %p66 = scmp.eq.s32.totalorder %s19, 0
      %p67 = por %p65, %p66
      %s69 = sadd.s32 %s68, 1
      %p72 = scmp.eq.s32.totalorder %s13, 1
      %p73 = scmp.ne.s32.totalorder %s68, %s70
      %p74 = scmp.eq.s32.totalorder %s13, 0
      %p75 = por %p73, %p74
      %p76 = scmp.ne.s32.totalorder %s68, %s70
      %p77 = scmp.eq.s32.totalorder %s18, 1
      %p78 = por %p76, %p77
      %p79 = scmp.ne.s32.totalorder %s70, %s71
      %p80 = scmp.eq.s32.totalorder %s18, 0
      %p81 = por %p79, %p80
      %p82 = scmp.ne.s32.totalorder %s70, %s71
      %p83 = scmp.eq.s32.totalorder %s19, 1
      %p84 = por %p82, %p83
      %p86 = scmp.ne.s32.totalorder %s71, %s85
      %p87 = scmp.eq.s32.totalorder %s19, 0
      %p88 = por %p86, %p87
      %s89 = ssub.s32 %s13, %s20
      %p90 = scmp.eq.s32.totalorder %s89, 0
      %s92 = sadd.s32 %s91, 1
      %s93 = scalar_select %p90, %s91, %s92
      %p96 = pneg %p90
      %p97 = scmp.eq.s32.totalorder %s13, 1
      %p98 = por %p96, %p97
      %p99 = scmp.ne.s32.totalorder %s91, %s94
      %p100 = scmp.eq.s32.totalorder %s13, 0
      %p101 = por %p99, %p100
      %p102 = scmp.ne.s32.totalorder %s91, %s94
      %p103 = scmp.eq.s32.totalorder %s18, 1
      %p104 = por %p102, %p103
      %p105 = scmp.ne.s32.totalorder %s94, %s95
      %p106 = scmp.eq.s32.totalorder %s18, 0
      %p107 = por %p105, %p106
      %p108 = scmp.ne.s32.totalorder %s94, %s95
      %p109 = scmp.eq.s32.totalorder %s19, 1
      %p110 = por %p108, %p109
      %p112 = scmp.ne.s32.totalorder %s95, %s111
      %p113 = scmp.eq.s32.totalorder %s19, 0
      %p114 = por %p112, %p113
      %s115 = ssub.s32 %s13, %s20
      %p116 = scmp.eq.s32.totalorder %s115, 0
      %s118 = sadd.s32 %s117, 1
      %s119 = scalar_select %p116, %s117, %s118
      %p122 = pneg %p116
      %p123 = scmp.eq.s32.totalorder %s13, 1
      %p124 = por %p122, %p123
      %p125 = scmp.ne.s32.totalorder %s117, %s120
      %p126 = scmp.eq.s32.totalorder %s13, 0
      %p127 = por %p125, %p126
      %p128 = scmp.ne.s32.totalorder %s117, %s120
      %p129 = scmp.eq.s32.totalorder %s18, 1
      %p130 = por %p128, %p129
      %p131 = scmp.ne.s32.totalorder %s120, %s121
      %p132 = scmp.eq.s32.totalorder %s18, 0
      %p133 = por %p131, %p132
      %p134 = scmp.ne.s32.totalorder %s120, %s121
      %p135 = scmp.eq.s32.totalorder %s19, 1
      %p136 = por %p134, %p135
      %p138 = scmp.ne.s32.totalorder %s121, %s137
      %p139 = scmp.eq.s32.totalorder %s19, 0
      %p140 = por %p138, %p139
      %s141 = ssub.s32 %s13, %s20
      %p142 = scmp.eq.s32.totalorder %s141, 0
      %s144 = sadd.s32 %s143, 1
      %s145 = scalar_select %p142, %s143, %s144
      %p148 = pneg %p142
      %p149 = scmp.eq.s32.totalorder %s13, 1
      %p150 = por %p148, %p149
      %p151 = scmp.ne.s32.totalorder %s143, %s146
      %p152 = scmp.eq.s32.totalorder %s13, 0
      %p153 = por %p151, %p152
      %p154 = scmp.ne.s32.totalorder %s143, %s146
      %p155 = scmp.eq.s32.totalorder %s18, 1
      %p156 = por %p154, %p155
      %p157 = scmp.ne.s32.totalorder %s146, %s147
      %p158 = scmp.eq.s32.totalorder %s18, 0
      %p159 = por %p157, %p158
      %p160 = scmp.ne.s32.totalorder %s146, %s147
      %p161 = scmp.eq.s32.totalorder %s19, 1
      %p162 = por %p160, %p161
      %p164 = scmp.ne.s32.totalorder %s147, %s163
      %p165 = scmp.eq.s32.totalorder %s19, 0
      %p166 = por %p164, %p165
      %p167 = scmp.le.s32.totalorder 1, %s13
      %p168 = scmp.lt.s32.totalorder %s13, 3
      %p169 = pnand %p167, %p168
      %p170 = pneg %p169
      // Predicated region
      $region9: #{dense_block_forward.4} parent=5 // pred_check
        _
      $region10: #{dense_block_forward.4} parent=5 // pred_check_branch
        %172 = sbr.rel (%p169) target = $region12
      $region11: #{dense_block_forward.4} parent=5 // pred_region
        %s173 = ssub.s32 %s13, 1
        // Predicated region
        $region13: #{dense_block_forward.4} parent=11 // pred_check
          %p174 = pneg %p60
        $region14: #{dense_block_forward.4} parent=11 // pred_check_branch
          %176 = sbr.rel (%p174) target = $region16
        $region15: #{dense_block_forward.4} parent=11 // pred_region
          %178 = vsyncadd [#allocation3], 0
          %s179 = sshll.u32 %s1, 4
          %s180 = int_to_ptr.hbm [resolvable:$true] %s179
          %s181 = sshll.u32 [#allocation2], 4
          %s182 = int_to_ptr.vmem [resolvable:$true] %s181
          %187 = dma.hbm_to_vmem [thread:$0]  %s180, 1536, %s182, [#allocation3], 64, 64, 4
        $region16: #{dense_block_forward.4} parent=11 // pred_fallthru
          _
        // Predicated region
        $region17: #{dense_block_forward.4} parent=11 // pred_check
          %p188 = pneg %p81
        $region18: #{dense_block_forward.4} parent=11 // pred_check_branch
          %190 = sbr.rel (%p188) target = $region20
        $region19: #{dense_block_forward.4} parent=11 // pred_region
          _
        $region20: #{dense_block_forward.4} parent=11 // pred_fallthru
          _
      $region12: #{dense_block_forward.4} parent=5 // pred_fallthru
        _
      %p191 = scmp.lt.s32.totalorder %s13, 2
      // Predicated region
      $region21: #{dense_block_forward.4} parent=5 // pred_check
        %p192 = pneg %p191
      $region22: #{dense_block_forward.4} parent=5 // pred_check_branch
        %194 = sbr.rel (%p192) target = $region24
      $region23: #{dense_block_forward.4} parent=5 // pred_region
        // Predicated region
        $region25: #{dense_block_forward.4} parent=23 // pred_check
          %p195 = pneg %p33
        $region26: #{dense_block_forward.4} parent=23 // pred_check_branch
          %197 = sbr.rel (%p195) target = $region28
        $region27: #{dense_block_forward.4} parent=23 // pred_region
          %p198 = scmp.lt.s32.totalorder %s13, 1
          %s199 = scalar_select %p198, %s13, 1
          %s200 = smul.addr %s199, 3
          %s201 = smul.addr %s200, 4
          %s202 = scalar_lea.vmem %s0, %s201
        $region28: #{dense_block_forward.4} parent=23 // pred_fallthru
          _
      $region24: #{dense_block_forward.4} parent=5 // pred_fallthru
        _
      %p203 = scmp.le.s32.totalorder 1, %s13
      %p204 = scmp.lt.s32.totalorder %s13, 3
      %p205 = pnand %p203, %p204
      %p206 = pneg %p205
      // Predicated region
      $region29: #{dense_block_forward.4} parent=5 // pred_check
        _
      $region30: #{dense_block_forward.4} parent=5 // pred_check_branch
        %208 = sbr.rel (%p205) target = $region32
      $region31: #{dense_block_forward.4} parent=5 // pred_region
        %s209 = ssub.s32 %s13, 1
        // Predicated region
        $region33: #{dense_block_forward.4} parent=31 // pred_check
          %p210 = pneg %p60
        $region34: #{dense_block_forward.4} parent=31 // pred_check_branch
          %212 = sbr.rel (%p210) target = $region36
        $region35: #{dense_block_forward.4} parent=31 // pred_region
          %214 = dma.done [#allocation3], 1536
        $region36: #{dense_block_forward.4} parent=31 // pred_fallthru
          _
        %p215 = scmp.lt.s32.totalorder %s18, 1
        %s216 = scalar_select %p215, %s18, 1
        %s217 = smul.addr %s216, 3
        %s218 = smul.addr %s217, 4
        %s219 = scalar_lea.vmem %s0, %s218
        %p220 = pneg %p39
        %p221 = pneg %p36
        %p222 = pneg %p60
        %p223 = pneg %p57
        %p224 = pneg %p81
        %p225 = pneg %p78
        %p226 = pneg %p107
        %p227 = pneg %p104
        %p228 = scmp.lt.s32.totalorder %s18, 1
        %s229 = scalar_select %p228, %s18, 1
        %s230 = smul.addr %s229, 2
        %s231 = smul.addr %s230, 8
        %s232 = scalar_lea.vmem %s3, %s231
        %p233 = pneg %p133
        %p234 = pneg %p130
        %p235 = scmp.lt.s32.totalorder %s18, 1
        %s236 = scalar_select %p235, %s18, 1
        %s237 = scalar_lea.vmem %s4, %s236
        %p238 = pneg %p159
        %p239 = pneg %p156
        %p240 = scmp.lt.s32.totalorder %s18, 1
        %s241 = scalar_select %p240, %s18, 1
        %s242 = scalar_lea.vmem %s5, %s241
        %p243 = scmp.lt.s32.totalorder %s18, 1
        %s244 = scalar_select %p243, %s18, 1
        %s245 = smul.addr %s244, 3
        %s246 = smul.addr %s245, 4
        %s247 = scalar_lea.vmem %s0, %s246
        %p248 = scmp.lt.s32.totalorder %s18, 1
        %s249 = scalar_select %p248, %s18, 1
        %s250 = smul.addr %s249, 2
        %s251 = smul.addr %s250, 8
        %s252 = scalar_lea.vmem %s3, %s251
        %p253 = scmp.lt.s32.totalorder %s18, 1
        %s254 = scalar_select %p253, %s18, 1
        %s255 = scalar_lea.vmem %s4, %s254
        %p256 = scmp.lt.s32.totalorder %s18, 1
        %s257 = scalar_select %p256, %s18, 1
        %s258 = scalar_lea.vmem %s5, %s257
        %v260 = vld [vmem:[%s247] sm:$0xf]
        %v261 = vld [vmem:[%s247 + $0x4] sm:$0xf]
        %v262 = vld [vmem:[%s247 + $0x8] sm:$0x1]
        %v263 = vld [vmem:[#allocation2] sm:$0xf]
        %v264 = vld [vmem:[#allocation2 + $0x4] sm:$0xf]
        %v265 = vld [vmem:[#allocation2 + $0x8] sm:$0xf]
        %v266 = vld [vmem:[#allocation2 + $0xc] sm:$0xf]
        %v267 = vld [vmem:[#allocation2 + $0x10] sm:$0xf]
        %v268 = vld [vmem:[#allocation2 + $0x14] sm:$0xf]
        %v269 = vld [vmem:[#allocation2 + $0x18] sm:$0xf]
        %v270 = vld [vmem:[#allocation2 + $0x1c] sm:$0xf]
        %v274 = vunpack.c.l.b16 %v260
        %v275 = vunpack.c.l.b16 %v261
        %v276 = vunpack.c.l.b16 %v262
        %v277 = vpack.c.b16 %v275, %v274
        %v278 = vpack.c.b16 %v276, %v276
        %v287 = vunpack.c.l.b16 %v263
        %v288 = vunpack.c.l.b16 %v264
        %v289 = vunpack.c.l.b16 %v265
        %v290 = vunpack.c.l.b16 %v266
        %v291 = vunpack.c.l.b16 %v267
        %v292 = vunpack.c.l.b16 %v268
        %v293 = vunpack.c.l.b16 %v269
        %v294 = vunpack.c.l.b16 %v270
        %v295 = vpack.c.b16 %v288, %v287
        %v296 = vpack.c.b16 %v290, %v289
        %v297 = vpack.c.b16 %v292, %v291
        %v298 = vpack.c.b16 %v294, %v293
        %vm303 = vcmask 523264
        %v305 = vsel %vm303, %v277, 0
        %v308 = vsel %vm303, %v278, 0
        %310 = vmatpush.bf16.msra.mxu0 0
        %311 = vmatpush.bf16.msra.mxu0 0
        %312 = vmatpush.bf16.msra.mxu0 0
        %313 = vmatpush.bf16.msra.mxu0 0
        %314 = vmatpush.bf16.msra.mxu0 %v298
        %315 = vmatpush.bf16.msra.mxu0 %v297
        %316 = vmatpush.bf16.msra.mxu0 %v296
        %317 = vmatpush.bf16.msra.mxu0 %v295
        %318 = vmatmul.bf16.gmra.mxu0 %v305
        %v319 = vpop.f32.mrf.mxu0
        %v320 = vadd.f32 0.0, %v319
        %v321 = vpop.f32.mrf.mxu0
        %v322 = vadd.f32 0.0, %v321
        %323 = vmatmul.bf16.gmra.mxu0 %v308
        %v324 = vpop.f32.mrf.mxu0
        %v325 = vpop.f32.mrf.mxu0
        %326 = vdwg.mxu0
        %v327 = vadd.f32 %v320, 0.0
        %v328 = vadd.f32 %v322, 0.0
        %s329 = scalar_lea.vmem [#allocation2], 32
        %v330 = vld [vmem:[%s329] sm:$0xf]
        %v331 = vld [vmem:[%s329 + $0x4] sm:$0xf]
        %v332 = vld [vmem:[%s329 + $0x8] sm:$0xf]
        %v333 = vld [vmem:[%s329 + $0xc] sm:$0xf]
        %v334 = vld [vmem:[%s329 + $0x10] sm:$0xf]
        %v335 = vld [vmem:[%s329 + $0x14] sm:$0xf]
        %v336 = vld [vmem:[%s329 + $0x18] sm:$0xf]
        %v337 = vld [vmem:[%s329 + $0x1c] sm:$0xf]
        %v346 = vunpack.c.l.b16 %v330
        %v347 = vunpack.c.l.b16 %v331
        %v348 = vunpack.c.l.b16 %v332
        %v349 = vunpack.c.l.b16 %v333
        %v350 = vunpack.c.l.b16 %v334
        %v351 = vunpack.c.l.b16 %v335
        %v352 = vunpack.c.l.b16 %v336
        %v353 = vunpack.c.l.b16 %v337
        %v354 = vpack.c.b16 %v347, %v346
        %v355 = vpack.c.b16 %v349, %v348
        %v356 = vpack.c.b16 %v351, %v350
        %v357 = vpack.c.b16 %v353, %v352
        %362 = vmatpush.bf16.msra.mxu0 0
        %363 = vmatpush.bf16.msra.mxu0 0
        %364 = vmatpush.bf16.msra.mxu0 0
        %365 = vmatpush.bf16.msra.mxu0 0
        %366 = vmatpush.bf16.msra.mxu0 %v357
        %367 = vmatpush.bf16.msra.mxu0 %v356
        %368 = vmatpush.bf16.msra.mxu0 %v355
        %369 = vmatpush.bf16.msra.mxu0 %v354
        %370 = vmatmul.bf16.gmra.mxu0 %v305
        %v371 = vpop.f32.mrf.mxu0
        %v372 = vadd.f32 0.0, %v371
        %v373 = vpop.f32.mrf.mxu0
        %v374 = vadd.f32 0.0, %v373
        %375 = vmatmul.bf16.gmra.mxu0 %v308
        %v376 = vpop.f32.mrf.mxu0
        %v377 = vadd.f32 0.0, %v376
        %v378 = vpop.f32.mrf.mxu0
        %379 = vdwg.mxu0
        %vm383 = vcmask 1046528
        %v384 = vrot.slane %v372, 1
        %v385 = vrot.slane %v374, 1
        %v386 = vsel %vm383, %v384, %v385
        %v387 = vrot.slane %v377, 1
        %v388 = vsel %vm383, %v385, %v387
        %v391 = vadd.f32 %v327, %v386
        %v392 = vadd.f32 %v328, %v388
        %s393 = scalar_lea.vmem [#allocation2], 64
        %v394 = vld [vmem:[%s393] sm:$0xf]
        %v395 = vld [vmem:[%s393 + $0x4] sm:$0xf]
        %v396 = vld [vmem:[%s393 + $0x8] sm:$0xf]
        %v397 = vld [vmem:[%s393 + $0xc] sm:$0xf]
        %v398 = vld [vmem:[%s393 + $0x10] sm:$0xf]
        %v399 = vld [vmem:[%s393 + $0x14] sm:$0xf]
        %v400 = vld [vmem:[%s393 + $0x18] sm:$0xf]
        %v401 = vld [vmem:[%s393 + $0x1c] sm:$0xf]
        %v410 = vunpack.c.l.b16 %v394
        %v411 = vunpack.c.l.b16 %v395
        %v412 = vunpack.c.l.b16 %v396
        %v413 = vunpack.c.l.b16 %v397
        %v414 = vunpack.c.l.b16 %v398
        %v415 = vunpack.c.l.b16 %v399
        %v416 = vunpack.c.l.b16 %v400
        %v417 = vunpack.c.l.b16 %v401
        %v418 = vpack.c.b16 %v411, %v410
        %v419 = vpack.c.b16 %v413, %v412
        %v420 = vpack.c.b16 %v415, %v414
        %v421 = vpack.c.b16 %v417, %v416
        %426 = vmatpush.bf16.msra.mxu0 0
        %427 = vmatpush.bf16.msra.mxu0 0
        %428 = vmatpush.bf16.msra.mxu0 0
        %429 = vmatpush.bf16.msra.mxu0 0
        %430 = vmatpush.bf16.msra.mxu0 %v421
        %431 = vmatpush.bf16.msra.mxu0 %v420
        %432 = vmatpush.bf16.msra.mxu0 %v419
        %433 = vmatpush.bf16.msra.mxu0 %v418
        %434 = vmatmul.bf16.gmra.mxu0 %v305
        %v435 = vpop.f32.mrf.mxu0
        %v436 = vadd.f32 0.0, %v435
        %v437 = vpop.f32.mrf.mxu0
        %v438 = vadd.f32 0.0, %v437
        %439 = vmatmul.bf16.gmra.mxu0 %v308
        %v440 = vpop.f32.mrf.mxu0
        %v441 = vadd.f32 0.0, %v440
        %v442 = vpop.f32.mrf.mxu0
        %443 = vdwg.mxu0
        %vm447 = vcmask 1045504
        %v448 = vrot.slane %v436, 2
        %v449 = vrot.slane %v438, 2
        %v450 = vsel %vm447, %v448, %v449
        %v451 = vrot.slane %v441, 2
        %v452 = vsel %vm447, %v449, %v451
        %v455 = vadd.f32 %v391, %v450
        %v456 = vadd.f32 %v392, %v452
        %v457 = vld [vmem:[%s2] sm:$0x1]
        %v459 = vperm.slane %v457, 0
        %v461 = vadd.f32 %v455, %v459
        %v462 = vadd.f32 %v456, %v459
        %463 = vst.msk [vmem:[%s252] sm:$0xff] %vm303, %v461
        %464 = vst.msk [vmem:[%s252 + $0x8] sm:$0xff] %vm303, %v462
        %v465 = vsel %vm303, %v461, 0.0
        %v466 = vsel %vm303, %v462, 0.0
        %v467 = vadd.f32 %v465, %v466
        %v468 = vrot.slane %v467, 4
        %v469 = vadd.f32 %v467, %v468
        %v470 = vrot.slane %v469, 2
        %v471 = vadd.f32 %v469, %v470
        %v472 = vrot.slane %v471, 1
        %v473 = vadd.f32 %v471, %v472
        %v474 = vmul.f32 %v473, 0.0625
        %v475 = vsub.f32 %v461, %v474
        %v476 = vsub.f32 %v462, %v474
        %vm477 = vcmask 516096
        %478 = vst.msk [vmem:[%s255] sm:$0x1] %vm477, %v473
        %v479 = vmul.f32 %v475, %v475
        %v480 = vmul.f32 %v476, %v476
        %v481 = vsel %vm303, %v479, 0.0
        %v482 = vsel %vm303, %v480, 0.0
        %v483 = vadd.f32 %v481, %v482
        %v484 = vrot.slane %v483, 4
        %v485 = vadd.f32 %v483, %v484
        %v486 = vrot.slane %v485, 2
        %v487 = vadd.f32 %v485, %v486
        %v488 = vrot.slane %v487, 1
        %v489 = vadd.f32 %v487, %v488
        %490 = vst.msk [vmem:[%s258] sm:$0x1] %vm477, %v489
        %p491 = scmp.lt.s32.totalorder %s18, 1
        %s492 = scalar_select %p491, %s18, 1
        %s493 = smul.addr %s492, 2
        %s494 = smul.addr %s493, 8
        %s495 = scalar_lea.vmem %s3, %s494
        %p496 = scmp.lt.s32.totalorder %s18, 1
        %s497 = scalar_select %p496, %s18, 1
        %s498 = scalar_lea.vmem %s4, %s497
        %p499 = scmp.lt.s32.totalorder %s18, 1
        %s500 = scalar_select %p499, %s18, 1
        %s501 = scalar_lea.vmem %s5, %s500
        // Predicated region
        $region37: #{dense_block_forward.4} parent=31 // pred_check
          %p502 = pneg %p104
        $region38: #{dense_block_forward.4} parent=31 // pred_check_branch
          %504 = sbr.rel (%p502) target = $region40
        $region39: #{dense_block_forward.4} parent=31 // pred_region
          _
        $region40: #{dense_block_forward.4} parent=31 // pred_fallthru
          _
        // Predicated region
        $region41: #{dense_block_forward.4} parent=31 // pred_check
          %p505 = pneg %p130
        $region42: #{dense_block_forward.4} parent=31 // pred_check_branch
          %507 = sbr.rel (%p505) target = $region44
        $region43: #{dense_block_forward.4} parent=31 // pred_region
          _
        $region44: #{dense_block_forward.4} parent=31 // pred_fallthru
          _
        // Predicated region
        $region45: #{dense_block_forward.4} parent=31 // pred_check
          %p508 = pneg %p156
        $region46: #{dense_block_forward.4} parent=31 // pred_check_branch
          %510 = sbr.rel (%p508) target = $region48
        $region47: #{dense_block_forward.4} parent=31 // pred_region
          _
        $region48: #{dense_block_forward.4} parent=31 // pred_fallthru
          _
      $region32: #{dense_block_forward.4} parent=5 // pred_fallthru
        _
      %p511 = scmp.le.s32.totalorder 2, %s13
      // Predicated region
      $region49: #{dense_block_forward.4} parent=5 // pred_check
        %p512 = pneg %p511
      $region50: #{dense_block_forward.4} parent=5 // pred_check_branch
        %514 = sbr.rel (%p512) target = $region52
      $region51: #{dense_block_forward.4} parent=5 // pred_region
        %s515 = ssub.s32 %s13, 2
        // Predicated region
        $region53: #{dense_block_forward.4} parent=51 // pred_check
          %p516 = pneg %p110
        $region54: #{dense_block_forward.4} parent=51 // pred_check_branch
          %518 = sbr.rel (%p516) target = $region56
        $region55: #{dense_block_forward.4} parent=51 // pred_region
          %p519 = scmp.lt.s32.totalorder %s19, 1
          %s520 = scalar_select %p519, %s19, 1
          %s521 = smul.addr %s520, 2
          %s522 = smul.addr %s521, 8
          %s523 = scalar_lea.vmem %s3, %s522
        $region56: #{dense_block_forward.4} parent=51 // pred_fallthru
          _
        // Predicated region
        $region57: #{dense_block_forward.4} parent=51 // pred_check
          %p524 = pneg %p136
        $region58: #{dense_block_forward.4} parent=51 // pred_check_branch
          %526 = sbr.rel (%p524) target = $region60
        $region59: #{dense_block_forward.4} parent=51 // pred_region
          %p527 = scmp.lt.s32.totalorder %s19, 1
          %s528 = scalar_select %p527, %s19, 1
          %s529 = scalar_lea.vmem %s4, %s528
        $region60: #{dense_block_forward.4} parent=51 // pred_fallthru
          _
        // Predicated region
        $region61: #{dense_block_forward.4} parent=51 // pred_check
          %p530 = pneg %p162
        $region62: #{dense_block_forward.4} parent=51 // pred_check_branch
          %532 = sbr.rel (%p530) target = $region64
        $region63: #{dense_block_forward.4} parent=51 // pred_region
          %p533 = scmp.lt.s32.totalorder %s19, 1
          %s534 = scalar_select %p533, %s19, 1
          %s535 = scalar_lea.vmem %s5, %s534
        $region64: #{dense_block_forward.4} parent=51 // pred_fallthru
          _
      $region52: #{dense_block_forward.4} parent=5 // pred_fallthru
        _
    $region6: #{dense_block_forward.4} parent=1 // loop_footer
      %s17 = sadd.s32 1, %s13
    $region7: #{dense_block_forward.4} parent=1 // loop_footer_branch
      %12 = sbr.rel target = $region3
    $region8: #{dense_block_forward.4} parent=1 // loop_exit
      _
    %536 = vsyncpa [#allocation3], 1
    %s537 = scalar_lea.sflag [#allocation3], 1
    %538 = vsyncpa %s537, 1

// kernel: dense_block_forward.5
$region0: #{dense_block_forward.5}
  #allocation0 [shape = 'u32[]', space=smem, size = 0x4, offset = 0x4, fixed_abs, tag = 'smem constant byte address 0x4 - core index']
  #allocation1 [shape = 'u32[72,128]{1,0:T(1,128)}', space=vmem, size = 0x9000, scoped, tag = 'internal scratch']
  %s0 = inlined_call_operand.vmem [shape: bf16[2,18,64], index: 0, kind: input, shape index: {}]
  %s1 = inlined_call_operand.vmem [shape: f32[2,16,64], index: 1, kind: input, shape index: {}]
  %s2 = inlined_call_operand.vmem [shape: f32[2,1,64], index: 2, kind: input, shape index: {}]
  %s3 = inlined_call_operand.vmem [shape: f32[2,1,64], index: 3, kind: input, shape index: {}]
  %s4 = inlined_call_operand.vmem [shape: f32[1,64], index: 4, kind: input, shape index: {}]
  %s5 = inlined_call_operand.vmem [shape: f32[1,64], index: 5, kind: input, shape index: {}]
  %s6 = inlined_call_operand.vmem [shape: f32[64,64], index: 6, kind: input, shape index: {}]
  %s7 = inlined_call_operand.vmem [shape: bf16[2,3,64,64], index: 7, kind: input, shape index: {}]
  %s8 = inlined_call_operand.vmem [shape: f32[1,64], index: 8, kind: input, shape index: {}]
  %s9 = inlined_call_operand.vmem [shape: f32[2,16,64], index: 9, kind: output, shape index: {0}]
  %s10 = inlined_call_operand.vmem [shape: f32[2,1,64], index: 10, kind: output, shape index: {1}]
  %s11 = inlined_call_operand.vmem [shape: f32[2,1,64], index: 11, kind: output, shape index: {2}]
  %s12 = inlined_call_operand.vmem [shape: bf16[2,18,64], index: 12, kind: output, shape index: {3}]
  %13 = xla_tuple %s9, %s10, %s11, %s12
  %s14 = sld [smem:[#allocation0]]
  $region93: #{dense_block_forward.5} parent=0
    _
  %s16 = ssub.s32 1, %s14
  %s17 = scalar_select 0, %s16, %s14
  loop: start=0, step=1, limit=4
  $region2: #{dense_block_forward.5} parent=0 // loop_pre_header
    _
  $region3: #{dense_block_forward.5} parent=0 // loop_header
    %s19 = sphi 0, %s23
    %p20 = scmp.ge.s32.totalorder %s19, 4
    %s29 = sphi 0, %s31
    %s32 = sphi 0, %s29
    %s33 = sphi 0, %s32
    %s49 = sphi 0, %s33
    %s55 = sphi 0, %s57
    %s58 = sphi 0, %s55
    %s59 = sphi 0, %s58
    %s75 = sphi 0, %s59
    %s79 = sphi 0, %s79
    %s81 = sphi 0, %s79
    %s82 = sphi 0, %s81
    %s96 = sphi 0, %s82
    %s100 = sphi 0, %s100
    %s102 = sphi 0, %s100
    %s103 = sphi 0, %s102
    %s117 = sphi 0, %s103
    %s121 = sphi 0, %s121
    %s123 = sphi 0, %s121
    %s124 = sphi 0, %s123
    %s138 = sphi 0, %s124
    %s142 = sphi 0, %s142
    %s144 = sphi 0, %s142
    %s145 = sphi 0, %s144
    %s159 = sphi 0, %s145
    %s163 = sphi 0, %s163
    %s165 = sphi 0, %s163
    %s166 = sphi 0, %s165
    %s180 = sphi 0, %s166
    %s184 = sphi 0, %s184
    %s186 = sphi 0, %s184
    %s187 = sphi 0, %s186
    %s201 = sphi 0, %s187
    %s205 = sphi 0, %s205
    %s207 = sphi 0, %s205
    %s208 = sphi 0, %s207
    %s222 = sphi 0, %s208
    %s228 = sphi 0, %s230
    %s231 = sphi 0, %s228
    %s232 = sphi 0, %s231
    %s248 = sphi 0, %s232
    %s254 = sphi 0, %s256
    %s257 = sphi 0, %s254
    %s258 = sphi 0, %s257
    %s274 = sphi 0, %s258
    %s280 = sphi 0, %s282
    %s283 = sphi 0, %s280
    %s284 = sphi 0, %s283
    %s300 = sphi 0, %s284
    %s306 = sphi 0, %s308
    %s309 = sphi 0, %s306
    %s310 = sphi 0, %s309
    %s326 = sphi 0, %s310
  $region4: #{dense_block_forward.5} parent=0 // loop_header_branch
    %22 = sbr.rel (%p20) target = $region8
  $region5: #{dense_block_forward.5} parent=0 // loop_body
    %s24 = ssub.s32 %s19, 1
    %s25 = ssub.s32 %s19, 2
    %s26 = sadd.s32 %s19, 1
    %s27 = ssub.s32 %s19, %s26
    %p28 = scmp.eq.s32.totalorder %s27, 0
    %s30 = sadd.s32 %s29, 1
    %s31 = scalar_select %p28, %s29, %s30
    %p34 = pneg %p28
    %p35 = scmp.eq.s32.totalorder %s19, 1
    %p36 = por %p34, %p35
    %p37 = scmp.ne.s32.totalorder %s29, %s32
    %p38 = scmp.eq.s32.totalorder %s19, 0
    %p39 = por %p37, %p38
    %p40 = scmp.ne.s32.totalorder %s29, %s32
    %p41 = scmp.eq.s32.totalorder %s24, 1
    %p42 = por %p40, %p41
    %p43 = scmp.ne.s32.totalorder %s32, %s33
    %p44 = scmp.eq.s32.totalorder %s24, 0
    %p45 = por %p43, %p44
    %p46 = scmp.ne.s32.totalorder %s32, %s33
    %p47 = scmp.eq.s32.totalorder %s25, 1
    %p48 = por %p46, %p47
    %p50 = scmp.ne.s32.totalorder %s33, %s49
    %p51 = scmp.eq.s32.totalorder %s25, 0
    %p52 = por %p50, %p51
    %s53 = ssub.s32 %s19, %s26
    %p54 = scmp.eq.s32.totalorder %s53, 0
    %s56 = sadd.s32 %s55, 1
    %s57 = scalar_select %p54, %s55, %s56
    %p60 = pneg %p54
    %p61 = scmp.eq.s32.totalorder %s19, 1
    %p62 = por %p60, %p61
    %p63 = scmp.ne.s32.totalorder %s55, %s58
    %p64 = scmp.eq.s32.totalorder %s19, 0
    %p65 = por %p63, %p64
    %p66 = scmp.ne.s32.totalorder %s55, %s58
    %p67 = scmp.eq.s32.totalorder %s24, 1
    %p68 = por %p66, %p67
    %p69 = scmp.ne.s32.totalorder %s58, %s59
    %p70 = scmp.eq.s32.totalorder %s24, 0
    %p71 = por %p69, %p70
    %p72 = scmp.ne.s32.totalorder %s58, %s59
    %p73 = scmp.eq.s32.totalorder %s25, 1
    %p74 = por %p72, %p73
    %p76 = scmp.ne.s32.totalorder %s59, %s75
    %p77 = scmp.eq.s32.totalorder %s25, 0
    %p78 = por %p76, %p77
    %s80 = sadd.s32 %s79, 1
    %p83 = scmp.eq.s32.totalorder %s19, 1
    %p84 = scmp.ne.s32.totalorder %s79, %s81
    %p85 = scmp.eq.s32.totalorder %s19, 0
    %p86 = por %p84, %p85
    %p87 = scmp.ne.s32.totalorder %s79, %s81
    %p88 = scmp.eq.s32.totalorder %s24, 1
    %p89 = por %p87, %p88
    %p90 = scmp.ne.s32.totalorder %s81, %s82
    %p91 = scmp.eq.s32.totalorder %s24, 0
    %p92 = por %p90, %p91
    %p93 = scmp.ne.s32.totalorder %s81, %s82
    %p94 = scmp.eq.s32.totalorder %s25, 1
    %p95 = por %p93, %p94
    %p97 = scmp.ne.s32.totalorder %s82, %s96
    %p98 = scmp.eq.s32.totalorder %s25, 0
    %p99 = por %p97, %p98
    %s101 = sadd.s32 %s100, 1
    %p104 = scmp.eq.s32.totalorder %s19, 1
    %p105 = scmp.ne.s32.totalorder %s100, %s102
    %p106 = scmp.eq.s32.totalorder %s19, 0
    %p107 = por %p105, %p106
    %p108 = scmp.ne.s32.totalorder %s100, %s102
    %p109 = scmp.eq.s32.totalorder %s24, 1
    %p110 = por %p108, %p109
    %p111 = scmp.ne.s32.totalorder %s102, %s103
    %p112 = scmp.eq.s32.totalorder %s24, 0
    %p113 = por %p111, %p112
    %p114 = scmp.ne.s32.totalorder %s102, %s103
    %p115 = scmp.eq.s32.totalorder %s25, 1
    %p116 = por %p114, %p115
    %p118 = scmp.ne.s32.totalorder %s103, %s117
    %p119 = scmp.eq.s32.totalorder %s25, 0
    %p120 = por %p118, %p119
    %s122 = sadd.s32 %s121, 1
    %p125 = scmp.eq.s32.totalorder %s19, 1
    %p126 = scmp.ne.s32.totalorder %s121, %s123
    %p127 = scmp.eq.s32.totalorder %s19, 0
    %p128 = por %p126, %p127
    %p129 = scmp.ne.s32.totalorder %s121, %s123
    %p130 = scmp.eq.s32.totalorder %s24, 1
    %p131 = por %p129, %p130
    %p132 = scmp.ne.s32.totalorder %s123, %s124
    %p133 = scmp.eq.s32.totalorder %s24, 0
    %p134 = por %p132, %p133
    %p135 = scmp.ne.s32.totalorder %s123, %s124
    %p136 = scmp.eq.s32.totalorder %s25, 1
    %p137 = por %p135, %p136
    %p139 = scmp.ne.s32.totalorder %s124, %s138
    %p140 = scmp.eq.s32.totalorder %s25, 0
    %p141 = por %p139, %p140
    %s143 = sadd.s32 %s142, 1
    %p146 = scmp.eq.s32.totalorder %s19, 1
    %p147 = scmp.ne.s32.totalorder %s142, %s144
    %p148 = scmp.eq.s32.totalorder %s19, 0
    %p149 = por %p147, %p148
    %p150 = scmp.ne.s32.totalorder %s142, %s144
    %p151 = scmp.eq.s32.totalorder %s24, 1
    %p152 = por %p150, %p151
    %p153 = scmp.ne.s32.totalorder %s144, %s145
    %p154 = scmp.eq.s32.totalorder %s24, 0
    %p155 = por %p153, %p154
    %p156 = scmp.ne.s32.totalorder %s144, %s145
    %p157 = scmp.eq.s32.totalorder %s25, 1
    %p158 = por %p156, %p157
    %p160 = scmp.ne.s32.totalorder %s145, %s159
    %p161 = scmp.eq.s32.totalorder %s25, 0
    %p162 = por %p160, %p161
    %s164 = sadd.s32 %s163, 1
    %p167 = scmp.eq.s32.totalorder %s19, 1
    %p168 = scmp.ne.s32.totalorder %s163, %s165
    %p169 = scmp.eq.s32.totalorder %s19, 0
    %p170 = por %p168, %p169
    %p171 = scmp.ne.s32.totalorder %s163, %s165
    %p172 = scmp.eq.s32.totalorder %s24, 1
    %p173 = por %p171, %p172
    %p174 = scmp.ne.s32.totalorder %s165, %s166
    %p175 = scmp.eq.s32.totalorder %s24, 0
    %p176 = por %p174, %p175
    %p177 = scmp.ne.s32.totalorder %s165, %s166
    %p178 = scmp.eq.s32.totalorder %s25, 1
    %p179 = por %p177, %p178
    %p181 = scmp.ne.s32.totalorder %s166, %s180
    %p182 = scmp.eq.s32.totalorder %s25, 0
    %p183 = por %p181, %p182
    %s185 = sadd.s32 %s184, 1
    %p188 = scmp.eq.s32.totalorder %s19, 1
    %p189 = scmp.ne.s32.totalorder %s184, %s186
    %p190 = scmp.eq.s32.totalorder %s19, 0
    %p191 = por %p189, %p190
    %p192 = scmp.ne.s32.totalorder %s184, %s186
    %p193 = scmp.eq.s32.totalorder %s24, 1
    %p194 = por %p192, %p193
    %p195 = scmp.ne.s32.totalorder %s186, %s187
    %p196 = scmp.eq.s32.totalorder %s24, 0
    %p197 = por %p195, %p196
    %p198 = scmp.ne.s32.totalorder %s186, %s187
    %p199 = scmp.eq.s32.totalorder %s25, 1
    %p200 = por %p198, %p199
    %p202 = scmp.ne.s32.totalorder %s187, %s201
    %p203 = scmp.eq.s32.totalorder %s25, 0
    %p204 = por %p202, %p203
    %s206 = sadd.s32 %s205, 1
    %p209 = scmp.eq.s32.totalorder %s19, 1
    %p210 = scmp.ne.s32.totalorder %s205, %s207
    %p211 = scmp.eq.s32.totalorder %s19, 0
    %p212 = por %p210, %p211
    %p213 = scmp.ne.s32.totalorder %s205, %s207
    %p214 = scmp.eq.s32.totalorder %s24, 1
    %p215 = por %p213, %p214
    %p216 = scmp.ne.s32.totalorder %s207, %s208
    %p217 = scmp.eq.s32.totalorder %s24, 0
    %p218 = por %p216, %p217
    %p219 = scmp.ne.s32.totalorder %s207, %s208
    %p220 = scmp.eq.s32.totalorder %s25, 1
    %p221 = por %p219, %p220
    %p223 = scmp.ne.s32.totalorder %s208, %s222
    %p224 = scmp.eq.s32.totalorder %s25, 0
    %p225 = por %p223, %p224
    %s226 = ssub.s32 %s19, %s26
    %p227 = scmp.eq.s32.totalorder %s226, 0
    %s229 = sadd.s32 %s228, 1
    %s230 = scalar_select %p227, %s228, %s229
    %p233 = pneg %p227
    %p234 = scmp.eq.s32.totalorder %s19, 1
    %p235 = por %p233, %p234
    %p236 = scmp.ne.s32.totalorder %s228, %s231
    %p237 = scmp.eq.s32.totalorder %s19, 0
    %p238 = por %p236, %p237
    %p239 = scmp.ne.s32.totalorder %s228, %s231
    %p240 = scmp.eq.s32.totalorder %s24, 1
    %p241 = por %p239, %p240
    %p242 = scmp.ne.s32.totalorder %s231, %s232
    %p243 = scmp.eq.s32.totalorder %s24, 0
    %p244 = por %p242, %p243
    %p245 = scmp.ne.s32.totalorder %s231, %s232
    %p246 = scmp.eq.s32.totalorder %s25, 1
    %p247 = por %p245, %p246
    %p249 = scmp.ne.s32.totalorder %s232, %s248
    %p250 = scmp.eq.s32.totalorder %s25, 0
    %p251 = por %p249, %p250
    %s252 = ssub.s32 %s19, %s26
    %p253 = scmp.eq.s32.totalorder %s252, 0
    %s255 = sadd.s32 %s254, 1
    %s256 = scalar_select %p253, %s254, %s255
    %p259 = pneg %p253
    %p260 = scmp.eq.s32.totalorder %s19, 1
    %p261 = por %p259, %p260
    %p262 = scmp.ne.s32.totalorder %s254, %s257
    %p263 = scmp.eq.s32.totalorder %s19, 0
    %p264 = por %p262, %p263
    %p265 = scmp.ne.s32.totalorder %s254, %s257
    %p266 = scmp.eq.s32.totalorder %s24, 1
    %p267 = por %p265, %p266
    %p268 = scmp.ne.s32.totalorder %s257, %s258
    %p269 = scmp.eq.s32.totalorder %s24, 0
    %p270 = por %p268, %p269
    %p271 = scmp.ne.s32.totalorder %s257, %s258
    %p272 = scmp.eq.s32.totalorder %s25, 1
    %p273 = por %p271, %p272
    %p275 = scmp.ne.s32.totalorder %s258, %s274
    %p276 = scmp.eq.s32.totalorder %s25, 0
    %p277 = por %p275, %p276
    %s278 = ssub.s32 %s19, %s26
    %p279 = scmp.eq.s32.totalorder %s278, 0
    %s281 = sadd.s32 %s280, 1
    %s282 = scalar_select %p279, %s280, %s281
    %p285 = pneg %p279
    %p286 = scmp.eq.s32.totalorder %s19, 1
    %p287 = por %p285, %p286
    %p288 = scmp.ne.s32.totalorder %s280, %s283
    %p289 = scmp.eq.s32.totalorder %s19, 0
    %p290 = por %p288, %p289
    %p291 = scmp.ne.s32.totalorder %s280, %s283
    %p292 = scmp.eq.s32.totalorder %s24, 1
    %p293 = por %p291, %p292
    %p294 = scmp.ne.s32.totalorder %s283, %s284
    %p295 = scmp.eq.s32.totalorder %s24, 0
    %p296 = por %p294, %p295
    %p297 = scmp.ne.s32.totalorder %s283, %s284
    %p298 = scmp.eq.s32.totalorder %s25, 1
    %p299 = por %p297, %p298
    %p301 = scmp.ne.s32.totalorder %s284, %s300
    %p302 = scmp.eq.s32.totalorder %s25, 0
    %p303 = por %p301, %p302
    %s304 = ssub.s32 %s19, %s26
    %p305 = scmp.eq.s32.totalorder %s304, 0
    %s307 = sadd.s32 %s306, 1
    %s308 = scalar_select %p305, %s306, %s307
    %p311 = pneg %p305
    %p312 = scmp.eq.s32.totalorder %s19, 1
    %p313 = por %p311, %p312
    %p314 = scmp.ne.s32.totalorder %s306, %s309
    %p315 = scmp.eq.s32.totalorder %s19, 0
    %p316 = por %p314, %p315
    %p317 = scmp.ne.s32.totalorder %s306, %s309
    %p318 = scmp.eq.s32.totalorder %s24, 1
    %p319 = por %p317, %p318
    %p320 = scmp.ne.s32.totalorder %s309, %s310
    %p321 = scmp.eq.s32.totalorder %s24, 0
    %p322 = por %p320, %p321
    %p323 = scmp.ne.s32.totalorder %s309, %s310
    %p324 = scmp.eq.s32.totalorder %s25, 1
    %p325 = por %p323, %p324
    %p327 = scmp.ne.s32.totalorder %s310, %s326
    %p328 = scmp.eq.s32.totalorder %s25, 0
    %p329 = por %p327, %p328
    %p330 = scmp.le.s32.totalorder 1, %s19
    %p331 = scmp.lt.s32.totalorder %s19, 3
    %p332 = pnand %p330, %p331
    %p333 = pneg %p332
    // Predicated region
    $region9: #{dense_block_forward.5} parent=5 // pred_check
      _
    $region10: #{dense_block_forward.5} parent=5 // pred_check_branch
      %335 = sbr.rel (%p332) target = $region12
    $region11: #{dense_block_forward.5} parent=5 // pred_region
      %s336 = ssub.s32 %s19, 1
      // Predicated region
      $region13: #{dense_block_forward.5} parent=11 // pred_check
        %p337 = pneg %p92
      $region14: #{dense_block_forward.5} parent=11 // pred_check_branch
        %339 = sbr.rel (%p337) target = $region16
      $region15: #{dense_block_forward.5} parent=11 // pred_region
        _
      $region16: #{dense_block_forward.5} parent=11 // pred_fallthru
        _
      // Predicated region
      $region17: #{dense_block_forward.5} parent=11 // pred_check
        %p340 = pneg %p113
      $region18: #{dense_block_forward.5} parent=11 // pred_check_branch
        %342 = sbr.rel (%p340) target = $region20
      $region19: #{dense_block_forward.5} parent=11 // pred_region
        _
      $region20: #{dense_block_forward.5} parent=11 // pred_fallthru
        _
      // Predicated region
      $region21: #{dense_block_forward.5} parent=11 // pred_check
        %p343 = pneg %p134
      $region22: #{dense_block_forward.5} parent=11 // pred_check_branch
        %345 = sbr.rel (%p343) target = $region24
      $region23: #{dense_block_forward.5} parent=11 // pred_region
        _
      $region24: #{dense_block_forward.5} parent=11 // pred_fallthru
        _
      // Predicated region
      $region25: #{dense_block_forward.5} parent=11 // pred_check
        %p346 = pneg %p155
      $region26: #{dense_block_forward.5} parent=11 // pred_check_branch
        %348 = sbr.rel (%p346) target = $region28
      $region27: #{dense_block_forward.5} parent=11 // pred_region
        _
      $region28: #{dense_block_forward.5} parent=11 // pred_fallthru
        _
      // Predicated region
      $region29: #{dense_block_forward.5} parent=11 // pred_check
        %p349 = pneg %p176
      $region30: #{dense_block_forward.5} parent=11 // pred_check_branch
        %351 = sbr.rel (%p349) target = $region32
      $region31: #{dense_block_forward.5} parent=11 // pred_region
        _
      $region32: #{dense_block_forward.5} parent=11 // pred_fallthru
        _
      // Predicated region
      $region33: #{dense_block_forward.5} parent=11 // pred_check
        %p352 = pneg %p197
      $region34: #{dense_block_forward.5} parent=11 // pred_check_branch
        %354 = sbr.rel (%p352) target = $region36
      $region35: #{dense_block_forward.5} parent=11 // pred_region
        _
      $region36: #{dense_block_forward.5} parent=11 // pred_fallthru
        _
      // Predicated region
      $region37: #{dense_block_forward.5} parent=11 // pred_check
        %p355 = pneg %p218
      $region38: #{dense_block_forward.5} parent=11 // pred_check_branch
        %357 = sbr.rel (%p355) target = $region40
      $region39: #{dense_block_forward.5} parent=11 // pred_region
        _
      $region40: #{dense_block_forward.5} parent=11 // pred_fallthru
        _
    $region12: #{dense_block_forward.5} parent=5 // pred_fallthru
      _
    %p358 = scmp.lt.s32.totalorder %s19, 2
    // Predicated region
    $region41: #{dense_block_forward.5} parent=5 // pred_check
      %p359 = pneg %p358
    $region42: #{dense_block_forward.5} parent=5 // pred_check_branch
      %361 = sbr.rel (%p359) target = $region44
    $region43: #{dense_block_forward.5} parent=5 // pred_region
      // Predicated region
      $region45: #{dense_block_forward.5} parent=43 // pred_check
        %p362 = pneg %p39
      $region46: #{dense_block_forward.5} parent=43 // pred_check_branch
        %364 = sbr.rel (%p362) target = $region48
      $region47: #{dense_block_forward.5} parent=43 // pred_region
        %p365 = scmp.lt.s32.totalorder %s19, 1
        %s366 = scalar_select %p365, %s19, 1
        %s367 = smul.addr %s366, 3
        %s368 = smul.addr %s367, 4
        %s369 = scalar_lea.vmem %s0, %s368
      $region48: #{dense_block_forward.5} parent=43 // pred_fallthru
        _
      // Predicated region
      $region49: #{dense_block_forward.5} parent=43 // pred_check
        %p370 = pneg %p65
      $region50: #{dense_block_forward.5} parent=43 // pred_check_branch
        %372 = sbr.rel (%p370) target = $region52
      $region51: #{dense_block_forward.5} parent=43 // pred_region
        %p373 = scmp.lt.s32.totalorder %s19, 1
        %s374 = scalar_select %p373, %s19, 1
        %s375 = smul.addr %s374, 2
        %s376 = smul.addr %s375, 8
        %s377 = scalar_lea.vmem %s1, %s376
      $region52: #{dense_block_forward.5} parent=43 // pred_fallthru
        _
    $region44: #{dense_block_forward.5} parent=5 // pred_fallthru
      _
    %p378 = scmp.le.s32.totalorder 1, %s19
    %p379 = scmp.lt.s32.totalorder %s19, 3
    %p380 = pnand %p378, %p379
    %p381 = pneg %p380
    // Predicated region
    $region53: #{dense_block_forward.5} parent=5 // pred_check
      _
    $region54: #{dense_block_forward.5} parent=5 // pred_check_branch
      %383 = sbr.rel (%p380) target = $region56
    $region55: #{dense_block_forward.5} parent=5 // pred_region
      %s384 = ssub.s32 %s19, 1
      %p385 = scmp.lt.s32.totalorder %s24, 1
      %s386 = scalar_select %p385, %s24, 1
      %s387 = smul.addr %s386, 3
      %s388 = smul.addr %s387, 4
      %s389 = scalar_lea.vmem %s0, %s388
      %p390 = pneg %p45
      %p391 = pneg %p42
      %p392 = scmp.lt.s32.totalorder %s24, 1
      %s393 = scalar_select %p392, %s24, 1
      %s394 = smul.addr %s393, 2
      %s395 = smul.addr %s394, 8
      %s396 = scalar_lea.vmem %s1, %s395
      %p397 = pneg %p71
      %p398 = pneg %p68
      %p399 = pneg %p92
      %p400 = pneg %p89
      %p401 = pneg %p113
      %p402 = pneg %p110
      %p403 = pneg %p134
      %p404 = pneg %p131
      %p405 = pneg %p155
      %p406 = pneg %p152
      %p407 = pneg %p176
      %p408 = pneg %p173
      %p409 = pneg %p197
      %p410 = pneg %p194
      %p411 = pneg %p218
      %p412 = pneg %p215
      %p413 = pneg %p244
      %p414 = pneg %p241
      %p415 = scmp.lt.s32.totalorder %s24, 1
      %s416 = scalar_select %p415, %s24, 1
      %s417 = smul.addr %s416, 2
      %s418 = smul.addr %s417, 8
      %s419 = scalar_lea.vmem %s9, %s418
      %p420 = pneg %p270
      %p421 = pneg %p267
      %p422 = scmp.lt.s32.totalorder %s24, 1
      %s423 = scalar_select %p422, %s24, 1
      %s424 = scalar_lea.vmem %s10, %s423
      %p425 = pneg %p296
      %p426 = pneg %p293
      %p427 = scmp.lt.s32.totalorder %s24, 1
      %s428 = scalar_select %p427, %s24, 1
      %s429 = scalar_lea.vmem %s11, %s428
      %p430 = pneg %p322
      %p431 = pneg %p319
      %p432 = scmp.lt.s32.totalorder %s24, 1
      %s433 = scalar_select %p432, %s24, 1
      %s434 = smul.addr %s433, 3
      %s435 = smul.addr %s434, 4
      %s436 = scalar_lea.vmem %s12, %s435
      %p437 = scmp.lt.s32.totalorder %s24, 1
      %s438 = scalar_select %p437, %s24, 1
      %s439 = smul.addr %s438, 3
      %s440 = smul.addr %s439, 4
      %s441 = scalar_lea.vmem %s0, %s440
      %p442 = scmp.lt.s32.totalorder %s24, 1
      %s443 = scalar_select %p442, %s24, 1
      %s444 = smul.addr %s443, 2
      %s445 = smul.addr %s444, 8
      %s446 = scalar_lea.vmem %s1, %s445
      %p447 = scmp.lt.s32.totalorder %s24, 1
      %s448 = scalar_select %p447, %s24, 1
      %s449 = smul.addr %s448, 2
      %s450 = smul.addr %s449, 8
      %s451 = scalar_lea.vmem %s9, %s450
      %p452 = scmp.lt.s32.totalorder %s24, 1
      %s453 = scalar_select %p452, %s24, 1
      %s454 = scalar_lea.vmem %s10, %s453
      %p455 = scmp.lt.s32.totalorder %s24, 1
      %s456 = scalar_select %p455, %s24, 1
      %s457 = scalar_lea.vmem %s11, %s456
      %p458 = scmp.lt.s32.totalorder %s24, 1
      %s459 = scalar_select %p458, %s24, 1
      %s460 = smul.addr %s459, 3
      %s461 = smul.addr %s460, 4
      %s462 = scalar_lea.vmem %s12, %s461
      %v464 = vld [vmem:[%s441] sm:$0xf]
      %v465 = vld [vmem:[%s441 + $0x4] sm:$0xf]
      %v466 = vld [vmem:[%s441 + $0x8] sm:$0x1]
      %v467 = vld [vmem:[%s7] sm:$0xf]
      %v468 = vld [vmem:[%s7 + $0x4] sm:$0xf]
      %v469 = vld [vmem:[%s7 + $0x8] sm:$0xf]
      %v470 = vld [vmem:[%s7 + $0xc] sm:$0xf]
      %v471 = vld [vmem:[%s7 + $0x10] sm:$0xf]
      %v472 = vld [vmem:[%s7 + $0x14] sm:$0xf]
      %v473 = vld [vmem:[%s7 + $0x18] sm:$0xf]
      %v474 = vld [vmem:[%s7 + $0x1c] sm:$0xf]
      %v478 = vunpack.c.l.b16 %v464
      %v479 = vunpack.c.l.b16 %v465
      %v480 = vunpack.c.l.b16 %v466
      %v481 = vpack.c.b16 %v479, %v478
      %v482 = vpack.c.b16 %v480, %v480
      %v491 = vunpack.c.l.b16 %v467
      %v492 = vunpack.c.l.b16 %v468
      %v493 = vunpack.c.l.b16 %v469
      %v494 = vunpack.c.l.b16 %v470
      %v495 = vunpack.c.l.b16 %v471
      %v496 = vunpack.c.l.b16 %v472
      %v497 = vunpack.c.l.b16 %v473
      %v498 = vunpack.c.l.b16 %v474
      %v499 = vpack.c.b16 %v492, %v491
      %v500 = vpack.c.b16 %v494, %v493
      %v501 = vpack.c.b16 %v496, %v495
      %v502 = vpack.c.b16 %v498, %v497
      %vm507 = vcmask 523264
      %v509 = vsel %vm507, %v481, 0
      %v512 = vsel %vm507, %v482, 0
      %514 = vmatpush.bf16.msra.mxu0 0
      %515 = vmatpush.bf16.msra.mxu0 0
      %516 = vmatpush.bf16.msra.mxu0 0
      %517 = vmatpush.bf16.msra.mxu0 0
      %518 = vmatpush.bf16.msra.mxu0 %v502
      %519 = vmatpush.bf16.msra.mxu0 %v501
      %520 = vmatpush.bf16.msra.mxu0 %v500
      %521 = vmatpush.bf16.msra.mxu0 %v499
      %522 = vmatmul.bf16.gmra.mxu0 %v509
      %v523 = vpop.f32.mrf.mxu0
      %v524 = vadd.f32 0.0, %v523
      %v525 = vpop.f32.mrf.mxu0
      %v526 = vadd.f32 0.0, %v525
      %527 = vmatmul.bf16.gmra.mxu0 %v512
      %v528 = vpop.f32.mrf.mxu0
      %v529 = vpop.f32.mrf.mxu0
      %530 = vdwg.mxu0
      %v531 = vadd.f32 %v524, 0.0
      %v532 = vadd.f32 %v526, 0.0
      %s533 = scalar_lea.vmem %s7, 32
      %v534 = vld [vmem:[%s533] sm:$0xf]
      %v535 = vld [vmem:[%s533 + $0x4] sm:$0xf]
      %v536 = vld [vmem:[%s533 + $0x8] sm:$0xf]
      %v537 = vld [vmem:[%s533 + $0xc] sm:$0xf]
      %v538 = vld [vmem:[%s533 + $0x10] sm:$0xf]
      %v539 = vld [vmem:[%s533 + $0x14] sm:$0xf]
      %v540 = vld [vmem:[%s533 + $0x18] sm:$0xf]
      %v541 = vld [vmem:[%s533 + $0x1c] sm:$0xf]
      %v550 = vunpack.c.l.b16 %v534
      %v551 = vunpack.c.l.b16 %v535
      %v552 = vunpack.c.l.b16 %v536
      %v553 = vunpack.c.l.b16 %v537
      %v554 = vunpack.c.l.b16 %v538
      %v555 = vunpack.c.l.b16 %v539
      %v556 = vunpack.c.l.b16 %v540
      %v557 = vunpack.c.l.b16 %v541
      %v558 = vpack.c.b16 %v551, %v550
      %v559 = vpack.c.b16 %v553, %v552
      %v560 = vpack.c.b16 %v555, %v554
      %v561 = vpack.c.b16 %v557, %v556
      %566 = vmatpush.bf16.msra.mxu0 0
      %567 = vmatpush.bf16.msra.mxu0 0
      %568 = vmatpush.bf16.msra.mxu0 0
      %569 = vmatpush.bf16.msra.mxu0 0
      %570 = vmatpush.bf16.msra.mxu0 %v561
      %571 = vmatpush.bf16.msra.mxu0 %v560
      %572 = vmatpush.bf16.msra.mxu0 %v559
      %573 = vmatpush.bf16.msra.mxu0 %v558
      %574 = vmatmul.bf16.gmra.mxu0 %v509
      %v575 = vpop.f32.mrf.mxu0
      %v576 = vadd.f32 0.0, %v575
      %v577 = vpop.f32.mrf.mxu0
      %v578 = vadd.f32 0.0, %v577
      %579 = vmatmul.bf16.gmra.mxu0 %v512
      %v580 = vpop.f32.mrf.mxu0
      %v581 = vadd.f32 0.0, %v580
      %v582 = vpop.f32.mrf.mxu0
      %583 = vdwg.mxu0
      %vm587 = vcmask 1046528
      %v588 = vrot.slane %v576, 1
      %v589 = vrot.slane %v578, 1
      %v590 = vsel %vm587, %v588, %v589
      %v591 = vrot.slane %v581, 1
      %v592 = vsel %vm587, %v589, %v591
      %v595 = vadd.f32 %v531, %v590
      %v596 = vadd.f32 %v532, %v592
      %s597 = scalar_lea.vmem %s7, 64
      %v598 = vld [vmem:[%s597] sm:$0xf]
      %v599 = vld [vmem:[%s597 + $0x4] sm:$0xf]
      %v600 = vld [vmem:[%s597 + $0x8] sm:$0xf]
      %v601 = vld [vmem:[%s597 + $0xc] sm:$0xf]
      %v602 = vld [vmem:[%s597 + $0x10] sm:$0xf]
      %v603 = vld [vmem:[%s597 + $0x14] sm:$0xf]
      %v604 = vld [vmem:[%s597 + $0x18] sm:$0xf]
      %v605 = vld [vmem:[%s597 + $0x1c] sm:$0xf]
      %v614 = vunpack.c.l.b16 %v598
      %v615 = vunpack.c.l.b16 %v599
      %v616 = vunpack.c.l.b16 %v600
      %v617 = vunpack.c.l.b16 %v601
      %v618 = vunpack.c.l.b16 %v602
      %v619 = vunpack.c.l.b16 %v603
      %v620 = vunpack.c.l.b16 %v604
      %v621 = vunpack.c.l.b16 %v605
      %v622 = vpack.c.b16 %v615, %v614
      %v623 = vpack.c.b16 %v617, %v616
      %v624 = vpack.c.b16 %v619, %v618
      %v625 = vpack.c.b16 %v621, %v620
      %630 = vmatpush.bf16.msra.mxu0 0
      %631 = vmatpush.bf16.msra.mxu0 0
      %632 = vmatpush.bf16.msra.mxu0 0
      %633 = vmatpush.bf16.msra.mxu0 0
      %634 = vmatpush.bf16.msra.mxu0 %v625
      %635 = vmatpush.bf16.msra.mxu0 %v624
      %636 = vmatpush.bf16.msra.mxu0 %v623
      %637 = vmatpush.bf16.msra.mxu0 %v622
      %638 = vmatmul.bf16.gmra.mxu0 %v509
      %v639 = vpop.f32.mrf.mxu0
      %v640 = vadd.f32 0.0, %v639
      %v641 = vpop.f32.mrf.mxu0
      %v642 = vadd.f32 0.0, %v641
      %643 = vmatmul.bf16.gmra.mxu0 %v512
      %v644 = vpop.f32.mrf.mxu0
      %v645 = vadd.f32 0.0, %v644
      %v646 = vpop.f32.mrf.mxu0
      %647 = vdwg.mxu0
      %vm651 = vcmask 1045504
      %v652 = vrot.slane %v640, 2
      %v653 = vrot.slane %v642, 2
      %v654 = vsel %vm651, %v652, %v653
      %v655 = vrot.slane %v645, 2
      %v656 = vsel %vm651, %v653, %v655
      %v659 = vadd.f32 %v595, %v654
      %v660 = vadd.f32 %v596, %v656
      %v661 = vld [vmem:[%s2] sm:$0x1]
      %v662 = vld [vmem:[%s2 + $0x1] sm:$0x1]
      %v663 = vld [vmem:[%s3] sm:$0x1]
      %v664 = vld [vmem:[%s3 + $0x1] sm:$0x1]
      %v665 = vld [vmem:[%s4] sm:$0x1]
      %v666 = vld [vmem:[%s5] sm:$0x1]
      %v667 = vld [vmem:[%s6] sm:$0xff]
      %v668 = vld [vmem:[%s6 + $0x8] sm:$0xff]
      %v669 = vld [vmem:[%s6 + $0x10] sm:$0xff]
      %v670 = vld [vmem:[%s6 + $0x18] sm:$0xff]
      %v671 = vld [vmem:[%s6 + $0x20] sm:$0xff]
      %v672 = vld [vmem:[%s6 + $0x28] sm:$0xff]
      %v673 = vld [vmem:[%s6 + $0x30] sm:$0xff]
      %v674 = vld [vmem:[%s6 + $0x38] sm:$0xff]
      %677 = vst [vmem:[#allocation1] ss:$9 sm:$0xff] %v661
      %s678 = scalar_lea.vmem [#allocation1], 1
      %679 = vst [vmem:[%s678] ss:$9 sm:$0xff] %v662
      %v680 = vld [vmem:[#allocation1] sm:$0xff]
      %vm682 = vcmask 517120
      %v683 = vsel %vm682, %v680, 0.0
      %v684 = vrot.slane %v683, 4
      %v685 = vadd.f32 %v683, %v684
      %v686 = vrot.slane %v685, 2
      %v687 = vadd.f32 %v685, %v686
      %v688 = vrot.slane %v687, 1
      %v689 = vadd.f32 %v687, %v688
      %v690 = vmul.f32 %v661, %v661
      %v691 = vmul.f32 %v662, %v662
      %694 = vst [vmem:[#allocation1] ss:$9 sm:$0xff] %v690
      %s695 = scalar_lea.vmem [#allocation1], 1
      %696 = vst [vmem:[%s695] ss:$9 sm:$0xff] %v691
      %v697 = vld [vmem:[#allocation1] sm:$0xff]
      %v699 = vsel %vm682, %v697, 0.0
      %v700 = vrot.slane %v699, 4
      %v701 = vadd.f32 %v699, %v700
      %v702 = vrot.slane %v701, 2
      %v703 = vadd.f32 %v701, %v702
      %v704 = vrot.slane %v703, 1
      %v705 = vadd.f32 %v703, %v704
      %708 = vst [vmem:[#allocation1] ss:$9 sm:$0xff] %v663
      %s709 = scalar_lea.vmem [#allocation1], 1
      %710 = vst [vmem:[%s709] ss:$9 sm:$0xff] %v664
      %v711 = vld [vmem:[#allocation1] sm:$0xff]
      %v713 = vsel %vm682, %v711, 0.0
      %v714 = vrot.slane %v713, 4
      %v715 = vadd.f32 %v713, %v714
      %v716 = vrot.slane %v715, 2
      %v717 = vadd.f32 %v715, %v716
      %v718 = vrot.slane %v717, 1
      %v719 = vadd.f32 %v717, %v718
      %v721 = vsel %vm507, %v689, 0
      %723 = vmatpush.msra.mxu0 0.0
      %724 = vmatpush.msra.mxu0 0.0
      %725 = vmatpush.msra.mxu0 0.0
      %726 = vmatpush.msra.mxu0 0.0
      %727 = vmatpush.msra.mxu0 0.0
      %728 = vmatpush.msra.mxu0 0.0
      %729 = vmatpush.msra.mxu0 0.0
      %730 = vmatpush.msra.mxu0 0.0
      %731 = vmatpush.msra.mxu0 %v674
      %732 = vmatpush.msra.mxu0 %v673
      %733 = vmatpush.msra.mxu0 %v672
      %734 = vmatpush.msra.mxu0 %v671
      %735 = vmatpush.msra.mxu0 %v670
      %736 = vmatpush.msra.mxu0 %v669
      %737 = vmatpush.msra.mxu0 %v668
      %738 = vmatpush.msra.mxu0 %v667
      %739 = vmatmul.f32.gmra.mxu0 %v721
      %v740 = vpop.f32.mrf.mxu0
      %v741 = vadd.f32 0.0, %v740
      %742 = vdwg.mxu0
      %v744 = vsel %vm507, %v705, 0
      %746 = vmatpush.msra.mxu0 0.0
      %747 = vmatpush.msra.mxu0 0.0
      %748 = vmatpush.msra.mxu0 0.0
      %749 = vmatpush.msra.mxu0 0.0
      %750 = vmatpush.msra.mxu0 0.0
      %751 = vmatpush.msra.mxu0 0.0
      %752 = vmatpush.msra.mxu0 0.0
      %753 = vmatpush.msra.mxu0 0.0
      %754 = vmatpush.msra.mxu0 %v674
      %755 = vmatpush.msra.mxu0 %v673
      %756 = vmatpush.msra.mxu0 %v672
      %757 = vmatpush.msra.mxu0 %v671
      %758 = vmatpush.msra.mxu0 %v670
      %759 = vmatpush.msra.mxu0 %v669
      %760 = vmatpush.msra.mxu0 %v668
      %761 = vmatpush.msra.mxu0 %v667
      %762 = vmatmul.f32.gmra.mxu0 %v744
      %v763 = vpop.f32.mrf.mxu0
      %v764 = vadd.f32 0.0, %v763
      %765 = vdwg.mxu0
      %v766 = vmul.f32 %v741, 0.001953125
      %v767 = vmul.f32 %v764, 0.0625
      %v769 = vsel %vm507, %v719, 0
      %771 = vmatpush.msra.mxu0 0.0
      %772 = vmatpush.msra.mxu0 0.0
      %773 = vmatpush.msra.mxu0 0.0
      %774 = vmatpush.msra.mxu0 0.0
      %775 = vmatpush.msra.mxu0 0.0
      %776 = vmatpush.msra.mxu0 0.0
      %777 = vmatpush.msra.mxu0 0.0
      %778 = vmatpush.msra.mxu0 0.0
      %779 = vmatpush.msra.mxu0 %v674
      %780 = vmatpush.msra.mxu0 %v673
      %781 = vmatpush.msra.mxu0 %v672
      %782 = vmatpush.msra.mxu0 %v671
      %783 = vmatpush.msra.mxu0 %v670
      %784 = vmatpush.msra.mxu0 %v669
      %785 = vmatpush.msra.mxu0 %v668
      %786 = vmatpush.msra.mxu0 %v667
      %787 = vmatmul.f32.gmra.mxu0 %v769
      %v788 = vpop.f32.mrf.mxu0
      %v789 = vadd.f32 %v767, %v788
      %790 = vdwg.mxu0
      %v791 = vmul.f32 %v741, %v766
      %v792 = vsub.f32 %v789, %v791
      %v793 = vmul.f32 %v792, 0.001953125
      %v794 = vmax.f32 %v793, 0.0
      %v795 = vadd.f32 %v794, 1e-05
      %v796 = vrsqrt.pop %v795
      %v797 = vmul.f32 %v796, %v795
      %v798 = vmul.f32 %v797, %v796
      %v799 = vmul.f32 0.5, %v798
      %v800 = vsub.f32 1.5, %v799
      %v801 = vmul.f32 %v796, %v800
      %vm802 = vweird.f32 %v795
      %vm803 = vweird.f32 %v796
      %vm804 = vmor %vm802, %vm803
      %v805 = vsel %vm804, %v796, %v801
      %v806 = vmul.f32 %v665, %v805
      %v807 = vmul.f32 %v766, %v806
      %v808 = vsub.f32 %v666, %v807
      %v809 = vld [vmem:[%s446] sm:$0xff]
      %v810 = vld [vmem:[%s446 + $0x8] sm:$0xff]
      %v812 = vperm.slane %v806, 0
      %v814 = vmul.f32 %v809, %v812
      %v815 = vmul.f32 %v810, %v812
      %v817 = vperm.slane %v808, 0
      %v819 = vadd.f32 %v814, %v817
      %v820 = vadd.f32 %v815, %v817
      %vm821 = vcmp.gt.f32.partialorder %v819, 0.0
      %vm822 = vcmp.gt.f32.partialorder %v820, 0.0
      %v823 = vmul.f32 %v819, 0.2
      %v824 = vmul.f32 %v820, 0.2
      %v825 = vsel %vm821, %v819, %v823
      %v826 = vsel %vm822, %v820, %v824
      %vm829 = vcmask 1040384
      %v830 = vrot.slane %v825, 7
      %v831 = vrot.slane %v826, 7
      %v832 = vsel %vm829, %v830, %v831
      %v836 = vsel %vm829, 0.0, %v830
      %v837 = vsel %vm829, %v831, 0.0
      %v838 = vpack.c.bf16 %v836, %v836
      %v839 = vpack.c.bf16 %v832, %v832
      %v840 = vpack.c.bf16 %v837, %v837
      %vm841 = vcmask 519168
      %842 = vst.msk [vmem:[%s462] sm:$0xf] %vm841, %v838
      %843 = vst.msk [vmem:[%s462 + $0x4] sm:$0xf] %vm841, %v839
      %vm844 = vcmask 516096
      %845 = vst.msk [vmem:[%s462 + $0x8] sm:$0x1] %vm844, %v840
      %s846 = scalar_lea.vmem %s7, 96
      %v847 = vld [vmem:[%s846] sm:$0xf]
      %v848 = vld [vmem:[%s846 + $0x4] sm:$0xf]
      %v849 = vld [vmem:[%s846 + $0x8] sm:$0xf]
      %v850 = vld [vmem:[%s846 + $0xc] sm:$0xf]
      %v851 = vld [vmem:[%s846 + $0x10] sm:$0xf]
      %v852 = vld [vmem:[%s846 + $0x14] sm:$0xf]
      %v853 = vld [vmem:[%s846 + $0x18] sm:$0xf]
      %v854 = vld [vmem:[%s846 + $0x1c] sm:$0xf]
      %v858 = vunpack.c.l.b16 %v838
      %v859 = vunpack.c.l.b16 %v839
      %v860 = vunpack.c.l.b16 %v840
      %v861 = vpack.c.b16 %v859, %v858
      %v862 = vpack.c.b16 %v860, %v860
      %v871 = vunpack.c.l.b16 %v847
      %v872 = vunpack.c.l.b16 %v848
      %v873 = vunpack.c.l.b16 %v849
      %v874 = vunpack.c.l.b16 %v850
      %v875 = vunpack.c.l.b16 %v851
      %v876 = vunpack.c.l.b16 %v852
      %v877 = vunpack.c.l.b16 %v853
      %v878 = vunpack.c.l.b16 %v854
      %v879 = vpack.c.b16 %v872, %v871
      %v880 = vpack.c.b16 %v874, %v873
      %v881 = vpack.c.b16 %v876, %v875
      %v882 = vpack.c.b16 %v878, %v877
      %v888 = vsel %vm507, %v861, 0
      %v891 = vsel %vm507, %v862, 0
      %893 = vmatpush.bf16.msra.mxu0 0
      %894 = vmatpush.bf16.msra.mxu0 0
      %895 = vmatpush.bf16.msra.mxu0 0
      %896 = vmatpush.bf16.msra.mxu0 0
      %897 = vmatpush.bf16.msra.mxu0 %v882
      %898 = vmatpush.bf16.msra.mxu0 %v881
      %899 = vmatpush.bf16.msra.mxu0 %v880
      %900 = vmatpush.bf16.msra.mxu0 %v879
      %901 = vmatmul.bf16.gmra.mxu0 %v888
      %v902 = vpop.f32.mrf.mxu0
      %v903 = vadd.f32 0.0, %v902
      %v904 = vpop.f32.mrf.mxu0
      %v905 = vadd.f32 0.0, %v904
      %906 = vmatmul.bf16.gmra.mxu0 %v891
      %v907 = vpop.f32.mrf.mxu0
      %v908 = vpop.f32.mrf.mxu0
      %909 = vdwg.mxu0
      %v910 = vadd.f32 %v659, %v903
      %v911 = vadd.f32 %v660, %v905
      %s912 = scalar_lea.vmem %s7, 128
      %v913 = vld [vmem:[%s912] sm:$0xf]
      %v914 = vld [vmem:[%s912 + $0x4] sm:$0xf]
      %v915 = vld [vmem:[%s912 + $0x8] sm:$0xf]
      %v916 = vld [vmem:[%s912 + $0xc] sm:$0xf]
      %v917 = vld [vmem:[%s912 + $0x10] sm:$0xf]
      %v918 = vld [vmem:[%s912 + $0x14] sm:$0xf]
      %v919 = vld [vmem:[%s912 + $0x18] sm:$0xf]
      %v920 = vld [vmem:[%s912 + $0x1c] sm:$0xf]
      %v929 = vunpack.c.l.b16 %v913
      %v930 = vunpack.c.l.b16 %v914
      %v931 = vunpack.c.l.b16 %v915
      %v932 = vunpack.c.l.b16 %v916
      %v933 = vunpack.c.l.b16 %v917
      %v934 = vunpack.c.l.b16 %v918
      %v935 = vunpack.c.l.b16 %v919
      %v936 = vunpack.c.l.b16 %v920
      %v937 = vpack.c.b16 %v930, %v929
      %v938 = vpack.c.b16 %v932, %v931
      %v939 = vpack.c.b16 %v934, %v933
      %v940 = vpack.c.b16 %v936, %v935
      %945 = vmatpush.bf16.msra.mxu0 0
      %946 = vmatpush.bf16.msra.mxu0 0
      %947 = vmatpush.bf16.msra.mxu0 0
      %948 = vmatpush.bf16.msra.mxu0 0
      %949 = vmatpush.bf16.msra.mxu0 %v940
      %950 = vmatpush.bf16.msra.mxu0 %v939
      %951 = vmatpush.bf16.msra.mxu0 %v938
      %952 = vmatpush.bf16.msra.mxu0 %v937
      %953 = vmatmul.bf16.gmra.mxu0 %v888
      %v954 = vpop.f32.mrf.mxu0
      %v955 = vadd.f32 0.0, %v954
      %v956 = vpop.f32.mrf.mxu0
      %v957 = vadd.f32 0.0, %v956
      %958 = vmatmul.bf16.gmra.mxu0 %v891
      %v959 = vpop.f32.mrf.mxu0
      %v960 = vadd.f32 0.0, %v959
      %v961 = vpop.f32.mrf.mxu0
      %962 = vdwg.mxu0
      %v966 = vrot.slane %v955, 1
      %v967 = vrot.slane %v957, 1
      %v968 = vsel %vm587, %v966, %v967
      %v969 = vrot.slane %v960, 1
      %v970 = vsel %vm587, %v967, %v969
      %v973 = vadd.f32 %v910, %v968
      %v974 = vadd.f32 %v911, %v970
      %s975 = scalar_lea.vmem %s7, 160
      %v976 = vld [vmem:[%s975] sm:$0xf]
      %v977 = vld [vmem:[%s975 + $0x4] sm:$0xf]
      %v978 = vld [vmem:[%s975 + $0x8] sm:$0xf]
      %v979 = vld [vmem:[%s975 + $0xc] sm:$0xf]
      %v980 = vld [vmem:[%s975 + $0x10] sm:$0xf]
      %v981 = vld [vmem:[%s975 + $0x14] sm:$0xf]
      %v982 = vld [vmem:[%s975 + $0x18] sm:$0xf]
      %v983 = vld [vmem:[%s975 + $0x1c] sm:$0xf]
      %v992 = vunpack.c.l.b16 %v976
      %v993 = vunpack.c.l.b16 %v977
      %v994 = vunpack.c.l.b16 %v978
      %v995 = vunpack.c.l.b16 %v979
      %v996 = vunpack.c.l.b16 %v980
      %v997 = vunpack.c.l.b16 %v981
      %v998 = vunpack.c.l.b16 %v982
      %v999 = vunpack.c.l.b16 %v983
      %v1000 = vpack.c.b16 %v993, %v992
      %v1001 = vpack.c.b16 %v995, %v994
      %v1002 = vpack.c.b16 %v997, %v996
      %v1003 = vpack.c.b16 %v999, %v998
      %1008 = vmatpush.bf16.msra.mxu0 0
      %1009 = vmatpush.bf16.msra.mxu0 0
      %1010 = vmatpush.bf16.msra.mxu0 0
      %1011 = vmatpush.bf16.msra.mxu0 0
      %1012 = vmatpush.bf16.msra.mxu0 %v1003
      %1013 = vmatpush.bf16.msra.mxu0 %v1002
      %1014 = vmatpush.bf16.msra.mxu0 %v1001
      %1015 = vmatpush.bf16.msra.mxu0 %v1000
      %1016 = vmatmul.bf16.gmra.mxu0 %v888
      %v1017 = vpop.f32.mrf.mxu0
      %v1018 = vadd.f32 0.0, %v1017
      %v1019 = vpop.f32.mrf.mxu0
      %v1020 = vadd.f32 0.0, %v1019
      %1021 = vmatmul.bf16.gmra.mxu0 %v891
      %v1022 = vpop.f32.mrf.mxu0
      %v1023 = vadd.f32 0.0, %v1022
      %v1024 = vpop.f32.mrf.mxu0
      %1025 = vdwg.mxu0
      %v1029 = vrot.slane %v1018, 2
      %v1030 = vrot.slane %v1020, 2
      %v1031 = vsel %vm651, %v1029, %v1030
      %v1032 = vrot.slane %v1023, 2
      %v1033 = vsel %vm651, %v1030, %v1032
      %v1036 = vadd.f32 %v973, %v1031
      %v1037 = vadd.f32 %v974, %v1033
      %v1038 = vld [vmem:[%s8] sm:$0x1]
      %v1040 = vperm.slane %v1038, 0
      %v1042 = vadd.f32 %v1036, %v1040
      %v1043 = vadd.f32 %v1037, %v1040
      %1044 = vst.msk [vmem:[%s451] sm:$0xff] %vm507, %v1042
      %1045 = vst.msk [vmem:[%s451 + $0x8] sm:$0xff] %vm507, %v1043
      %v1046 = vsel %vm507, %v1042, 0.0
      %v1047 = vsel %vm507, %v1043, 0.0
      %v1048 = vadd.f32 %v1046, %v1047
      %v1049 = vrot.slane %v1048, 4
      %v1050 = vadd.f32 %v1048, %v1049
      %v1051 = vrot.slane %v1050, 2
      %v1052 = vadd.f32 %v1050, %v1051
      %v1053 = vrot.slane %v1052, 1
      %v1054 = vadd.f32 %v1052, %v1053
      %v1055 = vmul.f32 %v1054, 0.0625
      %v1056 = vsub.f32 %v1042, %v1055
      %v1057 = vsub.f32 %v1043, %v1055
      %1058 = vst.msk [vmem:[%s454] sm:$0x1] %vm844, %v1054
      %v1059 = vmul.f32 %v1056, %v1056
      %v1060 = vmul.f32 %v1057, %v1057
      %v1061 = vsel %vm507, %v1059, 0.0
      %v1062 = vsel %vm507, %v1060, 0.0
      %v1063 = vadd.f32 %v1061, %v1062
      %v1064 = vrot.slane %v1063, 4
      %v1065 = vadd.f32 %v1063, %v1064
      %v1066 = vrot.slane %v1065, 2
      %v1067 = vadd.f32 %v1065, %v1066
      %v1068 = vrot.slane %v1067, 1
      %v1069 = vadd.f32 %v1067, %v1068
      %1070 = vst.msk [vmem:[%s457] sm:$0x1] %vm844, %v1069
      %p1071 = scmp.lt.s32.totalorder %s24, 1
      %s1072 = scalar_select %p1071, %s24, 1
      %s1073 = smul.addr %s1072, 2
      %s1074 = smul.addr %s1073, 8
      %s1075 = scalar_lea.vmem %s9, %s1074
      %p1076 = scmp.lt.s32.totalorder %s24, 1
      %s1077 = scalar_select %p1076, %s24, 1
      %s1078 = scalar_lea.vmem %s10, %s1077
      %p1079 = scmp.lt.s32.totalorder %s24, 1
      %s1080 = scalar_select %p1079, %s24, 1
      %s1081 = scalar_lea.vmem %s11, %s1080
      %p1082 = scmp.lt.s32.totalorder %s24, 1
      %s1083 = scalar_select %p1082, %s24, 1
      %s1084 = smul.addr %s1083, 3
      %s1085 = smul.addr %s1084, 4
      %s1086 = scalar_lea.vmem %s12, %s1085
      // Predicated region
      $region57: #{dense_block_forward.5} parent=55 // pred_check
        %p1087 = pneg %p241
      $region58: #{dense_block_forward.5} parent=55 // pred_check_branch
        %1089 = sbr.rel (%p1087) target = $region60
      $region59: #{dense_block_forward.5} parent=55 // pred_region
        _
      $region60: #{dense_block_forward.5} parent=55 // pred_fallthru
        _
      // Predicated region
      $region61: #{dense_block_forward.5} parent=55 // pred_check
        %p1090 = pneg %p267
      $region62: #{dense_block_forward.5} parent=55 // pred_check_branch
        %1092 = sbr.rel (%p1090) target = $region64
      $region63: #{dense_block_forward.5} parent=55 // pred_region
        _
      $region64: #{dense_block_forward.5} parent=55 // pred_fallthru
        _
      // Predicated region
      $region65: #{dense_block_forward.5} parent=55 // pred_check
        %p1093 = pneg %p293
      $region66: #{dense_block_forward.5} parent=55 // pred_check_branch
        %1095 = sbr.rel (%p1093) target = $region68
      $region67: #{dense_block_forward.5} parent=55 // pred_region
        _
      $region68: #{dense_block_forward.5} parent=55 // pred_fallthru
        _
      // Predicated region
      $region69: #{dense_block_forward.5} parent=55 // pred_check
        %p1096 = pneg %p319
      $region70: #{dense_block_forward.5} parent=55 // pred_check_branch
        %1098 = sbr.rel (%p1096) target = $region72
      $region71: #{dense_block_forward.5} parent=55 // pred_region
        _
      $region72: #{dense_block_forward.5} parent=55 // pred_fallthru
        _
    $region56: #{dense_block_forward.5} parent=5 // pred_fallthru
      _
    %p1099 = scmp.le.s32.totalorder 2, %s19
    // Predicated region
    $region73: #{dense_block_forward.5} parent=5 // pred_check
      %p1100 = pneg %p1099
    $region74: #{dense_block_forward.5} parent=5 // pred_check_branch
      %1102 = sbr.rel (%p1100) target = $region76
    $region75: #{dense_block_forward.5} parent=5 // pred_region
      %s1103 = ssub.s32 %s19, 2
      // Predicated region
      $region77: #{dense_block_forward.5} parent=75 // pred_check
        %p1104 = pneg %p247
      $region78: #{dense_block_forward.5} parent=75 // pred_check_branch
        %1106 = sbr.rel (%p1104) target = $region80
      $region79: #{dense_block_forward.5} parent=75 // pred_region
        %p1107 = scmp.lt.s32.totalorder %s25, 1
        %s1108 = scalar_select %p1107, %s25, 1
        %s1109 = smul.addr %s1108, 2
        %s1110 = smul.addr %s1109, 8
        %s1111 = scalar_lea.vmem %s9, %s1110
      $region80: #{dense_block_forward.5} parent=75 // pred_fallthru
        _
      // Predicated region
      $region81: #{dense_block_forward.5} parent=75 // pred_check
        %p1112 = pneg %p273
      $region82: #{dense_block_forward.5} parent=75 // pred_check_branch
        %1114 = sbr.rel (%p1112) target = $region84
      $region83: #{dense_block_forward.5} parent=75 // pred_region
        %p1115 = scmp.lt.s32.totalorder %s25, 1
        %s1116 = scalar_select %p1115, %s25, 1
        %s1117 = scalar_lea.vmem %s10, %s1116
      $region84: #{dense_block_forward.5} parent=75 // pred_fallthru
        _
      // Predicated region
      $region85: #{dense_block_forward.5} parent=75 // pred_check
        %p1118 = pneg %p299
      $region86: #{dense_block_forward.5} parent=75 // pred_check_branch
        %1120 = sbr.rel (%p1118) target = $region88
      $region87: #{dense_block_forward.5} parent=75 // pred_region
        %p1121 = scmp.lt.s32.totalorder %s25, 1
        %s1122 = scalar_select %p1121, %s25, 1
        %s1123 = scalar_lea.vmem %s11, %s1122
      $region88: #{dense_block_forward.5} parent=75 // pred_fallthru
        _
      // Predicated region
      $region89: #{dense_block_forward.5} parent=75 // pred_check
        %p1124 = pneg %p325
      $region90: #{dense_block_forward.5} parent=75 // pred_check_branch
        %1126 = sbr.rel (%p1124) target = $region92
      $region91: #{dense_block_forward.5} parent=75 // pred_region
        %p1127 = scmp.lt.s32.totalorder %s25, 1
        %s1128 = scalar_select %p1127, %s25, 1
        %s1129 = smul.addr %s1128, 3
        %s1130 = smul.addr %s1129, 4
        %s1131 = scalar_lea.vmem %s12, %s1130
      $region92: #{dense_block_forward.5} parent=75 // pred_fallthru
        _
    $region76: #{dense_block_forward.5} parent=5 // pred_fallthru
      _
  $region6: #{dense_block_forward.5} parent=0 // loop_footer
    %s23 = sadd.s32 1, %s19
  $region7: #{dense_block_forward.5} parent=0 // loop_footer_branch
    %18 = sbr.rel target = $region3
  $region8: #{dense_block_forward.5} parent=0 // loop_exit
    _

// kernel: dense_block_forward.7
$region0: #{dense_block_forward.7}
  #allocation0 [shape = 'u32[]', space=smem, size = 0x4, offset = 0x4, fixed_abs, tag = 'smem constant byte address 0x4 - core index']
  #allocation1 [shape = 'u32[72,128]{1,0:T(1,128)}', space=vmem, size = 0x9000, scoped, tag = 'internal scratch']
  %s0 = inlined_call_operand.vmem [shape: f32[2,16,64], index: 0, kind: input, shape index: {}]
  %s1 = inlined_call_operand.vmem [shape: f32[2,1,64], index: 1, kind: input, shape index: {}]
  %s2 = inlined_call_operand.vmem [shape: f32[2,1,64], index: 2, kind: input, shape index: {}]
  %s3 = inlined_call_operand.vmem [shape: f32[1,64], index: 3, kind: input, shape index: {}]
  %s4 = inlined_call_operand.vmem [shape: f32[1,64], index: 4, kind: input, shape index: {}]
  %s5 = inlined_call_operand.vmem [shape: f32[64,64], index: 5, kind: input, shape index: {}]
  %s6 = inlined_call_operand.vmem [shape: f32[2,16,64], index: 6, kind: output, shape index: {}]
  %s7 = sld [smem:[#allocation0]]
  $region57: #{dense_block_forward.7} parent=0
    _
  %s9 = ssub.s32 1, %s7
  %s10 = scalar_select 0, %s9, %s7
  loop: start=0, step=1, limit=4
  $region2: #{dense_block_forward.7} parent=0 // loop_pre_header
    _
  $region3: #{dense_block_forward.7} parent=0 // loop_header
    %s12 = sphi 0, %s16
    %p13 = scmp.ge.s32.totalorder %s12, 4
    %s22 = sphi 0, %s24
    %s25 = sphi 0, %s22
    %s26 = sphi 0, %s25
    %s42 = sphi 0, %s26
    %s46 = sphi 0, %s46
    %s48 = sphi 0, %s46
    %s49 = sphi 0, %s48
    %s63 = sphi 0, %s49
    %s67 = sphi 0, %s67
    %s69 = sphi 0, %s67
    %s70 = sphi 0, %s69
    %s84 = sphi 0, %s70
    %s88 = sphi 0, %s88
    %s90 = sphi 0, %s88
    %s91 = sphi 0, %s90
    %s105 = sphi 0, %s91
    %s109 = sphi 0, %s109
    %s111 = sphi 0, %s109
    %s112 = sphi 0, %s111
    %s126 = sphi 0, %s112
    %s130 = sphi 0, %s130
    %s132 = sphi 0, %s130
    %s133 = sphi 0, %s132
    %s147 = sphi 0, %s133
    %s153 = sphi 0, %s155
    %s156 = sphi 0, %s153
    %s157 = sphi 0, %s156
    %s173 = sphi 0, %s157
  $region4: #{dense_block_forward.7} parent=0 // loop_header_branch
    %15 = sbr.rel (%p13) target = $region8
  $region5: #{dense_block_forward.7} parent=0 // loop_body
    %s17 = ssub.s32 %s12, 1
    %s18 = ssub.s32 %s12, 2
    %s19 = sadd.s32 %s12, 1
    %s20 = ssub.s32 %s12, %s19
    %p21 = scmp.eq.s32.totalorder %s20, 0
    %s23 = sadd.s32 %s22, 1
    %s24 = scalar_select %p21, %s22, %s23
    %p27 = pneg %p21
    %p28 = scmp.eq.s32.totalorder %s12, 1
    %p29 = por %p27, %p28
    %p30 = scmp.ne.s32.totalorder %s22, %s25
    %p31 = scmp.eq.s32.totalorder %s12, 0
    %p32 = por %p30, %p31
    %p33 = scmp.ne.s32.totalorder %s22, %s25
    %p34 = scmp.eq.s32.totalorder %s17, 1
    %p35 = por %p33, %p34
    %p36 = scmp.ne.s32.totalorder %s25, %s26
    %p37 = scmp.eq.s32.totalorder %s17, 0
    %p38 = por %p36, %p37
    %p39 = scmp.ne.s32.totalorder %s25, %s26
    %p40 = scmp.eq.s32.totalorder %s18, 1
    %p41 = por %p39, %p40
    %p43 = scmp.ne.s32.totalorder %s26, %s42
    %p44 = scmp.eq.s32.totalorder %s18, 0
    %p45 = por %p43, %p44
    %s47 = sadd.s32 %s46, 1
    %p50 = scmp.eq.s32.totalorder %s12, 1
    %p51 = scmp.ne.s32.totalorder %s46, %s48
    %p52 = scmp.eq.s32.totalorder %s12, 0
    %p53 = por %p51, %p52
    %p54 = scmp.ne.s32.totalorder %s46, %s48
    %p55 = scmp.eq.s32.totalorder %s17, 1
    %p56 = por %p54, %p55
    %p57 = scmp.ne.s32.totalorder %s48, %s49
    %p58 = scmp.eq.s32.totalorder %s17, 0
    %p59 = por %p57, %p58
    %p60 = scmp.ne.s32.totalorder %s48, %s49
    %p61 = scmp.eq.s32.totalorder %s18, 1
    %p62 = por %p60, %p61
    %p64 = scmp.ne.s32.totalorder %s49, %s63
    %p65 = scmp.eq.s32.totalorder %s18, 0
    %p66 = por %p64, %p65
    %s68 = sadd.s32 %s67, 1
    %p71 = scmp.eq.s32.totalorder %s12, 1
    %p72 = scmp.ne.s32.totalorder %s67, %s69
    %p73 = scmp.eq.s32.totalorder %s12, 0
    %p74 = por %p72, %p73
    %p75 = scmp.ne.s32.totalorder %s67, %s69
    %p76 = scmp.eq.s32.totalorder %s17, 1
    %p77 = por %p75, %p76
    %p78 = scmp.ne.s32.totalorder %s69, %s70
    %p79 = scmp.eq.s32.totalorder %s17, 0
    %p80 = por %p78, %p79
    %p81 = scmp.ne.s32.totalorder %s69, %s70
    %p82 = scmp.eq.s32.totalorder %s18, 1
    %p83 = por %p81, %p82
    %p85 = scmp.ne.s32.totalorder %s70, %s84
    %p86 = scmp.eq.s32.totalorder %s18, 0
    %p87 = por %p85, %p86
    %s89 = sadd.s32 %s88, 1
    %p92 = scmp.eq.s32.totalorder %s12, 1
    %p93 = scmp.ne.s32.totalorder %s88, %s90
    %p94 = scmp.eq.s32.totalorder %s12, 0
    %p95 = por %p93, %p94
    %p96 = scmp.ne.s32.totalorder %s88, %s90
    %p97 = scmp.eq.s32.totalorder %s17, 1
    %p98 = por %p96, %p97
    %p99 = scmp.ne.s32.totalorder %s90, %s91
    %p100 = scmp.eq.s32.totalorder %s17, 0
    %p101 = por %p99, %p100
    %p102 = scmp.ne.s32.totalorder %s90, %s91
    %p103 = scmp.eq.s32.totalorder %s18, 1
    %p104 = por %p102, %p103
    %p106 = scmp.ne.s32.totalorder %s91, %s105
    %p107 = scmp.eq.s32.totalorder %s18, 0
    %p108 = por %p106, %p107
    %s110 = sadd.s32 %s109, 1
    %p113 = scmp.eq.s32.totalorder %s12, 1
    %p114 = scmp.ne.s32.totalorder %s109, %s111
    %p115 = scmp.eq.s32.totalorder %s12, 0
    %p116 = por %p114, %p115
    %p117 = scmp.ne.s32.totalorder %s109, %s111
    %p118 = scmp.eq.s32.totalorder %s17, 1
    %p119 = por %p117, %p118
    %p120 = scmp.ne.s32.totalorder %s111, %s112
    %p121 = scmp.eq.s32.totalorder %s17, 0
    %p122 = por %p120, %p121
    %p123 = scmp.ne.s32.totalorder %s111, %s112
    %p124 = scmp.eq.s32.totalorder %s18, 1
    %p125 = por %p123, %p124
    %p127 = scmp.ne.s32.totalorder %s112, %s126
    %p128 = scmp.eq.s32.totalorder %s18, 0
    %p129 = por %p127, %p128
    %s131 = sadd.s32 %s130, 1
    %p134 = scmp.eq.s32.totalorder %s12, 1
    %p135 = scmp.ne.s32.totalorder %s130, %s132
    %p136 = scmp.eq.s32.totalorder %s12, 0
    %p137 = por %p135, %p136
    %p138 = scmp.ne.s32.totalorder %s130, %s132
    %p139 = scmp.eq.s32.totalorder %s17, 1
    %p140 = por %p138, %p139
    %p141 = scmp.ne.s32.totalorder %s132, %s133
    %p142 = scmp.eq.s32.totalorder %s17, 0
    %p143 = por %p141, %p142
    %p144 = scmp.ne.s32.totalorder %s132, %s133
    %p145 = scmp.eq.s32.totalorder %s18, 1
    %p146 = por %p144, %p145
    %p148 = scmp.ne.s32.totalorder %s133, %s147
    %p149 = scmp.eq.s32.totalorder %s18, 0
    %p150 = por %p148, %p149
    %s151 = ssub.s32 %s12, %s19
    %p152 = scmp.eq.s32.totalorder %s151, 0
    %s154 = sadd.s32 %s153, 1
    %s155 = scalar_select %p152, %s153, %s154
    %p158 = pneg %p152
    %p159 = scmp.eq.s32.totalorder %s12, 1
    %p160 = por %p158, %p159
    %p161 = scmp.ne.s32.totalorder %s153, %s156
    %p162 = scmp.eq.s32.totalorder %s12, 0
    %p163 = por %p161, %p162
    %p164 = scmp.ne.s32.totalorder %s153, %s156
    %p165 = scmp.eq.s32.totalorder %s17, 1
    %p166 = por %p164, %p165
    %p167 = scmp.ne.s32.totalorder %s156, %s157
    %p168 = scmp.eq.s32.totalorder %s17, 0
    %p169 = por %p167, %p168
    %p170 = scmp.ne.s32.totalorder %s156, %s157
    %p171 = scmp.eq.s32.totalorder %s18, 1
    %p172 = por %p170, %p171
    %p174 = scmp.ne.s32.totalorder %s157, %s173
    %p175 = scmp.eq.s32.totalorder %s18, 0
    %p176 = por %p174, %p175
    %p177 = scmp.le.s32.totalorder 1, %s12
    %p178 = scmp.lt.s32.totalorder %s12, 3
    %p179 = pnand %p177, %p178
    %p180 = pneg %p179
    // Predicated region
    $region9: #{dense_block_forward.7} parent=5 // pred_check
      _
    $region10: #{dense_block_forward.7} parent=5 // pred_check_branch
      %182 = sbr.rel (%p179) target = $region12
    $region11: #{dense_block_forward.7} parent=5 // pred_region
      %s183 = ssub.s32 %s12, 1
      // Predicated region
      $region13: #{dense_block_forward.7} parent=11 // pred_check
        %p184 = pneg %p59
      $region14: #{dense_block_forward.7} parent=11 // pred_check_branch
        %186 = sbr.rel (%p184) target = $region16
      $region15: #{dense_block_forward.7} parent=11 // pred_region
        _
      $region16: #{dense_block_forward.7} parent=11 // pred_fallthru
        _
      // Predicated region
      $region17: #{dense_block_forward.7} parent=11 // pred_check
        %p187 = pneg %p80
      $region18: #{dense_block_forward.7} parent=11 // pred_check_branch
        %189 = sbr.rel (%p187) target = $region20
      $region19: #{dense_block_forward.7} parent=11 // pred_region
        _
      $region20: #{dense_block_forward.7} parent=11 // pred_fallthru
        _
      // Predicated region
      $region21: #{dense_block_forward.7} parent=11 // pred_check
        %p190 = pneg %p101
      $region22: #{dense_block_forward.7} parent=11 // pred_check_branch
        %192 = sbr.rel (%p190) target = $region24
      $region23: #{dense_block_forward.7} parent=11 // pred_region
        _
      $region24: #{dense_block_forward.7} parent=11 // pred_fallthru
        _
      // Predicated region
      $region25: #{dense_block_forward.7} parent=11 // pred_check
        %p193 = pneg %p122
      $region26: #{dense_block_forward.7} parent=11 // pred_check_branch
        %195 = sbr.rel (%p193) target = $region28
      $region27: #{dense_block_forward.7} parent=11 // pred_region
        _
      $region28: #{dense_block_forward.7} parent=11 // pred_fallthru
        _
      // Predicated region
      $region29: #{dense_block_forward.7} parent=11 // pred_check
        %p196 = pneg %p143
      $region30: #{dense_block_forward.7} parent=11 // pred_check_branch
        %198 = sbr.rel (%p196) target = $region32
      $region31: #{dense_block_forward.7} parent=11 // pred_region
        _
      $region32: #{dense_block_forward.7} parent=11 // pred_fallthru
        _
    $region12: #{dense_block_forward.7} parent=5 // pred_fallthru
      _
    %p199 = scmp.lt.s32.totalorder %s12, 2
    // Predicated region
    $region33: #{dense_block_forward.7} parent=5 // pred_check
      %p200 = pneg %p199
    $region34: #{dense_block_forward.7} parent=5 // pred_check_branch
      %202 = sbr.rel (%p200) target = $region36
    $region35: #{dense_block_forward.7} parent=5 // pred_region
      // Predicated region
      $region37: #{dense_block_forward.7} parent=35 // pred_check
        %p203 = pneg %p32
      $region38: #{dense_block_forward.7} parent=35 // pred_check_branch
        %205 = sbr.rel (%p203) target = $region40
      $region39: #{dense_block_forward.7} parent=35 // pred_region
        %p206 = scmp.lt.s32.totalorder %s12, 1
        %s207 = scalar_select %p206, %s12, 1
        %s208 = smul.addr %s207, 2
        %s209 = smul.addr %s208, 8
        %s210 = scalar_lea.vmem %s0, %s209
      $region40: #{dense_block_forward.7} parent=35 // pred_fallthru
        _
    $region36: #{dense_block_forward.7} parent=5 // pred_fallthru
      _
    %p211 = scmp.le.s32.totalorder 1, %s12
    %p212 = scmp.lt.s32.totalorder %s12, 3
    %p213 = pnand %p211, %p212
    %p214 = pneg %p213
    // Predicated region
    $region41: #{dense_block_forward.7} parent=5 // pred_check
      _
    $region42: #{dense_block_forward.7} parent=5 // pred_check_branch
      %216 = sbr.rel (%p213) target = $region44
    $region43: #{dense_block_forward.7} parent=5 // pred_region
      %s217 = ssub.s32 %s12, 1
      %p218 = scmp.lt.s32.totalorder %s17, 1
      %s219 = scalar_select %p218, %s17, 1
      %s220 = smul.addr %s219, 2
      %s221 = smul.addr %s220, 8
      %s222 = scalar_lea.vmem %s0, %s221
      %p223 = pneg %p38
      %p224 = pneg %p35
      %p225 = pneg %p59
      %p226 = pneg %p56
      %p227 = pneg %p80
      %p228 = pneg %p77
      %p229 = pneg %p101
      %p230 = pneg %p98
      %p231 = pneg %p122
      %p232 = pneg %p119
      %p233 = pneg %p143
      %p234 = pneg %p140
      %p235 = pneg %p169
      %p236 = pneg %p166
      %p237 = scmp.lt.s32.totalorder %s17, 1
      %s238 = scalar_select %p237, %s17, 1
      %s239 = smul.addr %s238, 2
      %s240 = smul.addr %s239, 8
      %s241 = scalar_lea.vmem %s6, %s240
      %p242 = scmp.lt.s32.totalorder %s17, 1
      %s243 = scalar_select %p242, %s17, 1
      %s244 = smul.addr %s243, 2
      %s245 = smul.addr %s244, 8
      %s246 = scalar_lea.vmem %s0, %s245
      %p247 = scmp.lt.s32.totalorder %s17, 1
      %s248 = scalar_select %p247, %s17, 1
      %s249 = smul.addr %s248, 2
      %s250 = smul.addr %s249, 8
      %s251 = scalar_lea.vmem %s6, %s250
      %v252 = vld [vmem:[%s1] sm:$0x1]
      %v253 = vld [vmem:[%s1 + $0x1] sm:$0x1]
      %v254 = vld [vmem:[%s2] sm:$0x1]
      %v255 = vld [vmem:[%s2 + $0x1] sm:$0x1]
      %v256 = vld [vmem:[%s3] sm:$0x1]
      %v257 = vld [vmem:[%s4] sm:$0x1]
      %v258 = vld [vmem:[%s5] sm:$0xff]
      %v259 = vld [vmem:[%s5 + $0x8] sm:$0xff]
      %v260 = vld [vmem:[%s5 + $0x10] sm:$0xff]
      %v261 = vld [vmem:[%s5 + $0x18] sm:$0xff]
      %v262 = vld [vmem:[%s5 + $0x20] sm:$0xff]
      %v263 = vld [vmem:[%s5 + $0x28] sm:$0xff]
      %v264 = vld [vmem:[%s5 + $0x30] sm:$0xff]
      %v265 = vld [vmem:[%s5 + $0x38] sm:$0xff]
      %268 = vst [vmem:[#allocation1] ss:$9 sm:$0xff] %v252
      %s269 = scalar_lea.vmem [#allocation1], 1
      %270 = vst [vmem:[%s269] ss:$9 sm:$0xff] %v253
      %v271 = vld [vmem:[#allocation1] sm:$0xff]
      %vm273 = vcmask 517120
      %v274 = vsel %vm273, %v271, 0.0
      %v275 = vrot.slane %v274, 4
      %v276 = vadd.f32 %v274, %v275
      %v277 = vrot.slane %v276, 2
      %v278 = vadd.f32 %v276, %v277
      %v279 = vrot.slane %v278, 1
      %v280 = vadd.f32 %v278, %v279
      %v281 = vmul.f32 %v252, %v252
      %v282 = vmul.f32 %v253, %v253
      %285 = vst [vmem:[#allocation1] ss:$9 sm:$0xff] %v281
      %s286 = scalar_lea.vmem [#allocation1], 1
      %287 = vst [vmem:[%s286] ss:$9 sm:$0xff] %v282
      %v288 = vld [vmem:[#allocation1] sm:$0xff]
      %v290 = vsel %vm273, %v288, 0.0
      %v291 = vrot.slane %v290, 4
      %v292 = vadd.f32 %v290, %v291
      %v293 = vrot.slane %v292, 2
      %v294 = vadd.f32 %v292, %v293
      %v295 = vrot.slane %v294, 1
      %v296 = vadd.f32 %v294, %v295
      %299 = vst [vmem:[#allocation1] ss:$9 sm:$0xff] %v254
      %s300 = scalar_lea.vmem [#allocation1], 1
      %301 = vst [vmem:[%s300] ss:$9 sm:$0xff] %v255
      %v302 = vld [vmem:[#allocation1] sm:$0xff]
      %v304 = vsel %vm273, %v302, 0.0
      %v305 = vrot.slane %v304, 4
      %v306 = vadd.f32 %v304, %v305
      %v307 = vrot.slane %v306, 2
      %v308 = vadd.f32 %v306, %v307
      %v309 = vrot.slane %v308, 1
      %v310 = vadd.f32 %v308, %v309
      %vm311 = vcmask 523264
      %v313 = vsel %vm311, %v280, 0
      %315 = vmatpush.msra.mxu0 0.0
      %316 = vmatpush.msra.mxu0 0.0
      %317 = vmatpush.msra.mxu0 0.0
      %318 = vmatpush.msra.mxu0 0.0
      %319 = vmatpush.msra.mxu0 0.0
      %320 = vmatpush.msra.mxu0 0.0
      %321 = vmatpush.msra.mxu0 0.0
      %322 = vmatpush.msra.mxu0 0.0
      %323 = vmatpush.msra.mxu0 %v265
      %324 = vmatpush.msra.mxu0 %v264
      %325 = vmatpush.msra.mxu0 %v263
      %326 = vmatpush.msra.mxu0 %v262
      %327 = vmatpush.msra.mxu0 %v261
      %328 = vmatpush.msra.mxu0 %v260
      %329 = vmatpush.msra.mxu0 %v259
      %330 = vmatpush.msra.mxu0 %v258
      %331 = vmatmul.f32.gmra.mxu0 %v313
      %v332 = vpop.f32.mrf.mxu0
      %v333 = vadd.f32 0.0, %v332
      %334 = vdwg.mxu0
      %v336 = vsel %vm311, %v296, 0
      %338 = vmatpush.msra.mxu0 0.0
      %339 = vmatpush.msra.mxu0 0.0
      %340 = vmatpush.msra.mxu0 0.0
      %341 = vmatpush.msra.mxu0 0.0
      %342 = vmatpush.msra.mxu0 0.0
      %343 = vmatpush.msra.mxu0 0.0
      %344 = vmatpush.msra.mxu0 0.0
      %345 = vmatpush.msra.mxu0 0.0
      %346 = vmatpush.msra.mxu0 %v265
      %347 = vmatpush.msra.mxu0 %v264
      %348 = vmatpush.msra.mxu0 %v263
      %349 = vmatpush.msra.mxu0 %v262
      %350 = vmatpush.msra.mxu0 %v261
      %351 = vmatpush.msra.mxu0 %v260
      %352 = vmatpush.msra.mxu0 %v259
      %353 = vmatpush.msra.mxu0 %v258
      %354 = vmatmul.f32.gmra.mxu0 %v336
      %v355 = vpop.f32.mrf.mxu0
      %v356 = vadd.f32 0.0, %v355
      %357 = vdwg.mxu0
      %v358 = vmul.f32 %v333, 0.001953125
      %v359 = vmul.f32 %v356, 0.0625
      %v361 = vsel %vm311, %v310, 0
      %363 = vmatpush.msra.mxu0 0.0
      %364 = vmatpush.msra.mxu0 0.0
      %365 = vmatpush.msra.mxu0 0.0
      %366 = vmatpush.msra.mxu0 0.0
      %367 = vmatpush.msra.mxu0 0.0
      %368 = vmatpush.msra.mxu0 0.0
      %369 = vmatpush.msra.mxu0 0.0
      %370 = vmatpush.msra.mxu0 0.0
      %371 = vmatpush.msra.mxu0 %v265
      %372 = vmatpush.msra.mxu0 %v264
      %373 = vmatpush.msra.mxu0 %v263
      %374 = vmatpush.msra.mxu0 %v262
      %375 = vmatpush.msra.mxu0 %v261
      %376 = vmatpush.msra.mxu0 %v260
      %377 = vmatpush.msra.mxu0 %v259
      %378 = vmatpush.msra.mxu0 %v258
      %379 = vmatmul.f32.gmra.mxu0 %v361
      %v380 = vpop.f32.mrf.mxu0
      %v381 = vadd.f32 %v359, %v380
      %382 = vdwg.mxu0
      %v383 = vmul.f32 %v333, %v358
      %v384 = vsub.f32 %v381, %v383
      %v385 = vmul.f32 %v384, 0.001953125
      %v386 = vmax.f32 %v385, 0.0
      %v387 = vadd.f32 %v386, 1e-05
      %v388 = vrsqrt.pop %v387
      %v389 = vmul.f32 %v388, %v387
      %v390 = vmul.f32 %v389, %v388
      %v391 = vmul.f32 0.5, %v390
      %v392 = vsub.f32 1.5, %v391
      %v393 = vmul.f32 %v388, %v392
      %vm394 = vweird.f32 %v387
      %vm395 = vweird.f32 %v388
      %vm396 = vmor %vm394, %vm395
      %v397 = vsel %vm396, %v388, %v393
      %v398 = vmul.f32 %v256, %v397
      %v399 = vmul.f32 %v358, %v398
      %v400 = vsub.f32 %v257, %v399
      %v401 = vld [vmem:[%s246] sm:$0xff]
      %v402 = vld [vmem:[%s246 + $0x8] sm:$0xff]
      %v404 = vperm.slane %v398, 0
      %v406 = vmul.f32 %v401, %v404
      %v407 = vmul.f32 %v402, %v404
      %v409 = vperm.slane %v400, 0
      %v411 = vadd.f32 %v406, %v409
      %v412 = vadd.f32 %v407, %v409
      %vm413 = vcmp.gt.f32.partialorder %v411, 0.0
      %vm414 = vcmp.gt.f32.partialorder %v412, 0.0
      %v415 = vmul.f32 %v411, 0.2
      %v416 = vmul.f32 %v412, 0.2
      %v417 = vsel %vm413, %v411, %v415
      %v418 = vsel %vm414, %v412, %v416
      %419 = vst.msk [vmem:[%s251] sm:$0xff] %vm311, %v417
      %420 = vst.msk [vmem:[%s251 + $0x8] sm:$0xff] %vm311, %v418
      %p421 = scmp.lt.s32.totalorder %s17, 1
      %s422 = scalar_select %p421, %s17, 1
      %s423 = smul.addr %s422, 2
      %s424 = smul.addr %s423, 8
      %s425 = scalar_lea.vmem %s6, %s424
      // Predicated region
      $region45: #{dense_block_forward.7} parent=43 // pred_check
        %p426 = pneg %p166
      $region46: #{dense_block_forward.7} parent=43 // pred_check_branch
        %428 = sbr.rel (%p426) target = $region48
      $region47: #{dense_block_forward.7} parent=43 // pred_region
        _
      $region48: #{dense_block_forward.7} parent=43 // pred_fallthru
        _
    $region44: #{dense_block_forward.7} parent=5 // pred_fallthru
      _
    %p429 = scmp.le.s32.totalorder 2, %s12
    // Predicated region
    $region49: #{dense_block_forward.7} parent=5 // pred_check
      %p430 = pneg %p429
    $region50: #{dense_block_forward.7} parent=5 // pred_check_branch
      %432 = sbr.rel (%p430) target = $region52
    $region51: #{dense_block_forward.7} parent=5 // pred_region
      %s433 = ssub.s32 %s12, 2
      // Predicated region
      $region53: #{dense_block_forward.7} parent=51 // pred_check
        %p434 = pneg %p172
      $region54: #{dense_block_forward.7} parent=51 // pred_check_branch
        %436 = sbr.rel (%p434) target = $region56
      $region55: #{dense_block_forward.7} parent=51 // pred_region
        %p437 = scmp.lt.s32.totalorder %s18, 1
        %s438 = scalar_select %p437, %s18, 1
        %s439 = smul.addr %s438, 2
        %s440 = smul.addr %s439, 8
        %s441 = scalar_lea.vmem %s6, %s440
      $region56: #{dense_block_forward.7} parent=51 // pred_fallthru
        _
    $region52: #{dense_block_forward.7} parent=5 // pred_fallthru
      _
  $region6: #{dense_block_forward.7} parent=0 // loop_footer
    %s16 = sadd.s32 1, %s12
  $region7: #{dense_block_forward.7} parent=0 // loop_footer_branch
    %11 = sbr.rel target = $region3
  $region8: #{dense_block_forward.7} parent=0 // loop_exit
    _

// kernel: dense_block_forward.6
$region0: #{dense_block_forward.6}
  #allocation0 [shape = 'u32[]', space=smem, size = 0x4, offset = 0x4, fixed_abs, tag = 'smem constant byte address 0x4 - core index']
  #allocation1 [shape = 'u32[72,128]{1,0:T(1,128)}', space=vmem, size = 0x9000, scoped, tag = 'internal scratch']
  %s0 = inlined_call_operand.vmem [shape: bf16[2,18,64], index: 0, kind: input, shape index: {}]
  %s1 = inlined_call_operand.vmem [shape: bf16[2,18,64], index: 1, kind: input, shape index: {}]
  %s2 = inlined_call_operand.vmem [shape: f32[2,16,64], index: 2, kind: input, shape index: {}]
  %s3 = inlined_call_operand.vmem [shape: f32[2,1,64], index: 3, kind: input, shape index: {}]
  %s4 = inlined_call_operand.vmem [shape: f32[2,1,64], index: 4, kind: input, shape index: {}]
  %s5 = inlined_call_operand.vmem [shape: f32[1,64], index: 5, kind: input, shape index: {}]
  %s6 = inlined_call_operand.vmem [shape: f32[1,64], index: 6, kind: input, shape index: {}]
  %s7 = inlined_call_operand.vmem [shape: f32[64,64], index: 7, kind: input, shape index: {}]
  %s8 = inlined_call_operand.vmem [shape: bf16[3,3,64,64], index: 8, kind: input, shape index: {}]
  %s9 = inlined_call_operand.vmem [shape: f32[1,64], index: 9, kind: input, shape index: {}]
  %s10 = inlined_call_operand.vmem [shape: f32[2,16,64], index: 10, kind: output, shape index: {0}]
  %s11 = inlined_call_operand.vmem [shape: f32[2,1,64], index: 11, kind: output, shape index: {1}]
  %s12 = inlined_call_operand.vmem [shape: f32[2,1,64], index: 12, kind: output, shape index: {2}]
  %s13 = inlined_call_operand.vmem [shape: bf16[2,18,64], index: 13, kind: output, shape index: {3}]
  %14 = xla_tuple %s10, %s11, %s12, %s13
  %s15 = sld [smem:[#allocation0]]
  $region97: #{dense_block_forward.6} parent=0
    _
  %s17 = ssub.s32 1, %s15
  %s18 = scalar_select 0, %s17, %s15
  loop: start=0, step=1, limit=4
  $region2: #{dense_block_forward.6} parent=0 // loop_pre_header
    _
  $region3: #{dense_block_forward.6} parent=0 // loop_header
    %s20 = sphi 0, %s24
    %p21 = scmp.ge.s32.totalorder %s20, 4
    %s30 = sphi 0, %s32
    %s33 = sphi 0, %s30
    %s34 = sphi 0, %s33
    %s50 = sphi 0, %s34
    %s56 = sphi 0, %s58
    %s59 = sphi 0, %s56
    %s60 = sphi 0, %s59
    %s76 = sphi 0, %s60
    %s82 = sphi 0, %s84
    %s85 = sphi 0, %s82
    %s86 = sphi 0, %s85
    %s102 = sphi 0, %s86
    %s106 = sphi 0, %s106
    %s108 = sphi 0, %s106
    %s109 = sphi 0, %s108
    %s123 = sphi 0, %s109
    %s127 = sphi 0, %s127
    %s129 = sphi 0, %s127
    %s130 = sphi 0, %s129
    %s144 = sphi 0, %s130
    %s148 = sphi 0, %s148
    %s150 = sphi 0, %s148
    %s151 = sphi 0, %s150
    %s165 = sphi 0, %s151
    %s169 = sphi 0, %s169
    %s171 = sphi 0, %s169
    %s172 = sphi 0, %s171
    %s186 = sphi 0, %s172
    %s190 = sphi 0, %s190
    %s192 = sphi 0, %s190
    %s193 = sphi 0, %s192
    %s207 = sphi 0, %s193
    %s211 = sphi 0, %s211
    %s213 = sphi 0, %s211
    %s214 = sphi 0, %s213
    %s228 = sphi 0, %s214
    %s232 = sphi 0, %s232
    %s234 = sphi 0, %s232
    %s235 = sphi 0, %s234
    %s249 = sphi 0, %s235
    %s255 = sphi 0, %s257
    %s258 = sphi 0, %s255
    %s259 = sphi 0, %s258
    %s275 = sphi 0, %s259
    %s281 = sphi 0, %s283
    %s284 = sphi 0, %s281
    %s285 = sphi 0, %s284
    %s301 = sphi 0, %s285
    %s307 = sphi 0, %s309
    %s310 = sphi 0, %s307
    %s311 = sphi 0, %s310
    %s327 = sphi 0, %s311
    %s333 = sphi 0, %s335
    %s336 = sphi 0, %s333
    %s337 = sphi 0, %s336
    %s353 = sphi 0, %s337
  $region4: #{dense_block_forward.6} parent=0 // loop_header_branch
    %23 = sbr.rel (%p21) target = $region8
  $region5: #{dense_block_forward.6} parent=0 // loop_body
    %s25 = ssub.s32 %s20, 1
    %s26 = ssub.s32 %s20, 2
    %s27 = sadd.s32 %s20, 1
    %s28 = ssub.s32 %s20, %s27
    %p29 = scmp.eq.s32.totalorder %s28, 0
    %s31 = sadd.s32 %s30, 1
    %s32 = scalar_select %p29, %s30, %s31
    %p35 = pneg %p29
    %p36 = scmp.eq.s32.totalorder %s20, 1
    %p37 = por %p35, %p36
    %p38 = scmp.ne.s32.totalorder %s30, %s33
    %p39 = scmp.eq.s32.totalorder %s20, 0
    %p40 = por %p38, %p39
    %p41 = scmp.ne.s32.totalorder %s30, %s33
    %p42 = scmp.eq.s32.totalorder %s25, 1
    %p43 = por %p41, %p42
    %p44 = scmp.ne.s32.totalorder %s33, %s34
    %p45 = scmp.eq.s32.totalorder %s25, 0
    %p46 = por %p44, %p45
    %p47 = scmp.ne.s32.totalorder %s33, %s34
    %p48 = scmp.eq.s32.totalorder %s26, 1
    %p49 = por %p47, %p48
    %p51 = scmp.ne.s32.totalorder %s34, %s50
    %p52 = scmp.eq.s32.totalorder %s26, 0
    %p53 = por %p51, %p52
    %s54 = ssub.s32 %s20, %s27
    %p55 = scmp.eq.s32.totalorder %s54, 0
    %s57 = sadd.s32 %s56, 1
    %s58 = scalar_select %p55, %s56, %s57
    %p61 = pneg %p55
    %p62 = scmp.eq.s32.totalorder %s20, 1
    %p63 = por %p61, %p62
    %p64 = scmp.ne.s32.totalorder %s56, %s59
    %p65 = scmp.eq.s32.totalorder %s20, 0
    %p66 = por %p64, %p65
    %p67 = scmp.ne.s32.totalorder %s56, %s59
    %p68 = scmp.eq.s32.totalorder %s25, 1
    %p69 = por %p67, %p68
    %p70 = scmp.ne.s32.totalorder %s59, %s60
    %p71 = scmp.eq.s32.totalorder %s25, 0
    %p72 = por %p70, %p71
    %p73 = scmp.ne.s32.totalorder %s59, %s60
    %p74 = scmp.eq.s32.totalorder %s26, 1
    %p75 = por %p73, %p74
    %p77 = scmp.ne.s32.totalorder %s60, %s76
    %p78 = scmp.eq.s32.totalorder %s26, 0
    %p79 = por %p77, %p78
    %s80 = ssub.s32 %s20, %s27
    %p81 = scmp.eq.s32.totalorder %s80, 0
    %s83 = sadd.s32 %s82, 1
    %s84 = scalar_select %p81, %s82, %s83
    %p87 = pneg %p81
    %p88 = scmp.eq.s32.totalorder %s20, 1
    %p89 = por %p87, %p88
    %p90 = scmp.ne.s32.totalorder %s82, %s85
    %p91 = scmp.eq.s32.totalorder %s20, 0
    %p92 = por %p90, %p91
    %p93 = scmp.ne.s32.totalorder %s82, %s85
    %p94 = scmp.eq.s32.totalorder %s25, 1
    %p95 = por %p93, %p94
    %p96 = scmp.ne.s32.totalorder %s85, %s86
    %p97 = scmp.eq.s32.totalorder %s25, 0
    %p98 = por %p96, %p97
    %p99 = scmp.ne.s32.totalorder %s85, %s86
    %p100 = scmp.eq.s32.totalorder %s26, 1
    %p101 = por %p99, %p100
    %p103 = scmp.ne.s32.totalorder %s86, %s102
    %p104 = scmp.eq.s32.totalorder %s26, 0
    %p105 = por %p103, %p104
    %s107 = sadd.s32 %s106, 1
    %p110 = scmp.eq.s32.totalorder %s20, 1
    %p111 = scmp.ne.s32.totalorder %s106, %s108
    %p112 = scmp.eq.s32.totalorder %s20, 0
    %p113 = por %p111, %p112
    %p114 = scmp.ne.s32.totalorder %s106, %s108
    %p115 = scmp.eq.s32.totalorder %s25, 1
    %p116 = por %p114, %p115
    %p117 = scmp.ne.s32.totalorder %s108, %s109
    %p118 = scmp.eq.s32.totalorder %s25, 0
    %p119 = por %p117, %p118
    %p120 = scmp.ne.s32.totalorder %s108, %s109
    %p121 = scmp.eq.s32.totalorder %s26, 1
    %p122 = por %p120, %p121
    %p124 = scmp.ne.s32.totalorder %s109, %s123
    %p125 = scmp.eq.s32.totalorder %s26, 0
    %p126 = por %p124, %p125
    %s128 = sadd.s32 %s127, 1
    %p131 = scmp.eq.s32.totalorder %s20, 1
    %p132 = scmp.ne.s32.totalorder %s127, %s129
    %p133 = scmp.eq.s32.totalorder %s20, 0
    %p134 = por %p132, %p133
    %p135 = scmp.ne.s32.totalorder %s127, %s129
    %p136 = scmp.eq.s32.totalorder %s25, 1
    %p137 = por %p135, %p136
    %p138 = scmp.ne.s32.totalorder %s129, %s130
    %p139 = scmp.eq.s32.totalorder %s25, 0
    %p140 = por %p138, %p139
    %p141 = scmp.ne.s32.totalorder %s129, %s130
    %p142 = scmp.eq.s32.totalorder %s26, 1
    %p143 = por %p141, %p142
    %p145 = scmp.ne.s32.totalorder %s130, %s144
    %p146 = scmp.eq.s32.totalorder %s26, 0
    %p147 = por %p145, %p146
    %s149 = sadd.s32 %s148, 1
    %p152 = scmp.eq.s32.totalorder %s20, 1
    %p153 = scmp.ne.s32.totalorder %s148, %s150
    %p154 = scmp.eq.s32.totalorder %s20, 0
    %p155 = por %p153, %p154
    %p156 = scmp.ne.s32.totalorder %s148, %s150
    %p157 = scmp.eq.s32.totalorder %s25, 1
    %p158 = por %p156, %p157
    %p159 = scmp.ne.s32.totalorder %s150, %s151
    %p160 = scmp.eq.s32.totalorder %s25, 0
    %p161 = por %p159, %p160
    %p162 = scmp.ne.s32.totalorder %s150, %s151
    %p163 = scmp.eq.s32.totalorder %s26, 1
    %p164 = por %p162, %p163
    %p166 = scmp.ne.s32.totalorder %s151, %s165
    %p167 = scmp.eq.s32.totalorder %s26, 0
    %p168 = por %p166, %p167
    %s170 = sadd.s32 %s169, 1
    %p173 = scmp.eq.s32.totalorder %s20, 1
    %p174 = scmp.ne.s32.totalorder %s169, %s171
    %p175 = scmp.eq.s32.totalorder %s20, 0
    %p176 = por %p174, %p175
    %p177 = scmp.ne.s32.totalorder %s169, %s171
    %p178 = scmp.eq.s32.totalorder %s25, 1
    %p179 = por %p177, %p178
    %p180 = scmp.ne.s32.totalorder %s171, %s172
    %p181 = scmp.eq.s32.totalorder %s25, 0
    %p182 = por %p180, %p181
    %p183 = scmp.ne.s32.totalorder %s171, %s172
    %p184 = scmp.eq.s32.totalorder %s26, 1
    %p185 = por %p183, %p184
    %p187 = scmp.ne.s32.totalorder %s172, %s186
    %p188 = scmp.eq.s32.totalorder %s26, 0
    %p189 = por %p187, %p188
    %s191 = sadd.s32 %s190, 1
    %p194 = scmp.eq.s32.totalorder %s20, 1
    %p195 = scmp.ne.s32.totalorder %s190, %s192
    %p196 = scmp.eq.s32.totalorder %s20, 0
    %p197 = por %p195, %p196
    %p198 = scmp.ne.s32.totalorder %s190, %s192
    %p199 = scmp.eq.s32.totalorder %s25, 1
    %p200 = por %p198, %p199
    %p201 = scmp.ne.s32.totalorder %s192, %s193
    %p202 = scmp.eq.s32.totalorder %s25, 0
    %p203 = por %p201, %p202
    %p204 = scmp.ne.s32.totalorder %s192, %s193
    %p205 = scmp.eq.s32.totalorder %s26, 1
    %p206 = por %p204, %p205
    %p208 = scmp.ne.s32.totalorder %s193, %s207
    %p209 = scmp.eq.s32.totalorder %s26, 0
    %p210 = por %p208, %p209
    %s212 = sadd.s32 %s211, 1
    %p215 = scmp.eq.s32.totalorder %s20, 1
    %p216 = scmp.ne.s32.totalorder %s211, %s213
    %p217 = scmp.eq.s32.totalorder %s20, 0
    %p218 = por %p216, %p217
    %p219 = scmp.ne.s32.totalorder %s211, %s213
    %p220 = scmp.eq.s32.totalorder %s25, 1
    %p221 = por %p219, %p220
    %p222 = scmp.ne.s32.totalorder %s213, %s214
    %p223 = scmp.eq.s32.totalorder %s25, 0
    %p224 = por %p222, %p223
    %p225 = scmp.ne.s32.totalorder %s213, %s214
    %p226 = scmp.eq.s32.totalorder %s26, 1
    %p227 = por %p225, %p226
    %p229 = scmp.ne.s32.totalorder %s214, %s228
    %p230 = scmp.eq.s32.totalorder %s26, 0
    %p231 = por %p229, %p230
    %s233 = sadd.s32 %s232, 1
    %p236 = scmp.eq.s32.totalorder %s20, 1
    %p237 = scmp.ne.s32.totalorder %s232, %s234
    %p238 = scmp.eq.s32.totalorder %s20, 0
    %p239 = por %p237, %p238
    %p240 = scmp.ne.s32.totalorder %s232, %s234
    %p241 = scmp.eq.s32.totalorder %s25, 1
    %p242 = por %p240, %p241
    %p243 = scmp.ne.s32.totalorder %s234, %s235
    %p244 = scmp.eq.s32.totalorder %s25, 0
    %p245 = por %p243, %p244
    %p246 = scmp.ne.s32.totalorder %s234, %s235
    %p247 = scmp.eq.s32.totalorder %s26, 1
    %p248 = por %p246, %p247
    %p250 = scmp.ne.s32.totalorder %s235, %s249
    %p251 = scmp.eq.s32.totalorder %s26, 0
    %p252 = por %p250, %p251
    %s253 = ssub.s32 %s20, %s27
    %p254 = scmp.eq.s32.totalorder %s253, 0
    %s256 = sadd.s32 %s255, 1
    %s257 = scalar_select %p254, %s255, %s256
    %p260 = pneg %p254
    %p261 = scmp.eq.s32.totalorder %s20, 1
    %p262 = por %p260, %p261
    %p263 = scmp.ne.s32.totalorder %s255, %s258
    %p264 = scmp.eq.s32.totalorder %s20, 0
    %p265 = por %p263, %p264
    %p266 = scmp.ne.s32.totalorder %s255, %s258
    %p267 = scmp.eq.s32.totalorder %s25, 1
    %p268 = por %p266, %p267
    %p269 = scmp.ne.s32.totalorder %s258, %s259
    %p270 = scmp.eq.s32.totalorder %s25, 0
    %p271 = por %p269, %p270
    %p272 = scmp.ne.s32.totalorder %s258, %s259
    %p273 = scmp.eq.s32.totalorder %s26, 1
    %p274 = por %p272, %p273
    %p276 = scmp.ne.s32.totalorder %s259, %s275
    %p277 = scmp.eq.s32.totalorder %s26, 0
    %p278 = por %p276, %p277
    %s279 = ssub.s32 %s20, %s27
    %p280 = scmp.eq.s32.totalorder %s279, 0
    %s282 = sadd.s32 %s281, 1
    %s283 = scalar_select %p280, %s281, %s282
    %p286 = pneg %p280
    %p287 = scmp.eq.s32.totalorder %s20, 1
    %p288 = por %p286, %p287
    %p289 = scmp.ne.s32.totalorder %s281, %s284
    %p290 = scmp.eq.s32.totalorder %s20, 0
    %p291 = por %p289, %p290
    %p292 = scmp.ne.s32.totalorder %s281, %s284
    %p293 = scmp.eq.s32.totalorder %s25, 1
    %p294 = por %p292, %p293
    %p295 = scmp.ne.s32.totalorder %s284, %s285
    %p296 = scmp.eq.s32.totalorder %s25, 0
    %p297 = por %p295, %p296
    %p298 = scmp.ne.s32.totalorder %s284, %s285
    %p299 = scmp.eq.s32.totalorder %s26, 1
    %p300 = por %p298, %p299
    %p302 = scmp.ne.s32.totalorder %s285, %s301
    %p303 = scmp.eq.s32.totalorder %s26, 0
    %p304 = por %p302, %p303
    %s305 = ssub.s32 %s20, %s27
    %p306 = scmp.eq.s32.totalorder %s305, 0
    %s308 = sadd.s32 %s307, 1
    %s309 = scalar_select %p306, %s307, %s308
    %p312 = pneg %p306
    %p313 = scmp.eq.s32.totalorder %s20, 1
    %p314 = por %p312, %p313
    %p315 = scmp.ne.s32.totalorder %s307, %s310
    %p316 = scmp.eq.s32.totalorder %s20, 0
    %p317 = por %p315, %p316
    %p318 = scmp.ne.s32.totalorder %s307, %s310
    %p319 = scmp.eq.s32.totalorder %s25, 1
    %p320 = por %p318, %p319
    %p321 = scmp.ne.s32.totalorder %s310, %s311
    %p322 = scmp.eq.s32.totalorder %s25, 0
    %p323 = por %p321, %p322
    %p324 = scmp.ne.s32.totalorder %s310, %s311
    %p325 = scmp.eq.s32.totalorder %s26, 1
    %p326 = por %p324, %p325
    %p328 = scmp.ne.s32.totalorder %s311, %s327
    %p329 = scmp.eq.s32.totalorder %s26, 0
    %p330 = por %p328, %p329
    %s331 = ssub.s32 %s20, %s27
    %p332 = scmp.eq.s32.totalorder %s331, 0
    %s334 = sadd.s32 %s333, 1
    %s335 = scalar_select %p332, %s333, %s334
    %p338 = pneg %p332
    %p339 = scmp.eq.s32.totalorder %s20, 1
    %p340 = por %p338, %p339
    %p341 = scmp.ne.s32.totalorder %s333, %s336
    %p342 = scmp.eq.s32.totalorder %s20, 0
    %p343 = por %p341, %p342
    %p344 = scmp.ne.s32.totalorder %s333, %s336
    %p345 = scmp.eq.s32.totalorder %s25, 1
    %p346 = por %p344, %p345
    %p347 = scmp.ne.s32.totalorder %s336, %s337
    %p348 = scmp.eq.s32.totalorder %s25, 0
    %p349 = por %p347, %p348
    %p350 = scmp.ne.s32.totalorder %s336, %s337
    %p351 = scmp.eq.s32.totalorder %s26, 1
    %p352 = por %p350, %p351
    %p354 = scmp.ne.s32.totalorder %s337, %s353
    %p355 = scmp.eq.s32.totalorder %s26, 0
    %p356 = por %p354, %p355
    %p357 = scmp.le.s32.totalorder 1, %s20
    %p358 = scmp.lt.s32.totalorder %s20, 3
    %p359 = pnand %p357, %p358
    %p360 = pneg %p359
    // Predicated region
    $region9: #{dense_block_forward.6} parent=5 // pred_check
      _
    $region10: #{dense_block_forward.6} parent=5 // pred_check_branch
      %362 = sbr.rel (%p359) target = $region12
    $region11: #{dense_block_forward.6} parent=5 // pred_region
      %s363 = ssub.s32 %s20, 1
      // Predicated region
      $region13: #{dense_block_forward.6} parent=11 // pred_check
        %p364 = pneg %p119
      $region14: #{dense_block_forward.6} parent=11 // pred_check_branch
        %366 = sbr.rel (%p364) target = $region16
      $region15: #{dense_block_forward.6} parent=11 // pred_region
        _
      $region16: #{dense_block_forward.6} parent=11 // pred_fallthru
        _
      // Predicated region
      $region17: #{dense_block_forward.6} parent=11 // pred_check
        %p367 = pneg %p140
      $region18: #{dense_block_forward.6} parent=11 // pred_check_branch
        %369 = sbr.rel (%p367) target = $region20
      $region19: #{dense_block_forward.6} parent=11 // pred_region
        _
      $region20: #{dense_block_forward.6} parent=11 // pred_fallthru
        _
      // Predicated region
      $region21: #{dense_block_forward.6} parent=11 // pred_check
        %p370 = pneg %p161
      $region22: #{dense_block_forward.6} parent=11 // pred_check_branch
        %372 = sbr.rel (%p370) target = $region24
      $region23: #{dense_block_forward.6} parent=11 // pred_region
        _
      $region24: #{dense_block_forward.6} parent=11 // pred_fallthru
        _
      // Predicated region
      $region25: #{dense_block_forward.6} parent=11 // pred_check
        %p373 = pneg %p182
      $region26: #{dense_block_forward.6} parent=11 // pred_check_branch
        %375 = sbr.rel (%p373) target = $region28
      $region27: #{dense_block_forward.6} parent=11 // pred_region
        _
      $region28: #{dense_block_forward.6} parent=11 // pred_fallthru
        _
      // Predicated region
      $region29: #{dense_block_forward.6} parent=11 // pred_check
        %p376 = pneg %p203
      $region30: #{dense_block_forward.6} parent=11 // pred_check_branch
        %378 = sbr.rel (%p376) target = $region32
      $region31: #{dense_block_forward.6} parent=11 // pred_region
        _
      $region32: #{dense_block_forward.6} parent=11 // pred_fallthru
        _
      // Predicated region
      $region33: #{dense_block_forward.6} parent=11 // pred_check
        %p379 = pneg %p224
      $region34: #{dense_block_forward.6} parent=11 // pred_check_branch
        %381 = sbr.rel (%p379) target = $region36
      $region35: #{dense_block_forward.6} parent=11 // pred_region
        _
      $region36: #{dense_block_forward.6} parent=11 // pred_fallthru
        _
      // Predicated region
      $region37: #{dense_block_forward.6} parent=11 // pred_check
        %p382 = pneg %p245
      $region38: #{dense_block_forward.6} parent=11 // pred_check_branch
        %384 = sbr.rel (%p382) target = $region40
      $region39: #{dense_block_forward.6} parent=11 // pred_region
        _
      $region40: #{dense_block_forward.6} parent=11 // pred_fallthru
        _
    $region12: #{dense_block_forward.6} parent=5 // pred_fallthru
      _
    %p385 = scmp.lt.s32.totalorder %s20, 2
    // Predicated region
    $region41: #{dense_block_forward.6} parent=5 // pred_check
      %p386 = pneg %p385
    $region42: #{dense_block_forward.6} parent=5 // pred_check_branch
      %388 = sbr.rel (%p386) target = $region44
    $region43: #{dense_block_forward.6} parent=5 // pred_region
      // Predicated region
      $region45: #{dense_block_forward.6} parent=43 // pred_check
        %p389 = pneg %p40
      $region46: #{dense_block_forward.6} parent=43 // pred_check_branch
        %391 = sbr.rel (%p389) target = $region48
      $region47: #{dense_block_forward.6} parent=43 // pred_region
        %p392 = scmp.lt.s32.totalorder %s20, 1
        %s393 = scalar_select %p392, %s20, 1
        %s394 = smul.addr %s393, 3
        %s395 = smul.addr %s394, 4
        %s396 = scalar_lea.vmem %s0, %s395
      $region48: #{dense_block_forward.6} parent=43 // pred_fallthru
        _
      // Predicated region
      $region49: #{dense_block_forward.6} parent=43 // pred_check
        %p397 = pneg %p66
      $region50: #{dense_block_forward.6} parent=43 // pred_check_branch
        %399 = sbr.rel (%p397) target = $region52
      $region51: #{dense_block_forward.6} parent=43 // pred_region
        %p400 = scmp.lt.s32.totalorder %s20, 1
        %s401 = scalar_select %p400, %s20, 1
        %s402 = smul.addr %s401, 3
        %s403 = smul.addr %s402, 4
        %s404 = scalar_lea.vmem %s1, %s403
      $region52: #{dense_block_forward.6} parent=43 // pred_fallthru
        _
      // Predicated region
      $region53: #{dense_block_forward.6} parent=43 // pred_check
        %p405 = pneg %p92
      $region54: #{dense_block_forward.6} parent=43 // pred_check_branch
        %407 = sbr.rel (%p405) target = $region56
      $region55: #{dense_block_forward.6} parent=43 // pred_region
        %p408 = scmp.lt.s32.totalorder %s20, 1
        %s409 = scalar_select %p408, %s20, 1
        %s410 = smul.addr %s409, 2
        %s411 = smul.addr %s410, 8
        %s412 = scalar_lea.vmem %s2, %s411
      $region56: #{dense_block_forward.6} parent=43 // pred_fallthru
        _
    $region44: #{dense_block_forward.6} parent=5 // pred_fallthru
      _
    %p413 = scmp.le.s32.totalorder 1, %s20
    %p414 = scmp.lt.s32.totalorder %s20, 3
    %p415 = pnand %p413, %p414
    %p416 = pneg %p415
    // Predicated region
    $region57: #{dense_block_forward.6} parent=5 // pred_check
      _
    $region58: #{dense_block_forward.6} parent=5 // pred_check_branch
      %418 = sbr.rel (%p415) target = $region60
    $region59: #{dense_block_forward.6} parent=5 // pred_region
      %s419 = ssub.s32 %s20, 1
      %p420 = scmp.lt.s32.totalorder %s25, 1
      %s421 = scalar_select %p420, %s25, 1
      %s422 = smul.addr %s421, 3
      %s423 = smul.addr %s422, 4
      %s424 = scalar_lea.vmem %s0, %s423
      %p425 = pneg %p46
      %p426 = pneg %p43
      %p427 = scmp.lt.s32.totalorder %s25, 1
      %s428 = scalar_select %p427, %s25, 1
      %s429 = smul.addr %s428, 3
      %s430 = smul.addr %s429, 4
      %s431 = scalar_lea.vmem %s1, %s430
      %p432 = pneg %p72
      %p433 = pneg %p69
      %p434 = scmp.lt.s32.totalorder %s25, 1
      %s435 = scalar_select %p434, %s25, 1
      %s436 = smul.addr %s435, 2
      %s437 = smul.addr %s436, 8
      %s438 = scalar_lea.vmem %s2, %s437
      %p439 = pneg %p98
      %p440 = pneg %p95
      %p441 = pneg %p119
      %p442 = pneg %p116
      %p443 = pneg %p140
      %p444 = pneg %p137
      %p445 = pneg %p161
      %p446 = pneg %p158
      %p447 = pneg %p182
      %p448 = pneg %p179
      %p449 = pneg %p203
      %p450 = pneg %p200
      %p451 = pneg %p224
      %p452 = pneg %p221
      %p453 = pneg %p245
      %p454 = pneg %p242
      %p455 = pneg %p271
      %p456 = pneg %p268
      %p457 = scmp.lt.s32.totalorder %s25, 1
      %s458 = scalar_select %p457, %s25, 1
      %s459 = smul.addr %s458, 2
      %s460 = smul.addr %s459, 8
      %s461 = scalar_lea.vmem %s10, %s460
      %p462 = pneg %p297
      %p463 = pneg %p294
      %p464 = scmp.lt.s32.totalorder %s25, 1
      %s465 = scalar_select %p464, %s25, 1
      %s466 = scalar_lea.vmem %s11, %s465
      %p467 = pneg %p323
      %p468 = pneg %p320
      %p469 = scmp.lt.s32.totalorder %s25, 1
      %s470 = scalar_select %p469, %s25, 1
      %s471 = scalar_lea.vmem %s12, %s470
      %p472 = pneg %p349
      %p473 = pneg %p346
      %p474 = scmp.lt.s32.totalorder %s25, 1
      %s475 = scalar_select %p474, %s25, 1
      %s476 = smul.addr %s475, 3
      %s477 = smul.addr %s476, 4
      %s478 = scalar_lea.vmem %s13, %s477
      %p479 = scmp.lt.s32.totalorder %s25, 1
      %s480 = scalar_select %p479, %s25, 1
      %s481 = smul.addr %s480, 3
      %s482 = smul.addr %s481, 4
      %s483 = scalar_lea.vmem %s0, %s482
      %p484 = scmp.lt.s32.totalorder %s25, 1
      %s485 = scalar_select %p484, %s25, 1
      %s486 = smul.addr %s485, 3
      %s487 = smul.addr %s486, 4
      %s488 = scalar_lea.vmem %s1, %s487
      %p489 = scmp.lt.s32.totalorder %s25, 1
      %s490 = scalar_select %p489, %s25, 1
      %s491 = smul.addr %s490, 2
      %s492 = smul.addr %s491, 8
      %s493 = scalar_lea.vmem %s2, %s492
      %p494 = scmp.lt.s32.totalorder %s25, 1
      %s495 = scalar_select %p494, %s25, 1
      %s496 = smul.addr %s495, 2
      %s497 = smul.addr %s496, 8
      %s498 = scalar_lea.vmem %s10, %s497
      %p499 = scmp.lt.s32.totalorder %s25, 1
      %s500 = scalar_select %p499, %s25, 1
      %s501 = scalar_lea.vmem %s11, %s500
      %p502 = scmp.lt.s32.totalorder %s25, 1
      %s503 = scalar_select %p502, %s25, 1
      %s504 = scalar_lea.vmem %s12, %s503
      %p505 = scmp.lt.s32.totalorder %s25, 1
      %s506 = scalar_select %p505, %s25, 1
      %s507 = smul.addr %s506, 3
      %s508 = smul.addr %s507, 4
      %s509 = scalar_lea.vmem %s13, %s508
      %v511 = vld [vmem:[%s483] sm:$0xf]
      %v512 = vld [vmem:[%s483 + $0x4] sm:$0xf]
      %v513 = vld [vmem:[%s483 + $0x8] sm:$0x1]
      %v514 = vld [vmem:[%s8] sm:$0xf]
      %v515 = vld [vmem:[%s8 + $0x4] sm:$0xf]
      %v516 = vld [vmem:[%s8 + $0x8] sm:$0xf]
      %v517 = vld [vmem:[%s8 + $0xc] sm:$0xf]
      %v518 = vld [vmem:[%s8 + $0x10] sm:$0xf]
      %v519 = vld [vmem:[%s8 + $0x14] sm:$0xf]
      %v520 = vld [vmem:[%s8 + $0x18] sm:$0xf]
      %v521 = vld [vmem:[%s8 + $0x1c] sm:$0xf]
      %v525 = vunpack.c.l.b16 %v511
      %v526 = vunpack.c.l.b16 %v512
      %v527 = vunpack.c.l.b16 %v513
      %v528 = vpack.c.b16 %v526, %v525
      %v529 = vpack.c.b16 %v527, %v527
      %v538 = vunpack.c.l.b16 %v514
      %v539 = vunpack.c.l.b16 %v515
      %v540 = vunpack.c.l.b16 %v516
      %v541 = vunpack.c.l.b16 %v517
      %v542 = vunpack.c.l.b16 %v518
      %v543 = vunpack.c.l.b16 %v519
      %v544 = vunpack.c.l.b16 %v520
      %v545 = vunpack.c.l.b16 %v521
      %v546 = vpack.c.b16 %v539, %v538
      %v547 = vpack.c.b16 %v541, %v540
      %v548 = vpack.c.b16 %v543, %v542
      %v549 = vpack.c.b16 %v545, %v544
      %vm554 = vcmask 523264
      %v556 = vsel %vm554, %v528, 0
      %v559 = vsel %vm554, %v529, 0
      %561 = vmatpush.bf16.msra.mxu0 0
      %562 = vmatpush.bf16.msra.mxu0 0
      %563 = vmatpush.bf16.msra.mxu0 0
      %564 = vmatpush.bf16.msra.mxu0 0
      %565 = vmatpush.bf16.msra.mxu0 %v549
      %566 = vmatpush.bf16.msra.mxu0 %v548
      %567 = vmatpush.bf16.msra.mxu0 %v547
      %568 = vmatpush.bf16.msra.mxu0 %v546
      %569 = vmatmul.bf16.gmra.mxu0 %v556
      %v570 = vpop.f32.mrf.mxu0
      %v571 = vadd.f32 0.0, %v570
      %v572 = vpop.f32.mrf.mxu0
      %v573 = vadd.f32 0.0, %v572
      %574 = vmatmul.bf16.gmra.mxu0 %v559
      %v575 = vpop.f32.mrf.mxu0
      %v576 = vpop.f32.mrf.mxu0
      %577 = vdwg.mxu0
      %v578 = vadd.f32 %v571, 0.0
      %v579 = vadd.f32 %v573, 0.0
      %s580 = scalar_lea.vmem %s8, 32
      %v581 = vld [vmem:[%s580] sm:$0xf]
      %v582 = vld [vmem:[%s580 + $0x4] sm:$0xf]
      %v583 = vld [vmem:[%s580 + $0x8] sm:$0xf]
      %v584 = vld [vmem:[%s580 + $0xc] sm:$0xf]
      %v585 = vld [vmem:[%s580 + $0x10] sm:$0xf]
      %v586 = vld [vmem:[%s580 + $0x14] sm:$0xf]
      %v587 = vld [vmem:[%s580 + $0x18] sm:$0xf]
      %v588 = vld [vmem:[%s580 + $0x1c] sm:$0xf]
      %v597 = vunpack.c.l.b16 %v581
      %v598 = vunpack.c.l.b16 %v582
      %v599 = vunpack.c.l.b16 %v583
      %v600 = vunpack.c.l.b16 %v584
      %v601 = vunpack.c.l.b16 %v585
      %v602 = vunpack.c.l.b16 %v586
      %v603 = vunpack.c.l.b16 %v587
      %v604 = vunpack.c.l.b16 %v588
      %v605 = vpack.c.b16 %v598, %v597
      %v606 = vpack.c.b16 %v600, %v599
      %v607 = vpack.c.b16 %v602, %v601
      %v608 = vpack.c.b16 %v604, %v603
      %613 = vmatpush.bf16.msra.mxu0 0
      %614 = vmatpush.bf16.msra.mxu0 0
      %615 = vmatpush.bf16.msra.mxu0 0
      %616 = vmatpush.bf16.msra.mxu0 0
      %617 = vmatpush.bf16.msra.mxu0 %v608
      %618 = vmatpush.bf16.msra.mxu0 %v607
      %619 = vmatpush.bf16.msra.mxu0 %v606
      %620 = vmatpush.bf16.msra.mxu0 %v605
      %621 = vmatmul.bf16.gmra.mxu0 %v556
      %v622 = vpop.f32.mrf.mxu0
      %v623 = vadd.f32 0.0, %v622
      %v624 = vpop.f32.mrf.mxu0
      %v625 = vadd.f32 0.0, %v624
      %626 = vmatmul.bf16.gmra.mxu0 %v559
      %v627 = vpop.f32.mrf.mxu0
      %v628 = vadd.f32 0.0, %v627
      %v629 = vpop.f32.mrf.mxu0
      %630 = vdwg.mxu0
      %vm634 = vcmask 1046528
      %v635 = vrot.slane %v623, 1
      %v636 = vrot.slane %v625, 1
      %v637 = vsel %vm634, %v635, %v636
      %v638 = vrot.slane %v628, 1
      %v639 = vsel %vm634, %v636, %v638
      %v642 = vadd.f32 %v578, %v637
      %v643 = vadd.f32 %v579, %v639
      %s644 = scalar_lea.vmem %s8, 64
      %v645 = vld [vmem:[%s644] sm:$0xf]
      %v646 = vld [vmem:[%s644 + $0x4] sm:$0xf]
      %v647 = vld [vmem:[%s644 + $0x8] sm:$0xf]
      %v648 = vld [vmem:[%s644 + $0xc] sm:$0xf]
      %v649 = vld [vmem:[%s644 + $0x10] sm:$0xf]
      %v650 = vld [vmem:[%s644 + $0x14] sm:$0xf]
      %v651 = vld [vmem:[%s644 + $0x18] sm:$0xf]
      %v652 = vld [vmem:[%s644 + $0x1c] sm:$0xf]
      %v661 = vunpack.c.l.b16 %v645
      %v662 = vunpack.c.l.b16 %v646
      %v663 = vunpack.c.l.b16 %v647
      %v664 = vunpack.c.l.b16 %v648
      %v665 = vunpack.c.l.b16 %v649
      %v666 = vunpack.c.l.b16 %v650
      %v667 = vunpack.c.l.b16 %v651
      %v668 = vunpack.c.l.b16 %v652
      %v669 = vpack.c.b16 %v662, %v661
      %v670 = vpack.c.b16 %v664, %v663
      %v671 = vpack.c.b16 %v666, %v665
      %v672 = vpack.c.b16 %v668, %v667
      %677 = vmatpush.bf16.msra.mxu0 0
      %678 = vmatpush.bf16.msra.mxu0 0
      %679 = vmatpush.bf16.msra.mxu0 0
      %680 = vmatpush.bf16.msra.mxu0 0
      %681 = vmatpush.bf16.msra.mxu0 %v672
      %682 = vmatpush.bf16.msra.mxu0 %v671
      %683 = vmatpush.bf16.msra.mxu0 %v670
      %684 = vmatpush.bf16.msra.mxu0 %v669
      %685 = vmatmul.bf16.gmra.mxu0 %v556
      %v686 = vpop.f32.mrf.mxu0
      %v687 = vadd.f32 0.0, %v686
      %v688 = vpop.f32.mrf.mxu0
      %v689 = vadd.f32 0.0, %v688
      %690 = vmatmul.bf16.gmra.mxu0 %v559
      %v691 = vpop.f32.mrf.mxu0
      %v692 = vadd.f32 0.0, %v691
      %v693 = vpop.f32.mrf.mxu0
      %694 = vdwg.mxu0
      %vm698 = vcmask 1045504
      %v699 = vrot.slane %v687, 2
      %v700 = vrot.slane %v689, 2
      %v701 = vsel %vm698, %v699, %v700
      %v702 = vrot.slane %v692, 2
      %v703 = vsel %vm698, %v700, %v702
      %v706 = vadd.f32 %v642, %v701
      %v707 = vadd.f32 %v643, %v703
      %v708 = vld [vmem:[%s488] sm:$0xf]
      %v709 = vld [vmem:[%s488 + $0x4] sm:$0xf]
      %v710 = vld [vmem:[%s488 + $0x8] sm:$0x1]
      %s711 = scalar_lea.vmem %s8, 96
      %v712 = vld [vmem:[%s711] sm:$0xf]
      %v713 = vld [vmem:[%s711 + $0x4] sm:$0xf]
      %v714 = vld [vmem:[%s711 + $0x8] sm:$0xf]
      %v715 = vld [vmem:[%s711 + $0xc] sm:$0xf]
      %v716 = vld [vmem:[%s711 + $0x10] sm:$0xf]
      %v717 = vld [vmem:[%s711 + $0x14] sm:$0xf]
      %v718 = vld [vmem:[%s711 + $0x18] sm:$0xf]
      %v719 = vld [vmem:[%s711 + $0x1c] sm:$0xf]
      %v723 = vunpack.c.l.b16 %v708
      %v724 = vunpack.c.l.b16 %v709
      %v725 = vunpack.c.l.b16 %v710
      %v726 = vpack.c.b16 %v724, %v723
      %v727 = vpack.c.b16 %v725, %v725
      %v736 = vunpack.c.l.b16 %v712
      %v737 = vunpack.c.l.b16 %v713
      %v738 = vunpack.c.l.b16 %v714
      %v739 = vunpack.c.l.b16 %v715
      %v740 = vunpack.c.l.b16 %v716
      %v741 = vunpack.c.l.b16 %v717
      %v742 = vunpack.c.l.b16 %v718
      %v743 = vunpack.c.l.b16 %v719
      %v744 = vpack.c.b16 %v737, %v736
      %v745 = vpack.c.b16 %v739, %v738
      %v746 = vpack.c.b16 %v741, %v740
      %v747 = vpack.c.b16 %v743, %v742
      %v753 = vsel %vm554, %v726, 0
      %v756 = vsel %vm554, %v727, 0
      %758 = vmatpush.bf16.msra.mxu0 0
      %759 = vmatpush.bf16.msra.mxu0 0
      %760 = vmatpush.bf16.msra.mxu0 0
      %761 = vmatpush.bf16.msra.mxu0 0
      %762 = vmatpush.bf16.msra.mxu0 %v747
      %763 = vmatpush.bf16.msra.mxu0 %v746
      %764 = vmatpush.bf16.msra.mxu0 %v745
      %765 = vmatpush.bf16.msra.mxu0 %v744
      %766 = vmatmul.bf16.gmra.mxu0 %v753
      %v767 = vpop.f32.mrf.mxu0
      %v768 = vadd.f32 0.0, %v767
      %v769 = vpop.f32.mrf.mxu0
      %v770 = vadd.f32 0.0, %v769
      %771 = vmatmul.bf16.gmra.mxu0 %v756
      %v772 = vpop.f32.mrf.mxu0
      %v773 = vpop.f32.mrf.mxu0
      %774 = vdwg.mxu0
      %v775 = vadd.f32 %v706, %v768
      %v776 = vadd.f32 %v707, %v770
      %s777 = scalar_lea.vmem %s8, 128
      %v778 = vld [vmem:[%s777] sm:$0xf]
      %v779 = vld [vmem:[%s777 + $0x4] sm:$0xf]
      %v780 = vld [vmem:[%s777 + $0x8] sm:$0xf]
      %v781 = vld [vmem:[%s777 + $0xc] sm:$0xf]
      %v782 = vld [vmem:[%s777 + $0x10] sm:$0xf]
      %v783 = vld [vmem:[%s777 + $0x14] sm:$0xf]
      %v784 = vld [vmem:[%s777 + $0x18] sm:$0xf]
      %v785 = vld [vmem:[%s777 + $0x1c] sm:$0xf]
      %v794 = vunpack.c.l.b16 %v778
      %v795 = vunpack.c.l.b16 %v779
      %v796 = vunpack.c.l.b16 %v780
      %v797 = vunpack.c.l.b16 %v781
      %v798 = vunpack.c.l.b16 %v782
      %v799 = vunpack.c.l.b16 %v783
      %v800 = vunpack.c.l.b16 %v784
      %v801 = vunpack.c.l.b16 %v785
      %v802 = vpack.c.b16 %v795, %v794
      %v803 = vpack.c.b16 %v797, %v796
      %v804 = vpack.c.b16 %v799, %v798
      %v805 = vpack.c.b16 %v801, %v800
      %810 = vmatpush.bf16.msra.mxu0 0
      %811 = vmatpush.bf16.msra.mxu0 0
      %812 = vmatpush.bf16.msra.mxu0 0
      %813 = vmatpush.bf16.msra.mxu0 0
      %814 = vmatpush.bf16.msra.mxu0 %v805
      %815 = vmatpush.bf16.msra.mxu0 %v804
      %816 = vmatpush.bf16.msra.mxu0 %v803
      %817 = vmatpush.bf16.msra.mxu0 %v802
      %818 = vmatmul.bf16.gmra.mxu0 %v753
      %v819 = vpop.f32.mrf.mxu0
      %v820 = vadd.f32 0.0, %v819
      %v821 = vpop.f32.mrf.mxu0
      %v822 = vadd.f32 0.0, %v821
      %823 = vmatmul.bf16.gmra.mxu0 %v756
      %v824 = vpop.f32.mrf.mxu0
      %v825 = vadd.f32 0.0, %v824
      %v826 = vpop.f32.mrf.mxu0
      %827 = vdwg.mxu0
      %v831 = vrot.slane %v820, 1
      %v832 = vrot.slane %v822, 1
      %v833 = vsel %vm634, %v831, %v832
      %v834 = vrot.slane %v825, 1
      %v835 = vsel %vm634, %v832, %v834
      %v838 = vadd.f32 %v775, %v833
      %v839 = vadd.f32 %v776, %v835
      %s840 = scalar_lea.vmem %s8, 160
      %v841 = vld [vmem:[%s840] sm:$0xf]
      %v842 = vld [vmem:[%s840 + $0x4] sm:$0xf]
      %v843 = vld [vmem:[%s840 + $0x8] sm:$0xf]
      %v844 = vld [vmem:[%s840 + $0xc] sm:$0xf]
      %v845 = vld [vmem:[%s840 + $0x10] sm:$0xf]
      %v846 = vld [vmem:[%s840 + $0x14] sm:$0xf]
      %v847 = vld [vmem:[%s840 + $0x18] sm:$0xf]
      %v848 = vld [vmem:[%s840 + $0x1c] sm:$0xf]
      %v857 = vunpack.c.l.b16 %v841
      %v858 = vunpack.c.l.b16 %v842
      %v859 = vunpack.c.l.b16 %v843
      %v860 = vunpack.c.l.b16 %v844
      %v861 = vunpack.c.l.b16 %v845
      %v862 = vunpack.c.l.b16 %v846
      %v863 = vunpack.c.l.b16 %v847
      %v864 = vunpack.c.l.b16 %v848
      %v865 = vpack.c.b16 %v858, %v857
      %v866 = vpack.c.b16 %v860, %v859
      %v867 = vpack.c.b16 %v862, %v861
      %v868 = vpack.c.b16 %v864, %v863
      %873 = vmatpush.bf16.msra.mxu0 0
      %874 = vmatpush.bf16.msra.mxu0 0
      %875 = vmatpush.bf16.msra.mxu0 0
      %876 = vmatpush.bf16.msra.mxu0 0
      %877 = vmatpush.bf16.msra.mxu0 %v868
      %878 = vmatpush.bf16.msra.mxu0 %v867
      %879 = vmatpush.bf16.msra.mxu0 %v866
      %880 = vmatpush.bf16.msra.mxu0 %v865
      %881 = vmatmul.bf16.gmra.mxu0 %v753
      %v882 = vpop.f32.mrf.mxu0
      %v883 = vadd.f32 0.0, %v882
      %v884 = vpop.f32.mrf.mxu0
      %v885 = vadd.f32 0.0, %v884
      %886 = vmatmul.bf16.gmra.mxu0 %v756
      %v887 = vpop.f32.mrf.mxu0
      %v888 = vadd.f32 0.0, %v887
      %v889 = vpop.f32.mrf.mxu0
      %890 = vdwg.mxu0
      %v894 = vrot.slane %v883, 2
      %v895 = vrot.slane %v885, 2
      %v896 = vsel %vm698, %v894, %v895
      %v897 = vrot.slane %v888, 2
      %v898 = vsel %vm698, %v895, %v897
      %v901 = vadd.f32 %v838, %v896
      %v902 = vadd.f32 %v839, %v898
      %v903 = vld [vmem:[%s3] sm:$0x1]
      %v904 = vld [vmem:[%s3 + $0x1] sm:$0x1]
      %v905 = vld [vmem:[%s4] sm:$0x1]
      %v906 = vld [vmem:[%s4 + $0x1] sm:$0x1]
      %v907 = vld [vmem:[%s5] sm:$0x1]
      %v908 = vld [vmem:[%s6] sm:$0x1]
      %v909 = vld [vmem:[%s7] sm:$0xff]
      %v910 = vld [vmem:[%s7 + $0x8] sm:$0xff]
      %v911 = vld [vmem:[%s7 + $0x10] sm:$0xff]
      %v912 = vld [vmem:[%s7 + $0x18] sm:$0xff]
      %v913 = vld [vmem:[%s7 + $0x20] sm:$0xff]
      %v914 = vld [vmem:[%s7 + $0x28] sm:$0xff]
      %v915 = vld [vmem:[%s7 + $0x30] sm:$0xff]
      %v916 = vld [vmem:[%s7 + $0x38] sm:$0xff]
      %919 = vst [vmem:[#allocation1] ss:$9 sm:$0xff] %v903
      %s920 = scalar_lea.vmem [#allocation1], 1
      %921 = vst [vmem:[%s920] ss:$9 sm:$0xff] %v904
      %v922 = vld [vmem:[#allocation1] sm:$0xff]
      %vm924 = vcmask 517120
      %v925 = vsel %vm924, %v922, 0.0
      %v926 = vrot.slane %v925, 4
      %v927 = vadd.f32 %v925, %v926
      %v928 = vrot.slane %v927, 2
      %v929 = vadd.f32 %v927, %v928
      %v930 = vrot.slane %v929, 1
      %v931 = vadd.f32 %v929, %v930
      %v932 = vmul.f32 %v903, %v903
      %v933 = vmul.f32 %v904, %v904
      %936 = vst [vmem:[#allocation1] ss:$9 sm:$0xff] %v932
      %s937 = scalar_lea.vmem [#allocation1], 1
      %938 = vst [vmem:[%s937] ss:$9 sm:$0xff] %v933
      %v939 = vld [vmem:[#allocation1] sm:$0xff]
      %v941 = vsel %vm924, %v939, 0.0
      %v942 = vrot.slane %v941, 4
      %v943 = vadd.f32 %v941, %v942
      %v944 = vrot.slane %v943, 2
      %v945 = vadd.f32 %v943, %v944
      %v946 = vrot.slane %v945, 1
      %v947 = vadd.f32 %v945, %v946
      %950 = vst [vmem:[#allocation1] ss:$9 sm:$0xff] %v905
      %s951 = scalar_lea.vmem [#allocation1], 1
      %952 = vst [vmem:[%s951] ss:$9 sm:$0xff] %v906
      %v953 = vld [vmem:[#allocation1] sm:$0xff]
      %v955 = vsel %vm924, %v953, 0.0
      %v956 = vrot.slane %v955, 4
      %v957 = vadd.f32 %v955, %v956
      %v958 = vrot.slane %v957, 2
      %v959 = vadd.f32 %v957, %v958
      %v960 = vrot.slane %v959, 1
      %v961 = vadd.f32 %v959, %v960
      %v963 = vsel %vm554, %v931, 0
      %965 = vmatpush.msra.mxu0 0.0
      %966 = vmatpush.msra.mxu0 0.0
      %967 = vmatpush.msra.mxu0 0.0
      %968 = vmatpush.msra.mxu0 0.0
      %969 = vmatpush.msra.mxu0 0.0
      %970 = vmatpush.msra.mxu0 0.0
      %971 = vmatpush.msra.mxu0 0.0
      %972 = vmatpush.msra.mxu0 0.0
      %973 = vmatpush.msra.mxu0 %v916
      %974 = vmatpush.msra.mxu0 %v915
      %975 = vmatpush.msra.mxu0 %v914
      %976 = vmatpush.msra.mxu0 %v913
      %977 = vmatpush.msra.mxu0 %v912
      %978 = vmatpush.msra.mxu0 %v911
      %979 = vmatpush.msra.mxu0 %v910
      %980 = vmatpush.msra.mxu0 %v909
      %981 = vmatmul.f32.gmra.mxu0 %v963
      %v982 = vpop.f32.mrf.mxu0
      %v983 = vadd.f32 0.0, %v982
      %984 = vdwg.mxu0
      %v986 = vsel %vm554, %v947, 0
      %988 = vmatpush.msra.mxu0 0.0
      %989 = vmatpush.msra.mxu0 0.0
      %990 = vmatpush.msra.mxu0 0.0
      %991 = vmatpush.msra.mxu0 0.0
      %992 = vmatpush.msra.mxu0 0.0
      %993 = vmatpush.msra.mxu0 0.0
      %994 = vmatpush.msra.mxu0 0.0
      %995 = vmatpush.msra.mxu0 0.0
      %996 = vmatpush.msra.mxu0 %v916
      %997 = vmatpush.msra.mxu0 %v915
      %998 = vmatpush.msra.mxu0 %v914
      %999 = vmatpush.msra.mxu0 %v913
      %1000 = vmatpush.msra.mxu0 %v912
      %1001 = vmatpush.msra.mxu0 %v911
      %1002 = vmatpush.msra.mxu0 %v910
      %1003 = vmatpush.msra.mxu0 %v909
      %1004 = vmatmul.f32.gmra.mxu0 %v986
      %v1005 = vpop.f32.mrf.mxu0
      %v1006 = vadd.f32 0.0, %v1005
      %1007 = vdwg.mxu0
      %v1008 = vmul.f32 %v983, 0.001953125
      %v1009 = vmul.f32 %v1006, 0.0625
      %v1011 = vsel %vm554, %v961, 0
      %1013 = vmatpush.msra.mxu0 0.0
      %1014 = vmatpush.msra.mxu0 0.0
      %1015 = vmatpush.msra.mxu0 0.0
      %1016 = vmatpush.msra.mxu0 0.0
      %1017 = vmatpush.msra.mxu0 0.0
      %1018 = vmatpush.msra.mxu0 0.0
      %1019 = vmatpush.msra.mxu0 0.0
      %1020 = vmatpush.msra.mxu0 0.0
      %1021 = vmatpush.msra.mxu0 %v916
      %1022 = vmatpush.msra.mxu0 %v915
      %1023 = vmatpush.msra.mxu0 %v914
      %1024 = vmatpush.msra.mxu0 %v913
      %1025 = vmatpush.msra.mxu0 %v912
      %1026 = vmatpush.msra.mxu0 %v911
      %1027 = vmatpush.msra.mxu0 %v910
      %1028 = vmatpush.msra.mxu0 %v909
      %1029 = vmatmul.f32.gmra.mxu0 %v1011
      %v1030 = vpop.f32.mrf.mxu0
      %v1031 = vadd.f32 %v1009, %v1030
      %1032 = vdwg.mxu0
      %v1033 = vmul.f32 %v983, %v1008
      %v1034 = vsub.f32 %v1031, %v1033
      %v1035 = vmul.f32 %v1034, 0.001953125
      %v1036 = vmax.f32 %v1035, 0.0
      %v1037 = vadd.f32 %v1036, 1e-05
      %v1038 = vrsqrt.pop %v1037
      %v1039 = vmul.f32 %v1038, %v1037
      %v1040 = vmul.f32 %v1039, %v1038
      %v1041 = vmul.f32 0.5, %v1040
      %v1042 = vsub.f32 1.5, %v1041
      %v1043 = vmul.f32 %v1038, %v1042
      %vm1044 = vweird.f32 %v1037
      %vm1045 = vweird.f32 %v1038
      %vm1046 = vmor %vm1044, %vm1045
      %v1047 = vsel %vm1046, %v1038, %v1043
      %v1048 = vmul.f32 %v907, %v1047
      %v1049 = vmul.f32 %v1008, %v1048
      %v1050 = vsub.f32 %v908, %v1049
      %v1051 = vld [vmem:[%s493] sm:$0xff]
      %v1052 = vld [vmem:[%s493 + $0x8] sm:$0xff]
      %v1054 = vperm.slane %v1048, 0
      %v1056 = vmul.f32 %v1051, %v1054
      %v1057 = vmul.f32 %v1052, %v1054
      %v1059 = vperm.slane %v1050, 0
      %v1061 = vadd.f32 %v1056, %v1059
      %v1062 = vadd.f32 %v1057, %v1059
      %vm1063 = vcmp.gt.f32.partialorder %v1061, 0.0
      %vm1064 = vcmp.gt.f32.partialorder %v1062, 0.0
      %v1065 = vmul.f32 %v1061, 0.2
      %v1066 = vmul.f32 %v1062, 0.2
      %v1067 = vsel %vm1063, %v1061, %v1065
      %v1068 = vsel %vm1064, %v1062, %v1066
      %vm1071 = vcmask 1040384
      %v1072 = vrot.slane %v1067, 7
      %v1073 = vrot.slane %v1068, 7
      %v1074 = vsel %vm1071, %v1072, %v1073
      %v1078 = vsel %vm1071, 0.0, %v1072
      %v1079 = vsel %vm1071, %v1073, 0.0
      %v1080 = vpack.c.bf16 %v1078, %v1078
      %v1081 = vpack.c.bf16 %v1074, %v1074
      %v1082 = vpack.c.bf16 %v1079, %v1079
      %vm1083 = vcmask 519168
      %1084 = vst.msk [vmem:[%s509] sm:$0xf] %vm1083, %v1080
      %1085 = vst.msk [vmem:[%s509 + $0x4] sm:$0xf] %vm1083, %v1081
      %vm1086 = vcmask 516096
      %1087 = vst.msk [vmem:[%s509 + $0x8] sm:$0x1] %vm1086, %v1082
      %s1088 = scalar_lea.vmem %s8, 192
      %v1089 = vld [vmem:[%s1088] sm:$0xf]
      %v1090 = vld [vmem:[%s1088 + $0x4] sm:$0xf]
      %v1091 = vld [vmem:[%s1088 + $0x8] sm:$0xf]
      %v1092 = vld [vmem:[%s1088 + $0xc] sm:$0xf]
      %v1093 = vld [vmem:[%s1088 + $0x10] sm:$0xf]
      %v1094 = vld [vmem:[%s1088 + $0x14] sm:$0xf]
      %v1095 = vld [vmem:[%s1088 + $0x18] sm:$0xf]
      %v1096 = vld [vmem:[%s1088 + $0x1c] sm:$0xf]
      %v1100 = vunpack.c.l.b16 %v1080
      %v1101 = vunpack.c.l.b16 %v1081
      %v1102 = vunpack.c.l.b16 %v1082
      %v1103 = vpack.c.b16 %v1101, %v1100
      %v1104 = vpack.c.b16 %v1102, %v1102
      %v1113 = vunpack.c.l.b16 %v1089
      %v1114 = vunpack.c.l.b16 %v1090
      %v1115 = vunpack.c.l.b16 %v1091
      %v1116 = vunpack.c.l.b16 %v1092
      %v1117 = vunpack.c.l.b16 %v1093
      %v1118 = vunpack.c.l.b16 %v1094
      %v1119 = vunpack.c.l.b16 %v1095
      %v1120 = vunpack.c.l.b16 %v1096
      %v1121 = vpack.c.b16 %v1114, %v1113
      %v1122 = vpack.c.b16 %v1116, %v1115
      %v1123 = vpack.c.b16 %v1118, %v1117
      %v1124 = vpack.c.b16 %v1120, %v1119
      %v1130 = vsel %vm554, %v1103, 0
      %v1133 = vsel %vm554, %v1104, 0
      %1135 = vmatpush.bf16.msra.mxu0 0
      %1136 = vmatpush.bf16.msra.mxu0 0
      %1137 = vmatpush.bf16.msra.mxu0 0
      %1138 = vmatpush.bf16.msra.mxu0 0
      %1139 = vmatpush.bf16.msra.mxu0 %v1124
      %1140 = vmatpush.bf16.msra.mxu0 %v1123
      %1141 = vmatpush.bf16.msra.mxu0 %v1122
      %1142 = vmatpush.bf16.msra.mxu0 %v1121
      %1143 = vmatmul.bf16.gmra.mxu0 %v1130
      %v1144 = vpop.f32.mrf.mxu0
      %v1145 = vadd.f32 0.0, %v1144
      %v1146 = vpop.f32.mrf.mxu0
      %v1147 = vadd.f32 0.0, %v1146
      %1148 = vmatmul.bf16.gmra.mxu0 %v1133
      %v1149 = vpop.f32.mrf.mxu0
      %v1150 = vpop.f32.mrf.mxu0
      %1151 = vdwg.mxu0
      %v1152 = vadd.f32 %v901, %v1145
      %v1153 = vadd.f32 %v902, %v1147
      %s1154 = scalar_lea.vmem %s8, 224
      %v1155 = vld [vmem:[%s1154] sm:$0xf]
      %v1156 = vld [vmem:[%s1154 + $0x4] sm:$0xf]
      %v1157 = vld [vmem:[%s1154 + $0x8] sm:$0xf]
      %v1158 = vld [vmem:[%s1154 + $0xc] sm:$0xf]
      %v1159 = vld [vmem:[%s1154 + $0x10] sm:$0xf]
      %v1160 = vld [vmem:[%s1154 + $0x14] sm:$0xf]
      %v1161 = vld [vmem:[%s1154 + $0x18] sm:$0xf]
      %v1162 = vld [vmem:[%s1154 + $0x1c] sm:$0xf]
      %v1171 = vunpack.c.l.b16 %v1155
      %v1172 = vunpack.c.l.b16 %v1156
      %v1173 = vunpack.c.l.b16 %v1157
      %v1174 = vunpack.c.l.b16 %v1158
      %v1175 = vunpack.c.l.b16 %v1159
      %v1176 = vunpack.c.l.b16 %v1160
      %v1177 = vunpack.c.l.b16 %v1161
      %v1178 = vunpack.c.l.b16 %v1162
      %v1179 = vpack.c.b16 %v1172, %v1171
      %v1180 = vpack.c.b16 %v1174, %v1173
      %v1181 = vpack.c.b16 %v1176, %v1175
      %v1182 = vpack.c.b16 %v1178, %v1177
      %1187 = vmatpush.bf16.msra.mxu0 0
      %1188 = vmatpush.bf16.msra.mxu0 0
      %1189 = vmatpush.bf16.msra.mxu0 0
      %1190 = vmatpush.bf16.msra.mxu0 0
      %1191 = vmatpush.bf16.msra.mxu0 %v1182
      %1192 = vmatpush.bf16.msra.mxu0 %v1181
      %1193 = vmatpush.bf16.msra.mxu0 %v1180
      %1194 = vmatpush.bf16.msra.mxu0 %v1179
      %1195 = vmatmul.bf16.gmra.mxu0 %v1130
      %v1196 = vpop.f32.mrf.mxu0
      %v1197 = vadd.f32 0.0, %v1196
      %v1198 = vpop.f32.mrf.mxu0
      %v1199 = vadd.f32 0.0, %v1198
      %1200 = vmatmul.bf16.gmra.mxu0 %v1133
      %v1201 = vpop.f32.mrf.mxu0
      %v1202 = vadd.f32 0.0, %v1201
      %v1203 = vpop.f32.mrf.mxu0
      %1204 = vdwg.mxu0
      %v1208 = vrot.slane %v1197, 1
      %v1209 = vrot.slane %v1199, 1
      %v1210 = vsel %vm634, %v1208, %v1209
      %v1211 = vrot.slane %v1202, 1
      %v1212 = vsel %vm634, %v1209, %v1211
      %v1215 = vadd.f32 %v1152, %v1210
      %v1216 = vadd.f32 %v1153, %v1212
      %s1217 = scalar_lea.vmem %s8, 256
      %v1218 = vld [vmem:[%s1217] sm:$0xf]
      %v1219 = vld [vmem:[%s1217 + $0x4] sm:$0xf]
      %v1220 = vld [vmem:[%s1217 + $0x8] sm:$0xf]
      %v1221 = vld [vmem:[%s1217 + $0xc] sm:$0xf]
      %v1222 = vld [vmem:[%s1217 + $0x10] sm:$0xf]
      %v1223 = vld [vmem:[%s1217 + $0x14] sm:$0xf]
      %v1224 = vld [vmem:[%s1217 + $0x18] sm:$0xf]
      %v1225 = vld [vmem:[%s1217 + $0x1c] sm:$0xf]
      %v1234 = vunpack.c.l.b16 %v1218
      %v1235 = vunpack.c.l.b16 %v1219
      %v1236 = vunpack.c.l.b16 %v1220
      %v1237 = vunpack.c.l.b16 %v1221
      %v1238 = vunpack.c.l.b16 %v1222
      %v1239 = vunpack.c.l.b16 %v1223
      %v1240 = vunpack.c.l.b16 %v1224
      %v1241 = vunpack.c.l.b16 %v1225
      %v1242 = vpack.c.b16 %v1235, %v1234
      %v1243 = vpack.c.b16 %v1237, %v1236
      %v1244 = vpack.c.b16 %v1239, %v1238
      %v1245 = vpack.c.b16 %v1241, %v1240
      %1250 = vmatpush.bf16.msra.mxu0 0
      %1251 = vmatpush.bf16.msra.mxu0 0
      %1252 = vmatpush.bf16.msra.mxu0 0
      %1253 = vmatpush.bf16.msra.mxu0 0
      %1254 = vmatpush.bf16.msra.mxu0 %v1245
      %1255 = vmatpush.bf16.msra.mxu0 %v1244
      %1256 = vmatpush.bf16.msra.mxu0 %v1243
      %1257 = vmatpush.bf16.msra.mxu0 %v1242
      %1258 = vmatmul.bf16.gmra.mxu0 %v1130
      %v1259 = vpop.f32.mrf.mxu0
      %v1260 = vadd.f32 0.0, %v1259
      %v1261 = vpop.f32.mrf.mxu0
      %v1262 = vadd.f32 0.0, %v1261
      %1263 = vmatmul.bf16.gmra.mxu0 %v1133
      %v1264 = vpop.f32.mrf.mxu0
      %v1265 = vadd.f32 0.0, %v1264
      %v1266 = vpop.f32.mrf.mxu0
      %1267 = vdwg.mxu0
      %v1271 = vrot.slane %v1260, 2
      %v1272 = vrot.slane %v1262, 2
      %v1273 = vsel %vm698, %v1271, %v1272
      %v1274 = vrot.slane %v1265, 2
      %v1275 = vsel %vm698, %v1272, %v1274
      %v1278 = vadd.f32 %v1215, %v1273
      %v1279 = vadd.f32 %v1216, %v1275
      %v1280 = vld [vmem:[%s9] sm:$0x1]
      %v1282 = vperm.slane %v1280, 0
      %v1284 = vadd.f32 %v1278, %v1282
      %v1285 = vadd.f32 %v1279, %v1282
      %1286 = vst.msk [vmem:[%s498] sm:$0xff] %vm554, %v1284
      %1287 = vst.msk [vmem:[%s498 + $0x8] sm:$0xff] %vm554, %v1285
      %v1288 = vsel %vm554, %v1284, 0.0
      %v1289 = vsel %vm554, %v1285, 0.0
      %v1290 = vadd.f32 %v1288, %v1289
      %v1291 = vrot.slane %v1290, 4
      %v1292 = vadd.f32 %v1290, %v1291
      %v1293 = vrot.slane %v1292, 2
      %v1294 = vadd.f32 %v1292, %v1293
      %v1295 = vrot.slane %v1294, 1
      %v1296 = vadd.f32 %v1294, %v1295
      %v1297 = vmul.f32 %v1296, 0.0625
      %v1298 = vsub.f32 %v1284, %v1297
      %v1299 = vsub.f32 %v1285, %v1297
      %1300 = vst.msk [vmem:[%s501] sm:$0x1] %vm1086, %v1296
      %v1301 = vmul.f32 %v1298, %v1298
      %v1302 = vmul.f32 %v1299, %v1299
      %v1303 = vsel %vm554, %v1301, 0.0
      %v1304 = vsel %vm554, %v1302, 0.0
      %v1305 = vadd.f32 %v1303, %v1304
      %v1306 = vrot.slane %v1305, 4
      %v1307 = vadd.f32 %v1305, %v1306
      %v1308 = vrot.slane %v1307, 2
      %v1309 = vadd.f32 %v1307, %v1308
      %v1310 = vrot.slane %v1309, 1
      %v1311 = vadd.f32 %v1309, %v1310
      %1312 = vst.msk [vmem:[%s504] sm:$0x1] %vm1086, %v1311
      %p1313 = scmp.lt.s32.totalorder %s25, 1
      %s1314 = scalar_select %p1313, %s25, 1
      %s1315 = smul.addr %s1314, 2
      %s1316 = smul.addr %s1315, 8
      %s1317 = scalar_lea.vmem %s10, %s1316
      %p1318 = scmp.lt.s32.totalorder %s25, 1
      %s1319 = scalar_select %p1318, %s25, 1
      %s1320 = scalar_lea.vmem %s11, %s1319
      %p1321 = scmp.lt.s32.totalorder %s25, 1
      %s1322 = scalar_select %p1321, %s25, 1
      %s1323 = scalar_lea.vmem %s12, %s1322
      %p1324 = scmp.lt.s32.totalorder %s25, 1
      %s1325 = scalar_select %p1324, %s25, 1
      %s1326 = smul.addr %s1325, 3
      %s1327 = smul.addr %s1326, 4
      %s1328 = scalar_lea.vmem %s13, %s1327
      // Predicated region
      $region61: #{dense_block_forward.6} parent=59 // pred_check
        %p1329 = pneg %p268
      $region62: #{dense_block_forward.6} parent=59 // pred_check_branch
        %1331 = sbr.rel (%p1329) target = $region64
      $region63: #{dense_block_forward.6} parent=59 // pred_region
        _
      $region64: #{dense_block_forward.6} parent=59 // pred_fallthru
        _
      // Predicated region
      $region65: #{dense_block_forward.6} parent=59 // pred_check
        %p1332 = pneg %p294
      $region66: #{dense_block_forward.6} parent=59 // pred_check_branch
        %1334 = sbr.rel (%p1332) target = $region68
      $region67: #{dense_block_forward.6} parent=59 // pred_region
        _
      $region68: #{dense_block_forward.6} parent=59 // pred_fallthru
        _
      // Predicated region
      $region69: #{dense_block_forward.6} parent=59 // pred_check
        %p1335 = pneg %p320
      $region70: #{dense_block_forward.6} parent=59 // pred_check_branch
        %1337 = sbr.rel (%p1335) target = $region72
      $region71: #{dense_block_forward.6} parent=59 // pred_region
        _
      $region72: #{dense_block_forward.6} parent=59 // pred_fallthru
        _
      // Predicated region
      $region73: #{dense_block_forward.6} parent=59 // pred_check
        %p1338 = pneg %p346
      $region74: #{dense_block_forward.6} parent=59 // pred_check_branch
        %1340 = sbr.rel (%p1338) target = $region76
      $region75: #{dense_block_forward.6} parent=59 // pred_region
        _
      $region76: #{dense_block_forward.6} parent=59 // pred_fallthru
        _
    $region60: #{dense_block_forward.6} parent=5 // pred_fallthru
      _
    %p1341 = scmp.le.s32.totalorder 2, %s20
    // Predicated region
    $region77: #{dense_block_forward.6} parent=5 // pred_check
      %p1342 = pneg %p1341
    $region78: #{dense_block_forward.6} parent=5 // pred_check_branch
      %1344 = sbr.rel (%p1342) target = $region80
    $region79: #{dense_block_forward.6} parent=5 // pred_region
      %s1345 = ssub.s32 %s20, 2
      // Predicated region
      $region81: #{dense_block_forward.6} parent=79 // pred_check
        %p1346 = pneg %p274
      $region82: #{dense_block_forward.6} parent=79 // pred_check_branch
        %1348 = sbr.rel (%p1346) target = $region84
      $region83: #{dense_block_forward.6} parent=79 // pred_region
        %p1349 = scmp.lt.s32.totalorder %s26, 1
        %s1350 = scalar_select %p1349, %s26, 1
        %s1351 = smul.addr %s1350, 2
        %s1352 = smul.addr %s1351, 8
        %s1353 = scalar_lea.vmem %s10, %s1352
      $region84: #{dense_block_forward.6} parent=79 // pred_fallthru
        _
      // Predicated region
      $region85: #{dense_block_forward.6} parent=79 // pred_check
        %p1354 = pneg %p300
      $region86: #{dense_block_forward.6} parent=79 // pred_check_branch
        %1356 = sbr.rel (%p1354) target = $region88
      $region87: #{dense_block_forward.6} parent=79 // pred_region
        %p1357 = scmp.lt.s32.totalorder %s26, 1
        %s1358 = scalar_select %p1357, %s26, 1
        %s1359 = scalar_lea.vmem %s11, %s1358
      $region88: #{dense_block_forward.6} parent=79 // pred_fallthru
        _
      // Predicated region
      $region89: #{dense_block_forward.6} parent=79 // pred_check
        %p1360 = pneg %p326
      $region90: #{dense_block_forward.6} parent=79 // pred_check_branch
        %1362 = sbr.rel (%p1360) target = $region92
      $region91: #{dense_block_forward.6} parent=79 // pred_region
        %p1363 = scmp.lt.s32.totalorder %s26, 1
        %s1364 = scalar_select %p1363, %s26, 1
        %s1365 = scalar_lea.vmem %s12, %s1364
      $region92: #{dense_block_forward.6} parent=79 // pred_fallthru
        _
      // Predicated region
      $region93: #{dense_block_forward.6} parent=79 // pred_check
        %p1366 = pneg %p352
      $region94: #{dense_block_forward.6} parent=79 // pred_check_branch
        %1368 = sbr.rel (%p1366) target = $region96
      $region95: #{dense_block_forward.6} parent=79 // pred_region
        %p1369 = scmp.lt.s32.totalorder %s26, 1
        %s1370 = scalar_select %p1369, %s26, 1
        %s1371 = smul.addr %s1370, 3
        %s1372 = smul.addr %s1371, 4
        %s1373 = scalar_lea.vmem %s13, %s1372
      $region96: #{dense_block_forward.6} parent=79 // pred_fallthru
        _
    $region80: #{dense_block_forward.6} parent=5 // pred_fallthru
      _
  $region6: #{dense_block_forward.6} parent=0 // loop_footer
    %s24 = sadd.s32 1, %s20
  $region7: #{dense_block_forward.6} parent=0 // loop_footer_branch
    %19 = sbr.rel target = $region3
  $region8: #{dense_block_forward.6} parent=0 // loop_exit
    _

</llo_original>
